<compile_context>
chip_gen: v5e
topology: v5e:2x2
jax: 0.10.0
libtpu: 0.0.40
codegen_flags: <defaults>
</compile_context>

<pallas_src>
import jax
import jax.numpy as jnp
from jax.experimental import pallas as pl
from jax.experimental.pallas import tpu as pltpu

H1, H2 = 1000, 500           # hidden sizes fixed by the PyTorch module
H1_PAD, H2_PAD = 1024, 512   # lane-aligned (multiple of 128) padded widths


# --------------------------------------------------------------------------
# Kernel
# --------------------------------------------------------------------------
def mlp_kernel(x_ref, w1_ref, b1_ref, w2_ref, b2_ref, w3_ref, b3_ref, o_ref):
    """Fused Linear->ReLU->Linear->ReLU->Linear for one batch tile."""
    cdt = w1_ref.dtype                      # compute dtype (bf16 by default)

    # Layer 1: (bt, in) @ (in, 1024) -> f32 accumulate; bias + ReLU in f32.
    h1 = jnp.dot(x_ref[...].astype(cdt), w1_ref[...],
                 preferred_element_type=jnp.float32)
    h1 = jnp.maximum(h1 + b1_ref[...], 0.0)

    # Layer 2: (bt, 1024) @ (1024, 512) -> f32; bias + ReLU in f32.
    # h1 feeds the MXU directly (no explicit VMEM scratch round-trip).
    h2 = jnp.dot(h1.astype(cdt), w2_ref[...], preferred_element_type=jnp.float32)
    h2 = jnp.maximum(h2 + b2_ref[...], 0.0)

    # Layer 3: (bt, 512) @ (512, out_pad); padded columns sliced off outside.
    h3 = jnp.dot(h2.astype(cdt), w3_ref[...], preferred_element_type=jnp.float32)
    o_ref[...] = (h3 + b3_ref[...]).astype(o_ref.dtype)


# --------------------------------------------------------------------------
# One-time parameter preparation (hoisted out of the forward path)
# --------------------------------------------------------------------------
def _pad2d(a, rows, cols):
    return jnp.pad(a, ((0, rows - a.shape[0]), (0, cols - a.shape[1])))


def prepare_params(params, compute_dtype=jnp.bfloat16):
    """Convert PyTorch-layout params ((out,in) weights, (out,) biases) into the
    kernel layout ONCE: transpose to (in,out), zero-pad to lane-aligned widths,
    cast weights to the compute dtype.  Biases stay f32 (f32 epilogue)."""
    w1, b1, w2, b2, w3, b3 = params
    in_f = w1.shape[1]
    out_f = w3.shape[0]
    out_pad = max(128, pl.cdiv(out_f, 128) * 128)
    return {
        "w1t": _pad2d(w1.T.astype(compute_dtype), in_f, H1_PAD),
        "b1":  _pad2d(b1.reshape(1, H1).astype(jnp.float32), 1, H1_PAD),
        "w2t": _pad2d(w2.T.astype(compute_dtype), H1_PAD, H2_PAD),
        "b2":  _pad2d(b2.reshape(1, H2).astype(jnp.float32), 1, H2_PAD),
        "w3t": _pad2d(w3.T.astype(compute_dtype), H2_PAD, out_pad),
        "b3":  _pad2d(b3.reshape(1, out_f).astype(jnp.float32), 1, out_pad),
        "out_features": out_f,
    }


# --------------------------------------------------------------------------
# Tile / semantics selection
# --------------------------------------------------------------------------
def _is_two_tc_chip():
    """True on v7x (2 TensorCores/chip); v5e/v6e have 1 TC."""
    try:
        kind = jax.devices()[0].device_kind.lower()
    except Exception:  # device query only; never wraps a pallas_call
        return False
    return ("v7" in kind) or ("7x" in kind)


def _select_batch_tile(B, max_tile):
    """Pick an 8-multiple tile that divides the (8-rounded) batch as evenly as
    possible, so the wrapper-side jnp.pad copy of x is zero (common case) or
    at most (grid_b * 8 - 1) rows."""
    b8 = pl.cdiv(B, 8) * 8
    if b8 <= max_tile:
        return b8, 1
    grid_b = pl.cdiv(b8, max_tile)
    tile = pl.cdiv(pl.cdiv(b8, grid_b), 8) * 8
    return tile, grid_b


# --------------------------------------------------------------------------
# pallas_call wrapper
# --------------------------------------------------------------------------
def _zero_map(i):
    return (0, 0)


def _batch_map(i):
    return (i, 0)


def _make_call(batch_tile, grid_b, in_f, out_pad, out_dtype, parallel_batch):
    wspec = lambda shape: pl.BlockSpec(shape, _zero_map)  # grid-invariant block
    return pl.pallas_call(
        mlp_kernel,
        out_shape=jax.ShapeDtypeStruct((grid_b * batch_tile, out_pad), out_dtype),
        grid_spec=pltpu.PrefetchScalarGridSpec(
            num_scalar_prefetch=0,
            grid=(grid_b,),
            in_specs=[
                pl.BlockSpec((batch_tile, in_f), _batch_map),  # x tile
                wspec((in_f, H1_PAD)),                         # W1^T
                wspec((1, H1_PAD)),                            # b1
                wspec((H1_PAD, H2_PAD)),                       # W2^T
                wspec((1, H2_PAD)),                            # b2
                wspec((H2_PAD, out_pad)),                      # W3^T
                wspec((1, out_pad)),                           # b3
            ],
            out_specs=pl.BlockSpec((batch_tile, out_pad), _batch_map),
        ),
        compiler_params=pltpu.CompilerParams(
            # "parallel" only for large, compute-bound batches: sharding the
            # batch axis across v7x's two TCs duplicates the grid-invariant
            # weight DMA, which dominates in the memory-bound small-B regime.
            dimension_semantics=("parallel" if parallel_batch else "arbitrary",),
            # Fits v7x's 64 MiB physical VMEM; actual use is ~6 MiB/step.
            vmem_limit_bytes=48 << 20,
        ),
    )


def net_linear_forward(x, prepared, *, batch_tile=None, max_batch_tile=None,
                       parallel_threshold=512):
    """Fused MLP forward. x: (B, in_features) f32/bf16, prepared = prepare_params()."""
    B, in_f = x.shape
    out_f = prepared["out_features"]
    out_pad = prepared["b3"].shape[1]

    if batch_tile is None:
        if B < parallel_threshold:
            # Weight-stream-bound: no megacore sharding anyway, so use the
            # largest single-TC tile (fewest grid steps, least overhead).
            max_tile = 512
        else:
            max_tile = (max_batch_tile if max_batch_tile is not None
                        else (256 if _is_two_tc_chip() else 512))
        tile, grid_b = _select_batch_tile(B, max_tile)
    else:
        tile = pl.cdiv(batch_tile, 8) * 8
        grid_b = pl.cdiv(B, tile)

    b_pad = tile * grid_b
    x_p = x if b_pad == B else jnp.pad(x, ((0, b_pad - B), (0, 0)))

    parallel_batch = (grid_b > 1) and (B >= parallel_threshold)
    out = _make_call(tile, grid_b, in_f, out_pad, x.dtype, parallel_batch)(
        x_p, prepared["w1t"], prepared["b1"], prepared["w2t"],
        prepared["b2"], prepared["w3t"], prepared["b3"])

    return out[:B, :out_f]


# --------------------------------------------------------------------------
# Init + reference
# --------------------------------------------------------------------------
def init_params(key, in_features, out_features):
    """PyTorch-style shapes/init: W is (out, in), U(-1/sqrt(fan_in), +)."""
    dims = [(H1, in_features), (H2, H1), (out_features, H2)]
    params = []
    for fo, fi in dims:
        kw, kb, key = jax.random.split(key, 3)
        bound = 1.0 / jnp.sqrt(jnp.float32(fi))
        params.append(jax.random.uniform(kw, (fo, fi), jnp.float32, -bound, bound))
        params.append(jax.random.uniform(kb, (fo,), jnp.float32, -bound, bound))
    return tuple(params)


def reference_forward(x, params, compute_dtype=jnp.bfloat16):
    """Pure-JAX reference using the same bf16-inputs / f32-accumulate recipe."""
    w1, b1, w2, b2, w3, b3 = params
    c = lambda a: a.astype(compute_dtype).astype(jnp.float32)
    h = jnp.maximum(jnp.dot(c(x), c(w1.T)) + b1, 0.0)
    h = jnp.maximum(jnp.dot(c(h), c(w2.T)) + b2, 0.0)
    return jnp.dot(c(h), c(w3.T)) + b3


if __name__ == "__main__":
    key = jax.random.PRNGKey(0)
    in_features = 784      # fashion-MNIST 28*28 flattened
    out_features = 10
    batch = 8

    kx, kp = jax.random.split(key)
    x = jax.random.normal(kx, (batch, in_features), jnp.float32)
    params = init_params(kp, in_features, out_features)

    # One-time layout prep (transpose / pad / bf16 cast) — NOT per forward.
    prepared = prepare_params(params, compute_dtype=jnp.bfloat16)

    # Single-tile path (whole batch in one grid step).
    out = net_linear_forward(x, prepared)
    out = jax.block_until_ready(out)
    ref = reference_forward(x, params, compute_dtype=jnp.bfloat16)
    assert out.shape == (batch, out_features)
    assert jnp.allclose(out, ref, atol=5e-3, rtol=5e-3), float(
        jnp.max(jnp.abs(out - ref)))

    # Multi-step grid path (explicit small tile) — exercises the batch grid.
    x2 = jax.random.normal(kx, (24, in_features), jnp.float32)
    out2 = jax.block_until_ready(
        net_linear_forward(x2, prepared, batch_tile=8))
    ref2 = reference_forward(x2, params, compute_dtype=jnp.bfloat16)
    assert out2.shape == (24, out_features)
    assert jnp.allclose(out2, ref2, atol=5e-3, rtol=5e-3), float(
        jnp.max(jnp.abs(out2 - ref2)))

    print("KERNEL_OK")
</pallas_src>

<mosaic_0001>
module attributes {stable_mosaic.version = 11 : i64} {
  func.func @mlp_kernel(%arg0: i32, %arg1: memref<8x784xf32, #tpu.memory_space<vmem>>, %arg2: memref<784x1024xbf16, #tpu.memory_space<vmem>>, %arg3: memref<1x1024xf32, #tpu.memory_space<vmem>>, %arg4: memref<1024x512xbf16, #tpu.memory_space<vmem>>, %arg5: memref<1x512xf32, #tpu.memory_space<vmem>>, %arg6: memref<512x128xbf16, #tpu.memory_space<vmem>>, %arg7: memref<1x128xf32, #tpu.memory_space<vmem>>, %arg8: memref<8x128xf32, #tpu.memory_space<vmem>>) attributes {dimension_semantics = [#tpu.dimension_semantics<arbitrary>], iteration_bounds = array<i64: 1>, scalar_prefetch = 0 : i64, scratch_operands = 0 : i64, tpu.core_type = #tpu.core_type<tc>, window_params = [{transform_indices = @transform_0, window_bounds = array<i64: 8, 784>}, {pipeline_mode = #tpu.pipeline_mode<synchronous>, transform_indices = @transform_1, window_bounds = array<i64: 784, 1024>}, {pipeline_mode = #tpu.pipeline_mode<synchronous>, transform_indices = @transform_2, window_bounds = array<i64: 1, 1024>}, {pipeline_mode = #tpu.pipeline_mode<synchronous>, transform_indices = @transform_3, window_bounds = array<i64: 1024, 512>}, {pipeline_mode = #tpu.pipeline_mode<synchronous>, transform_indices = @transform_4, window_bounds = array<i64: 1, 512>}, {pipeline_mode = #tpu.pipeline_mode<synchronous>, transform_indices = @transform_5, window_bounds = array<i64: 512, 128>}, {pipeline_mode = #tpu.pipeline_mode<synchronous>, transform_indices = @transform_6, window_bounds = array<i64: 1, 128>}, {transform_indices = @transform_7, window_bounds = array<i64: 8, 128>}]} {
    %c0 = arith.constant 0 : index
    %c0_0 = arith.constant 0 : index
    %0 = vector.load %arg1[%c0, %c0_0] : memref<8x784xf32, #tpu.memory_space<vmem>>, vector<8x784xf32>
    %1 = arith.truncf %0 : vector<8x784xf32> to vector<8x784xbf16>
    %c0_1 = arith.constant 0 : index
    %c0_2 = arith.constant 0 : index
    %2 = vector.load %arg2[%c0_1, %c0_2] : memref<784x1024xbf16, #tpu.memory_space<vmem>>, vector<784x1024xbf16>
    %cst = arith.constant dense<0.000000e+00> : vector<8x1024xf32>
    %3 = tpu.matmul %1, %2, %cst {dimension_numbers = #tpu.dot_dimension_numbers<[1], [0], [0], [1], [0, 0, 1, 1], [], []>} : vector<8x784xbf16>, vector<784x1024xbf16>, vector<8x1024xf32> -> vector<8x1024xf32>
    %c0_3 = arith.constant 0 : index
    %c0_4 = arith.constant 0 : index
    %4 = vector.load %arg3[%c0_3, %c0_4] : memref<1x1024xf32, #tpu.memory_space<vmem>>, vector<1x1024xf32>
    %5 = vector.broadcast %4 : vector<1x1024xf32> to vector<8x1024xf32>
    %6 = arith.addf %3, %5 : vector<8x1024xf32>
    %cst_5 = arith.constant 0.000000e+00 : f32
    %7 = vector.broadcast %cst_5 : f32 to vector<8x1024xf32>
    %8 = arith.maximumf %6, %7 : vector<8x1024xf32>
    %9 = arith.truncf %8 : vector<8x1024xf32> to vector<8x1024xbf16>
    %c0_6 = arith.constant 0 : index
    %c0_7 = arith.constant 0 : index
    %10 = vector.load %arg4[%c0_6, %c0_7] : memref<1024x512xbf16, #tpu.memory_space<vmem>>, vector<1024x512xbf16>
    %cst_8 = arith.constant dense<0.000000e+00> : vector<8x512xf32>
    %11 = tpu.matmul %9, %10, %cst_8 {dimension_numbers = #tpu.dot_dimension_numbers<[1], [0], [0], [1], [0, 0, 1, 1], [], []>} : vector<8x1024xbf16>, vector<1024x512xbf16>, vector<8x512xf32> -> vector<8x512xf32>
    %c0_9 = arith.constant 0 : index
    %c0_10 = arith.constant 0 : index
    %12 = vector.load %arg5[%c0_9, %c0_10] : memref<1x512xf32, #tpu.memory_space<vmem>>, vector<1x512xf32>
    %13 = vector.broadcast %12 : vector<1x512xf32> to vector<8x512xf32>
    %14 = arith.addf %11, %13 : vector<8x512xf32>
    %cst_11 = arith.constant 0.000000e+00 : f32
    %15 = vector.broadcast %cst_11 : f32 to vector<8x512xf32>
    %16 = arith.maximumf %14, %15 : vector<8x512xf32>
    %17 = arith.truncf %16 : vector<8x512xf32> to vector<8x512xbf16>
    %c0_12 = arith.constant 0 : index
    %c0_13 = arith.constant 0 : index
    %18 = vector.load %arg6[%c0_12, %c0_13] : memref<512x128xbf16, #tpu.memory_space<vmem>>, vector<512x128xbf16>
    %cst_14 = arith.constant dense<0.000000e+00> : vector<8x128xf32>
    %19 = tpu.matmul %17, %18, %cst_14 {dimension_numbers = #tpu.dot_dimension_numbers<[1], [0], [0], [1], [0, 0, 1, 1], [], []>} : vector<8x512xbf16>, vector<512x128xbf16>, vector<8x128xf32> -> vector<8x128xf32>
    %c0_15 = arith.constant 0 : index
    %c0_16 = arith.constant 0 : index
    %20 = vector.load %arg7[%c0_15, %c0_16] : memref<1x128xf32, #tpu.memory_space<vmem>>, vector<1x128xf32>
    %21 = vector.broadcast %20 : vector<1x128xf32> to vector<8x128xf32>
    %22 = arith.addf %19, %21 : vector<8x128xf32>
    %c0_17 = arith.constant 0 : index
    %c0_18 = arith.constant 0 : index
    %23 = vector.load %arg8[%c0_17, %c0_18] : memref<8x128xf32, #tpu.memory_space<vmem>>, vector<8x128xf32>
    tpu.vector_store %arg8[%c0_17, %c0_18], %22 {strides = array<i32>} : memref<8x128xf32, #tpu.memory_space<vmem>>, vector<8x128xf32>,
    return
  }
  func.func @transform_0(%arg0: i32) -> (i32, i32) {
    %c0_i32 = arith.constant 0 : i32
    %c0_i32_0 = arith.constant 0 : i32
    return %arg0, %c0_i32 : i32, i32
  }
  func.func @transform_1(%arg0: i32) -> (i32, i32) {
    %c0_i32 = arith.constant 0 : i32
    %c0_i32_0 = arith.constant 0 : i32
    %c0_i32_1 = arith.constant 0 : i32
    return %c0_i32, %c0_i32_0 : i32, i32
  }
  func.func @transform_2(%arg0: i32) -> (i32, i32) {
    %c0_i32 = arith.constant 0 : i32
    %c0_i32_0 = arith.constant 0 : i32
    %c0_i32_1 = arith.constant 0 : i32
    return %c0_i32, %c0_i32_0 : i32, i32
  }
  func.func @transform_3(%arg0: i32) -> (i32, i32) {
    %c0_i32 = arith.constant 0 : i32
    %c0_i32_0 = arith.constant 0 : i32
    %c0_i32_1 = arith.constant 0 : i32
    return %c0_i32, %c0_i32_0 : i32, i32
  }
  func.func @transform_4(%arg0: i32) -> (i32, i32) {
    %c0_i32 = arith.constant 0 : i32
    %c0_i32_0 = arith.constant 0 : i32
    %c0_i32_1 = arith.constant 0 : i32
    return %c0_i32, %c0_i32_0 : i32, i32
  }
  func.func @transform_5(%arg0: i32) -> (i32, i32) {
    %c0_i32 = arith.constant 0 : i32
    %c0_i32_0 = arith.constant 0 : i32
    %c0_i32_1 = arith.constant 0 : i32
    return %c0_i32, %c0_i32_0 : i32, i32
  }
  func.func @transform_6(%arg0: i32) -> (i32, i32) {
    %c0_i32 = arith.constant 0 : i32
    %c0_i32_0 = arith.constant 0 : i32
    %c0_i32_1 = arith.constant 0 : i32
    return %c0_i32, %c0_i32_0 : i32, i32
  }
  func.func @transform_7(%arg0: i32) -> (i32, i32) {
    %c0_i32 = arith.constant 0 : i32
    %c0_i32_0 = arith.constant 0 : i32
    return %arg0, %c0_i32 : i32, i32
  }
}

</mosaic_0001>

<llo_original>
// kernel: tpu_custom_call.1
$region0: #{tpu_custom_call.1}
  #allocation0 [shape = 'u32[]', space=smem, size = 0x4, offset = 0x4, fixed_abs, tag = 'smem constant byte address 0x4 - core index']
  #allocation1 [shape = 'u32[72,128]{1,0:T(1,128)}', space=vmem, size = 0x9000, scoped, tag = 'internal scratch']
  %s0 = inlined_call_operand.hbm [shape: f32[8,784], index: 0, kind: input, shape index: {}]
  %s1 = inlined_call_operand.hbm [shape: bf16[784,1024], index: 1, kind: input, shape index: {}]
  %s2 = inlined_call_operand.hbm [shape: f32[1,1024], index: 2, kind: input, shape index: {}]
  %s3 = inlined_call_operand.hbm [shape: bf16[1024,512], index: 3, kind: input, shape index: {}]
  %s4 = inlined_call_operand.hbm [shape: f32[1,512], index: 4, kind: input, shape index: {}]
  %s5 = inlined_call_operand.hbm [shape: bf16[512,128], index: 5, kind: input, shape index: {}]
  %s6 = inlined_call_operand.hbm [shape: f32[1,128], index: 6, kind: input, shape index: {}]
  %s7 = inlined_call_operand.hbm [shape: f32[8,128], index: 7, kind: output, shape index: {}]
  %s8 = sld [smem:[#allocation0]]
  $region66: #{tpu_custom_call.1} parent=0
    _
  %s10 = ssub.s32 1, %s8
  %s11 = scalar_select 0, %s10, %s8
  $region1: #{tpu_custom_call.1} parent=0
    #allocation2 [shape = 'u8[28672]{0}', space=vmem, size = 0x7000, scoped, tag = 'input window, operand 0, single buffered']
    #allocation3 [shape = 's32[1]{0}', space=sflag, size = 0x4, scoped, tag = 'scoped memory for tpu_custom_call.1']
    #allocation4 [shape = 's32[1]{0}', space=sflag, size = 0x4, scoped, tag = 'scoped memory for tpu_custom_call.1']
    #allocation5 [shape = 'u8[1605632]{0}', space=vmem, size = 0x188000, scoped, tag = 'input window, operand 1, single buffered']
    #allocation6 [shape = 's32[1]{0}', space=sflag, size = 0x4, scoped, tag = 'scoped memory for tpu_custom_call.1']
    #allocation7 [shape = 'u8[4096]{0}', space=vmem, size = 0x1000, scoped, tag = 'input window, operand 2, single buffered']
    #allocation8 [shape = 'u8[1048576]{0}', space=vmem, size = 0x100000, scoped, tag = 'input window, operand 3, single buffered']
    #allocation9 [shape = 's32[1]{0}', space=sflag, size = 0x4, scoped, tag = 'scoped memory for tpu_custom_call.1']
    #allocation10 [shape = 'u8[2048]{0}', space=vmem, size = 0x800, scoped, tag = 'input window, operand 4, single buffered']
    #allocation11 [shape = 'u8[131072]{0}', space=vmem, size = 0x20000, scoped, tag = 'input window, operand 5, single buffered']
    #allocation12 [shape = 's32[1]{0}', space=sflag, size = 0x4, scoped, tag = 'scoped memory for tpu_custom_call.1']
    #allocation13 [shape = 'u8[512]{0}', space=vmem, size = 0x400, scoped, tag = 'input window, operand 6, single buffered']
    #allocation14 [shape = 'u8[4096]{0}', space=vmem, size = 0x1000, scoped, tag = 'output window, operand 0, single buffered']
    %12 = vsyncpa [#allocation3], 0
    %13 = vsyncpa [#allocation6], 0
    %14 = vsyncpa [#allocation9], 0
    %15 = vsyncpa [#allocation12], 0
    %16 = vsyncpa [#allocation4], 0
    // Predicated region
    $region2: #{tpu_custom_call.1} parent=1 // pred_check
      _
    $region3: #{tpu_custom_call.1} parent=1 // pred_check_branch
      %18 = sbr.rel (0) target = $region5
    $region4: #{tpu_custom_call.1} parent=1 // pred_region
      %20 = vsyncadd [#allocation3], 0
      %s22 = sshll.u32 %s0, 4
      %s23 = int_to_ptr.hbm [resolvable:$true] %s22
      %s24 = sshll.u32 [#allocation2], 4
      %s25 = int_to_ptr.vmem [resolvable:$true] %s24
      %27 = dma.hbm_to_vmem [thread:$0]  %s23, 896, %s25, [#allocation3]
    $region5: #{tpu_custom_call.1} parent=1 // pred_fallthru
      _
    // Predicated region
    $region6: #{tpu_custom_call.1} parent=1 // pred_check
      _
    $region7: #{tpu_custom_call.1} parent=1 // pred_check_branch
      %29 = sbr.rel (0) target = $region9
    $region8: #{tpu_custom_call.1} parent=1 // pred_region
      %31 = vsyncadd [#allocation6], 0
      %s32 = sshll.u32 %s1, 4
      %s33 = int_to_ptr.hbm [resolvable:$true] %s32
      %s34 = sshll.u32 [#allocation5], 4
      %s35 = int_to_ptr.vmem [resolvable:$true] %s34
      %40 = dma.hbm_to_vmem [thread:$0]  %s33, 50176, %s35, [#allocation6], 512, 512, 32
    $region9: #{tpu_custom_call.1} parent=1 // pred_fallthru
      _
    // Predicated region
    $region10: #{tpu_custom_call.1} parent=1 // pred_check
      _
    $region11: #{tpu_custom_call.1} parent=1 // pred_check_branch
      %42 = sbr.rel (0) target = $region13
    $region12: #{tpu_custom_call.1} parent=1 // pred_region
      %44 = vsyncadd [#allocation6], 0
      %s46 = sshll.u32 %s2, 4
      %s47 = int_to_ptr.hbm [resolvable:$true] %s46
      %s48 = sshll.u32 [#allocation7], 4
      %s49 = int_to_ptr.vmem [resolvable:$true] %s48
      %51 = dma.hbm_to_vmem [thread:$0]  %s47, 128, %s49, [#allocation6]
    $region13: #{tpu_custom_call.1} parent=1 // pred_fallthru
      _
    // Predicated region
    $region14: #{tpu_custom_call.1} parent=1 // pred_check
      _
    $region15: #{tpu_custom_call.1} parent=1 // pred_check_branch
      %53 = sbr.rel (0) target = $region17
    $region16: #{tpu_custom_call.1} parent=1 // pred_region
      %55 = vsyncadd [#allocation9], 0
      %s56 = sshll.u32 %s3, 4
      %s57 = int_to_ptr.hbm [resolvable:$true] %s56
      %s58 = sshll.u32 [#allocation8], 4
      %s59 = int_to_ptr.vmem [resolvable:$true] %s58
      %64 = dma.hbm_to_vmem [thread:$0]  %s57, 32768, %s59, [#allocation9], 256, 256, 16
    $region17: #{tpu_custom_call.1} parent=1 // pred_fallthru
      _
    // Predicated region
    $region18: #{tpu_custom_call.1} parent=1 // pred_check
      _
    $region19: #{tpu_custom_call.1} parent=1 // pred_check_branch
      %66 = sbr.rel (0) target = $region21
    $region20: #{tpu_custom_call.1} parent=1 // pred_region
      %68 = vsyncadd [#allocation9], 0
      %s70 = sshll.u32 %s4, 4
      %s71 = int_to_ptr.hbm [resolvable:$true] %s70
      %s72 = sshll.u32 [#allocation10], 4
      %s73 = int_to_ptr.vmem [resolvable:$true] %s72
      %75 = dma.hbm_to_vmem [thread:$0]  %s71, 64, %s73, [#allocation9]
    $region21: #{tpu_custom_call.1} parent=1 // pred_fallthru
      _
    // Predicated region
    $region22: #{tpu_custom_call.1} parent=1 // pred_check
      _
    $region23: #{tpu_custom_call.1} parent=1 // pred_check_branch
      %77 = sbr.rel (0) target = $region25
    $region24: #{tpu_custom_call.1} parent=1 // pred_region
      %79 = vsyncadd [#allocation12], 0
      %s80 = sshll.u32 %s5, 4
      %s81 = int_to_ptr.hbm [resolvable:$true] %s80
      %s82 = sshll.u32 [#allocation11], 4
      %s83 = int_to_ptr.vmem [resolvable:$true] %s82
      %88 = dma.hbm_to_vmem [thread:$0]  %s81, 4096, %s83, [#allocation12], 64, 64, 4
    $region25: #{tpu_custom_call.1} parent=1 // pred_fallthru
      _
    // Predicated region
    $region26: #{tpu_custom_call.1} parent=1 // pred_check
      _
    $region27: #{tpu_custom_call.1} parent=1 // pred_check_branch
      %90 = sbr.rel (0) target = $region29
    $region28: #{tpu_custom_call.1} parent=1 // pred_region
      %92 = vsyncadd [#allocation12], 0
      %s94 = sshll.u32 %s6, 4
      %s95 = int_to_ptr.hbm [resolvable:$true] %s94
      %s96 = sshll.u32 [#allocation13], 4
      %s97 = int_to_ptr.vmem [resolvable:$true] %s96
      %99 = dma.hbm_to_vmem [thread:$0]  %s95, 16, %s97, [#allocation12]
    $region29: #{tpu_custom_call.1} parent=1 // pred_fallthru
      _
    // Predicated region
    $region30: #{tpu_custom_call.1} parent=1 // pred_check
      _
    $region31: #{tpu_custom_call.1} parent=1 // pred_check_branch
      %101 = sbr.rel (0) target = $region33
    $region32: #{tpu_custom_call.1} parent=1 // pred_region
      %103 = dma.done [#allocation3], 896
    $region33: #{tpu_custom_call.1} parent=1 // pred_fallthru
      _
    // Predicated region
    $region34: #{tpu_custom_call.1} parent=1 // pred_check
      _
    $region35: #{tpu_custom_call.1} parent=1 // pred_check_branch
      %105 = sbr.rel (0) target = $region37
    $region36: #{tpu_custom_call.1} parent=1 // pred_region
      %107 = dma.done [#allocation6], 50176
    $region37: #{tpu_custom_call.1} parent=1 // pred_fallthru
      _
    // Predicated region
    $region38: #{tpu_custom_call.1} parent=1 // pred_check
      _
    $region39: #{tpu_custom_call.1} parent=1 // pred_check_branch
      %109 = sbr.rel (0) target = $region41
    $region40: #{tpu_custom_call.1} parent=1 // pred_region
      %111 = dma.done [#allocation6], 128
    $region41: #{tpu_custom_call.1} parent=1 // pred_fallthru
      _
    // Predicated region
    $region42: #{tpu_custom_call.1} parent=1 // pred_check
      _
    $region43: #{tpu_custom_call.1} parent=1 // pred_check_branch
      %113 = sbr.rel (0) target = $region45
    $region44: #{tpu_custom_call.1} parent=1 // pred_region
      %115 = dma.done [#allocation9], 32768
    $region45: #{tpu_custom_call.1} parent=1 // pred_fallthru
      _
    // Predicated region
    $region46: #{tpu_custom_call.1} parent=1 // pred_check
      _
    $region47: #{tpu_custom_call.1} parent=1 // pred_check_branch
      %117 = sbr.rel (0) target = $region49
    $region48: #{tpu_custom_call.1} parent=1 // pred_region
      %119 = dma.done [#allocation9], 64
    $region49: #{tpu_custom_call.1} parent=1 // pred_fallthru
      _
    // Predicated region
    $region50: #{tpu_custom_call.1} parent=1 // pred_check
      _
    $region51: #{tpu_custom_call.1} parent=1 // pred_check_branch
      %121 = sbr.rel (0) target = $region53
    $region52: #{tpu_custom_call.1} parent=1 // pred_region
      %123 = dma.done [#allocation12], 4096
    $region53: #{tpu_custom_call.1} parent=1 // pred_fallthru
      _
    // Predicated region
    $region54: #{tpu_custom_call.1} parent=1 // pred_check
      _
    $region55: #{tpu_custom_call.1} parent=1 // pred_check_branch
      %125 = sbr.rel (0) target = $region57
    $region56: #{tpu_custom_call.1} parent=1 // pred_region
      %127 = dma.done [#allocation12], 16
    $region57: #{tpu_custom_call.1} parent=1 // pred_fallthru
      _
    %v129 = vld [vmem:[#allocation2] sm:$0xff]
    %v130 = vld [vmem:[#allocation2 + $0x8] sm:$0xff]
    %v131 = vld [vmem:[#allocation2 + $0x10] sm:$0xff]
    %v132 = vld [vmem:[#allocation2 + $0x18] sm:$0xff]
    %v133 = vld [vmem:[#allocation2 + $0x20] sm:$0xff]
    %v134 = vld [vmem:[#allocation2 + $0x28] sm:$0xff]
    %v135 = vld [vmem:[#allocation2 + $0x30] sm:$0xff]
    %v136 = vpack.c.bf16 %v129, %v129
    %v137 = vpack.c.bf16 %v130, %v130
    %v138 = vpack.c.bf16 %v131, %v131
    %v139 = vpack.c.bf16 %v132, %v132
    %v140 = vpack.c.bf16 %v133, %v133
    %v141 = vpack.c.bf16 %v134, %v134
    %v142 = vpack.c.bf16 %v135, %v135
    %v143 = vld [vmem:[#allocation5] sm:$0xff]
    %v144 = vld [vmem:[#allocation5 + $0x8] sm:$0xff]
    %v145 = vld [vmem:[#allocation5 + $0x10] sm:$0xff]
    %v146 = vld [vmem:[#allocation5 + $0x18] sm:$0xff]
    %v147 = vld [vmem:[#allocation5 + $0x20] sm:$0xff]
    %v148 = vld [vmem:[#allocation5 + $0x28] sm:$0xff]
    %v149 = vld [vmem:[#allocation5 + $0x30] sm:$0xff]
    %v150 = vld [vmem:[#allocation5 + $0x38] sm:$0xff]
    %v151 = vld [vmem:[#allocation5 + $0x40] sm:$0xff]
    %v152 = vld [vmem:[#allocation5 + $0x48] sm:$0xff]
    %v153 = vld [vmem:[#allocation5 + $0x50] sm:$0xff]
    %v154 = vld [vmem:[#allocation5 + $0x58] sm:$0xff]
    %v155 = vld [vmem:[#allocation5 + $0x60] sm:$0xff]
    %v156 = vld [vmem:[#allocation5 + $0x68] sm:$0xff]
    %v157 = vld [vmem:[#allocation5 + $0x70] sm:$0xff]
    %v158 = vld [vmem:[#allocation5 + $0x78] sm:$0xff]
    %v159 = vld [vmem:[#allocation5 + $0x80] sm:$0xff]
    %v160 = vld [vmem:[#allocation5 + $0x88] sm:$0xff]
    %v161 = vld [vmem:[#allocation5 + $0x90] sm:$0xff]
    %v162 = vld [vmem:[#allocation5 + $0x98] sm:$0xff]
    %v163 = vld [vmem:[#allocation5 + $0xa0] sm:$0xff]
    %v164 = vld [vmem:[#allocation5 + $0xa8] sm:$0xff]
    %v165 = vld [vmem:[#allocation5 + $0xb0] sm:$0xff]
    %v166 = vld [vmem:[#allocation5 + $0xb8] sm:$0xff]
    %v167 = vld [vmem:[#allocation5 + $0xc0] sm:$0xff]
    %v168 = vld [vmem:[#allocation5 + $0xc8] sm:$0xff]
    %v169 = vld [vmem:[#allocation5 + $0xd0] sm:$0xff]
    %v170 = vld [vmem:[#allocation5 + $0xd8] sm:$0xff]
    %v171 = vld [vmem:[#allocation5 + $0xe0] sm:$0xff]
    %v172 = vld [vmem:[#allocation5 + $0xe8] sm:$0xff]
    %v173 = vld [vmem:[#allocation5 + $0xf0] sm:$0xff]
    %v174 = vld [vmem:[#allocation5 + $0xf8] sm:$0xff]
    %v175 = vld [vmem:[#allocation5 + $0x100] sm:$0xff]
    %v176 = vld [vmem:[#allocation5 + $0x108] sm:$0xff]
    %v177 = vld [vmem:[#allocation5 + $0x110] sm:$0xff]
    %v178 = vld [vmem:[#allocation5 + $0x118] sm:$0xff]
    %v179 = vld [vmem:[#allocation5 + $0x120] sm:$0xff]
    %v180 = vld [vmem:[#allocation5 + $0x128] sm:$0xff]
    %v181 = vld [vmem:[#allocation5 + $0x130] sm:$0xff]
    %v182 = vld [vmem:[#allocation5 + $0x138] sm:$0xff]
    %v183 = vld [vmem:[#allocation5 + $0x140] sm:$0xff]
    %v184 = vld [vmem:[#allocation5 + $0x148] sm:$0xff]
    %v185 = vld [vmem:[#allocation5 + $0x150] sm:$0xff]
    %v186 = vld [vmem:[#allocation5 + $0x158] sm:$0xff]
    %v187 = vld [vmem:[#allocation5 + $0x160] sm:$0xff]
    %v188 = vld [vmem:[#allocation5 + $0x168] sm:$0xff]
    %v189 = vld [vmem:[#allocation5 + $0x170] sm:$0xff]
    %v190 = vld [vmem:[#allocation5 + $0x178] sm:$0xff]
    %v191 = vld [vmem:[#allocation5 + $0x180] sm:$0xff]
    %v192 = vld [vmem:[#allocation5 + $0x188] sm:$0xff]
    %v193 = vld [vmem:[#allocation5 + $0x190] sm:$0xff]
    %v194 = vld [vmem:[#allocation5 + $0x198] sm:$0xff]
    %v195 = vld [vmem:[#allocation5 + $0x1a0] sm:$0xff]
    %v196 = vld [vmem:[#allocation5 + $0x1a8] sm:$0xff]
    %v197 = vld [vmem:[#allocation5 + $0x1b0] sm:$0xff]
    %v198 = vld [vmem:[#allocation5 + $0x1b8] sm:$0xff]
    %v199 = vld [vmem:[#allocation5 + $0x1c0] sm:$0xff]
    %v200 = vld [vmem:[#allocation5 + $0x1c8] sm:$0xff]
    %v201 = vld [vmem:[#allocation5 + $0x1d0] sm:$0xff]
    %v202 = vld [vmem:[#allocation5 + $0x1d8] sm:$0xff]
    %v203 = vld [vmem:[#allocation5 + $0x1e0] sm:$0xff]
    %v204 = vld [vmem:[#allocation5 + $0x1e8] sm:$0xff]
    %v205 = vld [vmem:[#allocation5 + $0x1f0] sm:$0xff]
    %v206 = vld [vmem:[#allocation5 + $0x1f8] sm:$0xff]
    %v207 = vld [vmem:[#allocation5 + $0x200] sm:$0xff]
    %v208 = vld [vmem:[#allocation5 + $0x208] sm:$0xff]
    %v209 = vld [vmem:[#allocation5 + $0x210] sm:$0xff]
    %v210 = vld [vmem:[#allocation5 + $0x218] sm:$0xff]
    %v211 = vld [vmem:[#allocation5 + $0x220] sm:$0xff]
    %v212 = vld [vmem:[#allocation5 + $0x228] sm:$0xff]
    %v213 = vld [vmem:[#allocation5 + $0x230] sm:$0xff]
    %v214 = vld [vmem:[#allocation5 + $0x238] sm:$0xff]
    %v215 = vld [vmem:[#allocation5 + $0x240] sm:$0xff]
    %v216 = vld [vmem:[#allocation5 + $0x248] sm:$0xff]
    %v217 = vld [vmem:[#allocation5 + $0x250] sm:$0xff]
    %v218 = vld [vmem:[#allocation5 + $0x258] sm:$0xff]
    %v219 = vld [vmem:[#allocation5 + $0x260] sm:$0xff]
    %v220 = vld [vmem:[#allocation5 + $0x268] sm:$0xff]
    %v221 = vld [vmem:[#allocation5 + $0x270] sm:$0xff]
    %v222 = vld [vmem:[#allocation5 + $0x278] sm:$0xff]
    %v223 = vld [vmem:[#allocation5 + $0x280] sm:$0xff]
    %v224 = vld [vmem:[#allocation5 + $0x288] sm:$0xff]
    %v225 = vld [vmem:[#allocation5 + $0x290] sm:$0xff]
    %v226 = vld [vmem:[#allocation5 + $0x298] sm:$0xff]
    %v227 = vld [vmem:[#allocation5 + $0x2a0] sm:$0xff]
    %v228 = vld [vmem:[#allocation5 + $0x2a8] sm:$0xff]
    %v229 = vld [vmem:[#allocation5 + $0x2b0] sm:$0xff]
    %v230 = vld [vmem:[#allocation5 + $0x2b8] sm:$0xff]
    %v231 = vld [vmem:[#allocation5 + $0x2c0] sm:$0xff]
    %v232 = vld [vmem:[#allocation5 + $0x2c8] sm:$0xff]
    %v233 = vld [vmem:[#allocation5 + $0x2d0] sm:$0xff]
    %v234 = vld [vmem:[#allocation5 + $0x2d8] sm:$0xff]
    %v235 = vld [vmem:[#allocation5 + $0x2e0] sm:$0xff]
    %v236 = vld [vmem:[#allocation5 + $0x2e8] sm:$0xff]
    %v237 = vld [vmem:[#allocation5 + $0x2f0] sm:$0xff]
    %v238 = vld [vmem:[#allocation5 + $0x2f8] sm:$0xff]
    %v239 = vld [vmem:[#allocation5 + $0x300] sm:$0xff]
    %v240 = vld [vmem:[#allocation5 + $0x308] sm:$0xff]
    %v241 = vld [vmem:[#allocation5 + $0x310] sm:$0xff]
    %v242 = vld [vmem:[#allocation5 + $0x318] sm:$0xff]
    %v243 = vld [vmem:[#allocation5 + $0x320] sm:$0xff]
    %v244 = vld [vmem:[#allocation5 + $0x328] sm:$0xff]
    %v245 = vld [vmem:[#allocation5 + $0x330] sm:$0xff]
    %v246 = vld [vmem:[#allocation5 + $0x338] sm:$0xff]
    %v247 = vld [vmem:[#allocation5 + $0x340] sm:$0xff]
    %v248 = vld [vmem:[#allocation5 + $0x348] sm:$0xff]
    %v249 = vld [vmem:[#allocation5 + $0x350] sm:$0xff]
    %v250 = vld [vmem:[#allocation5 + $0x358] sm:$0xff]
    %v251 = vld [vmem:[#allocation5 + $0x360] sm:$0xff]
    %v252 = vld [vmem:[#allocation5 + $0x368] sm:$0xff]
    %v253 = vld [vmem:[#allocation5 + $0x370] sm:$0xff]
    %v254 = vld [vmem:[#allocation5 + $0x378] sm:$0xff]
    %v255 = vld [vmem:[#allocation5 + $0x380] sm:$0xff]
    %v256 = vld [vmem:[#allocation5 + $0x388] sm:$0xff]
    %v257 = vld [vmem:[#allocation5 + $0x390] sm:$0xff]
    %v258 = vld [vmem:[#allocation5 + $0x398] sm:$0xff]
    %v259 = vld [vmem:[#allocation5 + $0x3a0] sm:$0xff]
    %v260 = vld [vmem:[#allocation5 + $0x3a8] sm:$0xff]
    %v261 = vld [vmem:[#allocation5 + $0x3b0] sm:$0xff]
    %v262 = vld [vmem:[#allocation5 + $0x3b8] sm:$0xff]
    %v263 = vld [vmem:[#allocation5 + $0x3c0] sm:$0xff]
    %v264 = vld [vmem:[#allocation5 + $0x3c8] sm:$0xff]
    %v265 = vld [vmem:[#allocation5 + $0x3d0] sm:$0xff]
    %v266 = vld [vmem:[#allocation5 + $0x3d8] sm:$0xff]
    %v267 = vld [vmem:[#allocation5 + $0x3e0] sm:$0xff]
    %v268 = vld [vmem:[#allocation5 + $0x3e8] sm:$0xff]
    %v269 = vld [vmem:[#allocation5 + $0x3f0] sm:$0xff]
    %v270 = vld [vmem:[#allocation5 + $0x3f8] sm:$0xff]
    %v271 = vld [vmem:[#allocation5 + $0x400] sm:$0xff]
    %v272 = vld [vmem:[#allocation5 + $0x408] sm:$0xff]
    %v273 = vld [vmem:[#allocation5 + $0x410] sm:$0xff]
    %v274 = vld [vmem:[#allocation5 + $0x418] sm:$0xff]
    %v275 = vld [vmem:[#allocation5 + $0x420] sm:$0xff]
    %v276 = vld [vmem:[#allocation5 + $0x428] sm:$0xff]
    %v277 = vld [vmem:[#allocation5 + $0x430] sm:$0xff]
    %v278 = vld [vmem:[#allocation5 + $0x438] sm:$0xff]
    %v279 = vld [vmem:[#allocation5 + $0x440] sm:$0xff]
    %v280 = vld [vmem:[#allocation5 + $0x448] sm:$0xff]
    %v281 = vld [vmem:[#allocation5 + $0x450] sm:$0xff]
    %v282 = vld [vmem:[#allocation5 + $0x458] sm:$0xff]
    %v283 = vld [vmem:[#allocation5 + $0x460] sm:$0xff]
    %v284 = vld [vmem:[#allocation5 + $0x468] sm:$0xff]
    %v285 = vld [vmem:[#allocation5 + $0x470] sm:$0xff]
    %v286 = vld [vmem:[#allocation5 + $0x478] sm:$0xff]
    %v287 = vld [vmem:[#allocation5 + $0x480] sm:$0xff]
    %v288 = vld [vmem:[#allocation5 + $0x488] sm:$0xff]
    %v289 = vld [vmem:[#allocation5 + $0x490] sm:$0xff]
    %v290 = vld [vmem:[#allocation5 + $0x498] sm:$0xff]
    %v291 = vld [vmem:[#allocation5 + $0x4a0] sm:$0xff]
    %v292 = vld [vmem:[#allocation5 + $0x4a8] sm:$0xff]
    %v293 = vld [vmem:[#allocation5 + $0x4b0] sm:$0xff]
    %v294 = vld [vmem:[#allocation5 + $0x4b8] sm:$0xff]
    %v295 = vld [vmem:[#allocation5 + $0x4c0] sm:$0xff]
    %v296 = vld [vmem:[#allocation5 + $0x4c8] sm:$0xff]
    %v297 = vld [vmem:[#allocation5 + $0x4d0] sm:$0xff]
    %v298 = vld [vmem:[#allocation5 + $0x4d8] sm:$0xff]
    %v299 = vld [vmem:[#allocation5 + $0x4e0] sm:$0xff]
    %v300 = vld [vmem:[#allocation5 + $0x4e8] sm:$0xff]
    %v301 = vld [vmem:[#allocation5 + $0x4f0] sm:$0xff]
    %v302 = vld [vmem:[#allocation5 + $0x4f8] sm:$0xff]
    %v303 = vld [vmem:[#allocation5 + $0x500] sm:$0xff]
    %v304 = vld [vmem:[#allocation5 + $0x508] sm:$0xff]
    %v305 = vld [vmem:[#allocation5 + $0x510] sm:$0xff]
    %v306 = vld [vmem:[#allocation5 + $0x518] sm:$0xff]
    %v307 = vld [vmem:[#allocation5 + $0x520] sm:$0xff]
    %v308 = vld [vmem:[#allocation5 + $0x528] sm:$0xff]
    %v309 = vld [vmem:[#allocation5 + $0x530] sm:$0xff]
    %v310 = vld [vmem:[#allocation5 + $0x538] sm:$0xff]
    %v311 = vld [vmem:[#allocation5 + $0x540] sm:$0xff]
    %v312 = vld [vmem:[#allocation5 + $0x548] sm:$0xff]
    %v313 = vld [vmem:[#allocation5 + $0x550] sm:$0xff]
    %v314 = vld [vmem:[#allocation5 + $0x558] sm:$0xff]
    %v315 = vld [vmem:[#allocation5 + $0x560] sm:$0xff]
    %v316 = vld [vmem:[#allocation5 + $0x568] sm:$0xff]
    %v317 = vld [vmem:[#allocation5 + $0x570] sm:$0xff]
    %v318 = vld [vmem:[#allocation5 + $0x578] sm:$0xff]
    %v319 = vld [vmem:[#allocation5 + $0x580] sm:$0xff]
    %v320 = vld [vmem:[#allocation5 + $0x588] sm:$0xff]
    %v321 = vld [vmem:[#allocation5 + $0x590] sm:$0xff]
    %v322 = vld [vmem:[#allocation5 + $0x598] sm:$0xff]
    %v323 = vld [vmem:[#allocation5 + $0x5a0] sm:$0xff]
    %v324 = vld [vmem:[#allocation5 + $0x5a8] sm:$0xff]
    %v325 = vld [vmem:[#allocation5 + $0x5b0] sm:$0xff]
    %v326 = vld [vmem:[#allocation5 + $0x5b8] sm:$0xff]
    %v327 = vld [vmem:[#allocation5 + $0x5c0] sm:$0xff]
    %v328 = vld [vmem:[#allocation5 + $0x5c8] sm:$0xff]
    %v329 = vld [vmem:[#allocation5 + $0x5d0] sm:$0xff]
    %v330 = vld [vmem:[#allocation5 + $0x5d8] sm:$0xff]
    %v331 = vld [vmem:[#allocation5 + $0x5e0] sm:$0xff]
    %v332 = vld [vmem:[#allocation5 + $0x5e8] sm:$0xff]
    %v333 = vld [vmem:[#allocation5 + $0x5f0] sm:$0xff]
    %v334 = vld [vmem:[#allocation5 + $0x5f8] sm:$0xff]
    %v335 = vld [vmem:[#allocation5 + $0x600] sm:$0xff]
    %v336 = vld [vmem:[#allocation5 + $0x608] sm:$0xff]
    %v337 = vld [vmem:[#allocation5 + $0x610] sm:$0xff]
    %v338 = vld [vmem:[#allocation5 + $0x618] sm:$0xff]
    %v339 = vld [vmem:[#allocation5 + $0x620] sm:$0xff]
    %v340 = vld [vmem:[#allocation5 + $0x628] sm:$0xff]
    %v341 = vld [vmem:[#allocation5 + $0x630] sm:$0xff]
    %v342 = vld [vmem:[#allocation5 + $0x638] sm:$0xff]
    %v343 = vld [vmem:[#allocation5 + $0x640] sm:$0xff]
    %v344 = vld [vmem:[#allocation5 + $0x648] sm:$0xff]
    %v345 = vld [vmem:[#allocation5 + $0x650] sm:$0xff]
    %v346 = vld [vmem:[#allocation5 + $0x658] sm:$0xff]
    %v347 = vld [vmem:[#allocation5 + $0x660] sm:$0xff]
    %v348 = vld [vmem:[#allocation5 + $0x668] sm:$0xff]
    %v349 = vld [vmem:[#allocation5 + $0x670] sm:$0xff]
    %v350 = vld [vmem:[#allocation5 + $0x678] sm:$0xff]
    %v351 = vld [vmem:[#allocation5 + $0x680] sm:$0xff]
    %v352 = vld [vmem:[#allocation5 + $0x688] sm:$0xff]
    %v353 = vld [vmem:[#allocation5 + $0x690] sm:$0xff]
    %v354 = vld [vmem:[#allocation5 + $0x698] sm:$0xff]
    %v355 = vld [vmem:[#allocation5 + $0x6a0] sm:$0xff]
    %v356 = vld [vmem:[#allocation5 + $0x6a8] sm:$0xff]
    %v357 = vld [vmem:[#allocation5 + $0x6b0] sm:$0xff]
    %v358 = vld [vmem:[#allocation5 + $0x6b8] sm:$0xff]
    %v359 = vld [vmem:[#allocation5 + $0x6c0] sm:$0xff]
    %v360 = vld [vmem:[#allocation5 + $0x6c8] sm:$0xff]
    %v361 = vld [vmem:[#allocation5 + $0x6d0] sm:$0xff]
    %v362 = vld [vmem:[#allocation5 + $0x6d8] sm:$0xff]
    %v363 = vld [vmem:[#allocation5 + $0x6e0] sm:$0xff]
    %v364 = vld [vmem:[#allocation5 + $0x6e8] sm:$0xff]
    %v365 = vld [vmem:[#allocation5 + $0x6f0] sm:$0xff]
    %v366 = vld [vmem:[#allocation5 + $0x6f8] sm:$0xff]
    %v367 = vld [vmem:[#allocation5 + $0x700] sm:$0xff]
    %v368 = vld [vmem:[#allocation5 + $0x708] sm:$0xff]
    %v369 = vld [vmem:[#allocation5 + $0x710] sm:$0xff]
    %v370 = vld [vmem:[#allocation5 + $0x718] sm:$0xff]
    %v371 = vld [vmem:[#allocation5 + $0x720] sm:$0xff]
    %v372 = vld [vmem:[#allocation5 + $0x728] sm:$0xff]
    %v373 = vld [vmem:[#allocation5 + $0x730] sm:$0xff]
    %v374 = vld [vmem:[#allocation5 + $0x738] sm:$0xff]
    %v375 = vld [vmem:[#allocation5 + $0x740] sm:$0xff]
    %v376 = vld [vmem:[#allocation5 + $0x748] sm:$0xff]
    %v377 = vld [vmem:[#allocation5 + $0x750] sm:$0xff]
    %v378 = vld [vmem:[#allocation5 + $0x758] sm:$0xff]
    %v379 = vld [vmem:[#allocation5 + $0x760] sm:$0xff]
    %v380 = vld [vmem:[#allocation5 + $0x768] sm:$0xff]
    %v381 = vld [vmem:[#allocation5 + $0x770] sm:$0xff]
    %v382 = vld [vmem:[#allocation5 + $0x778] sm:$0xff]
    %v383 = vld [vmem:[#allocation5 + $0x780] sm:$0xff]
    %v384 = vld [vmem:[#allocation5 + $0x788] sm:$0xff]
    %v385 = vld [vmem:[#allocation5 + $0x790] sm:$0xff]
    %v386 = vld [vmem:[#allocation5 + $0x798] sm:$0xff]
    %v387 = vld [vmem:[#allocation5 + $0x7a0] sm:$0xff]
    %v388 = vld [vmem:[#allocation5 + $0x7a8] sm:$0xff]
    %v389 = vld [vmem:[#allocation5 + $0x7b0] sm:$0xff]
    %v390 = vld [vmem:[#allocation5 + $0x7b8] sm:$0xff]
    %v391 = vld [vmem:[#allocation5 + $0x7c0] sm:$0xff]
    %v392 = vld [vmem:[#allocation5 + $0x7c8] sm:$0xff]
    %v393 = vld [vmem:[#allocation5 + $0x7d0] sm:$0xff]
    %v394 = vld [vmem:[#allocation5 + $0x7d8] sm:$0xff]
    %v395 = vld [vmem:[#allocation5 + $0x7e0] sm:$0xff]
    %v396 = vld [vmem:[#allocation5 + $0x7e8] sm:$0xff]
    %v397 = vld [vmem:[#allocation5 + $0x7f0] sm:$0xff]
    %v398 = vld [vmem:[#allocation5 + $0x7f8] sm:$0xff]
    %v399 = vld [vmem:[#allocation5 + $0x800] sm:$0xff]
    %v400 = vld [vmem:[#allocation5 + $0x808] sm:$0xff]
    %v401 = vld [vmem:[#allocation5 + $0x810] sm:$0xff]
    %v402 = vld [vmem:[#allocation5 + $0x818] sm:$0xff]
    %v403 = vld [vmem:[#allocation5 + $0x820] sm:$0xff]
    %v404 = vld [vmem:[#allocation5 + $0x828] sm:$0xff]
    %v405 = vld [vmem:[#allocation5 + $0x830] sm:$0xff]
    %v406 = vld [vmem:[#allocation5 + $0x838] sm:$0xff]
    %v407 = vld [vmem:[#allocation5 + $0x840] sm:$0xff]
    %v408 = vld [vmem:[#allocation5 + $0x848] sm:$0xff]
    %v409 = vld [vmem:[#allocation5 + $0x850] sm:$0xff]
    %v410 = vld [vmem:[#allocation5 + $0x858] sm:$0xff]
    %v411 = vld [vmem:[#allocation5 + $0x860] sm:$0xff]
    %v412 = vld [vmem:[#allocation5 + $0x868] sm:$0xff]
    %v413 = vld [vmem:[#allocation5 + $0x870] sm:$0xff]
    %v414 = vld [vmem:[#allocation5 + $0x878] sm:$0xff]
    %v415 = vld [vmem:[#allocation5 + $0x880] sm:$0xff]
    %v416 = vld [vmem:[#allocation5 + $0x888] sm:$0xff]
    %v417 = vld [vmem:[#allocation5 + $0x890] sm:$0xff]
    %v418 = vld [vmem:[#allocation5 + $0x898] sm:$0xff]
    %v419 = vld [vmem:[#allocation5 + $0x8a0] sm:$0xff]
    %v420 = vld [vmem:[#allocation5 + $0x8a8] sm:$0xff]
    %v421 = vld [vmem:[#allocation5 + $0x8b0] sm:$0xff]
    %v422 = vld [vmem:[#allocation5 + $0x8b8] sm:$0xff]
    %v423 = vld [vmem:[#allocation5 + $0x8c0] sm:$0xff]
    %v424 = vld [vmem:[#allocation5 + $0x8c8] sm:$0xff]
    %v425 = vld [vmem:[#allocation5 + $0x8d0] sm:$0xff]
    %v426 = vld [vmem:[#allocation5 + $0x8d8] sm:$0xff]
    %v427 = vld [vmem:[#allocation5 + $0x8e0] sm:$0xff]
    %v428 = vld [vmem:[#allocation5 + $0x8e8] sm:$0xff]
    %v429 = vld [vmem:[#allocation5 + $0x8f0] sm:$0xff]
    %v430 = vld [vmem:[#allocation5 + $0x8f8] sm:$0xff]
    %v431 = vld [vmem:[#allocation5 + $0x900] sm:$0xff]
    %v432 = vld [vmem:[#allocation5 + $0x908] sm:$0xff]
    %v433 = vld [vmem:[#allocation5 + $0x910] sm:$0xff]
    %v434 = vld [vmem:[#allocation5 + $0x918] sm:$0xff]
    %v435 = vld [vmem:[#allocation5 + $0x920] sm:$0xff]
    %v436 = vld [vmem:[#allocation5 + $0x928] sm:$0xff]
    %v437 = vld [vmem:[#allocation5 + $0x930] sm:$0xff]
    %v438 = vld [vmem:[#allocation5 + $0x938] sm:$0xff]
    %v439 = vld [vmem:[#allocation5 + $0x940] sm:$0xff]
    %v440 = vld [vmem:[#allocation5 + $0x948] sm:$0xff]
    %v441 = vld [vmem:[#allocation5 + $0x950] sm:$0xff]
    %v442 = vld [vmem:[#allocation5 + $0x958] sm:$0xff]
    %v443 = vld [vmem:[#allocation5 + $0x960] sm:$0xff]
    %v444 = vld [vmem:[#allocation5 + $0x968] sm:$0xff]
    %v445 = vld [vmem:[#allocation5 + $0x970] sm:$0xff]
    %v446 = vld [vmem:[#allocation5 + $0x978] sm:$0xff]
    %v447 = vld [vmem:[#allocation5 + $0x980] sm:$0xff]
    %v448 = vld [vmem:[#allocation5 + $0x988] sm:$0xff]
    %v449 = vld [vmem:[#allocation5 + $0x990] sm:$0xff]
    %v450 = vld [vmem:[#allocation5 + $0x998] sm:$0xff]
    %v451 = vld [vmem:[#allocation5 + $0x9a0] sm:$0xff]
    %v452 = vld [vmem:[#allocation5 + $0x9a8] sm:$0xff]
    %v453 = vld [vmem:[#allocation5 + $0x9b0] sm:$0xff]
    %v454 = vld [vmem:[#allocation5 + $0x9b8] sm:$0xff]
    %v455 = vld [vmem:[#allocation5 + $0x9c0] sm:$0xff]
    %v456 = vld [vmem:[#allocation5 + $0x9c8] sm:$0xff]
    %v457 = vld [vmem:[#allocation5 + $0x9d0] sm:$0xff]
    %v458 = vld [vmem:[#allocation5 + $0x9d8] sm:$0xff]
    %v459 = vld [vmem:[#allocation5 + $0x9e0] sm:$0xff]
    %v460 = vld [vmem:[#allocation5 + $0x9e8] sm:$0xff]
    %v461 = vld [vmem:[#allocation5 + $0x9f0] sm:$0xff]
    %v462 = vld [vmem:[#allocation5 + $0x9f8] sm:$0xff]
    %v463 = vld [vmem:[#allocation5 + $0xa00] sm:$0xff]
    %v464 = vld [vmem:[#allocation5 + $0xa08] sm:$0xff]
    %v465 = vld [vmem:[#allocation5 + $0xa10] sm:$0xff]
    %v466 = vld [vmem:[#allocation5 + $0xa18] sm:$0xff]
    %v467 = vld [vmem:[#allocation5 + $0xa20] sm:$0xff]
    %v468 = vld [vmem:[#allocation5 + $0xa28] sm:$0xff]
    %v469 = vld [vmem:[#allocation5 + $0xa30] sm:$0xff]
    %v470 = vld [vmem:[#allocation5 + $0xa38] sm:$0xff]
    %v471 = vld [vmem:[#allocation5 + $0xa40] sm:$0xff]
    %v472 = vld [vmem:[#allocation5 + $0xa48] sm:$0xff]
    %v473 = vld [vmem:[#allocation5 + $0xa50] sm:$0xff]
    %v474 = vld [vmem:[#allocation5 + $0xa58] sm:$0xff]
    %v475 = vld [vmem:[#allocation5 + $0xa60] sm:$0xff]
    %v476 = vld [vmem:[#allocation5 + $0xa68] sm:$0xff]
    %v477 = vld [vmem:[#allocation5 + $0xa70] sm:$0xff]
    %v478 = vld [vmem:[#allocation5 + $0xa78] sm:$0xff]
    %v479 = vld [vmem:[#allocation5 + $0xa80] sm:$0xff]
    %v480 = vld [vmem:[#allocation5 + $0xa88] sm:$0xff]
    %v481 = vld [vmem:[#allocation5 + $0xa90] sm:$0xff]
    %v482 = vld [vmem:[#allocation5 + $0xa98] sm:$0xff]
    %v483 = vld [vmem:[#allocation5 + $0xaa0] sm:$0xff]
    %v484 = vld [vmem:[#allocation5 + $0xaa8] sm:$0xff]
    %v485 = vld [vmem:[#allocation5 + $0xab0] sm:$0xff]
    %v486 = vld [vmem:[#allocation5 + $0xab8] sm:$0xff]
    %v487 = vld [vmem:[#allocation5 + $0xac0] sm:$0xff]
    %v488 = vld [vmem:[#allocation5 + $0xac8] sm:$0xff]
    %v489 = vld [vmem:[#allocation5 + $0xad0] sm:$0xff]
    %v490 = vld [vmem:[#allocation5 + $0xad8] sm:$0xff]
    %v491 = vld [vmem:[#allocation5 + $0xae0] sm:$0xff]
    %v492 = vld [vmem:[#allocation5 + $0xae8] sm:$0xff]
    %v493 = vld [vmem:[#allocation5 + $0xaf0] sm:$0xff]
    %v494 = vld [vmem:[#allocation5 + $0xaf8] sm:$0xff]
    %v495 = vld [vmem:[#allocation5 + $0xb00] sm:$0xff]
    %v496 = vld [vmem:[#allocation5 + $0xb08] sm:$0xff]
    %v497 = vld [vmem:[#allocation5 + $0xb10] sm:$0xff]
    %v498 = vld [vmem:[#allocation5 + $0xb18] sm:$0xff]
    %v499 = vld [vmem:[#allocation5 + $0xb20] sm:$0xff]
    %v500 = vld [vmem:[#allocation5 + $0xb28] sm:$0xff]
    %v501 = vld [vmem:[#allocation5 + $0xb30] sm:$0xff]
    %v502 = vld [vmem:[#allocation5 + $0xb38] sm:$0xff]
    %v503 = vld [vmem:[#allocation5 + $0xb40] sm:$0xff]
    %v504 = vld [vmem:[#allocation5 + $0xb48] sm:$0xff]
    %v505 = vld [vmem:[#allocation5 + $0xb50] sm:$0xff]
    %v506 = vld [vmem:[#allocation5 + $0xb58] sm:$0xff]
    %v507 = vld [vmem:[#allocation5 + $0xb60] sm:$0xff]
    %v508 = vld [vmem:[#allocation5 + $0xb68] sm:$0xff]
    %v509 = vld [vmem:[#allocation5 + $0xb70] sm:$0xff]
    %v510 = vld [vmem:[#allocation5 + $0xb78] sm:$0xff]
    %v511 = vld [vmem:[#allocation5 + $0xb80] sm:$0xff]
    %v512 = vld [vmem:[#allocation5 + $0xb88] sm:$0xff]
    %v513 = vld [vmem:[#allocation5 + $0xb90] sm:$0xff]
    %v514 = vld [vmem:[#allocation5 + $0xb98] sm:$0xff]
    %v515 = vld [vmem:[#allocation5 + $0xba0] sm:$0xff]
    %v516 = vld [vmem:[#allocation5 + $0xba8] sm:$0xff]
    %v517 = vld [vmem:[#allocation5 + $0xbb0] sm:$0xff]
    %v518 = vld [vmem:[#allocation5 + $0xbb8] sm:$0xff]
    %v519 = vld [vmem:[#allocation5 + $0xbc0] sm:$0xff]
    %v520 = vld [vmem:[#allocation5 + $0xbc8] sm:$0xff]
    %v521 = vld [vmem:[#allocation5 + $0xbd0] sm:$0xff]
    %v522 = vld [vmem:[#allocation5 + $0xbd8] sm:$0xff]
    %v523 = vld [vmem:[#allocation5 + $0xbe0] sm:$0xff]
    %v524 = vld [vmem:[#allocation5 + $0xbe8] sm:$0xff]
    %v525 = vld [vmem:[#allocation5 + $0xbf0] sm:$0xff]
    %v526 = vld [vmem:[#allocation5 + $0xbf8] sm:$0xff]
    %v527 = vld [vmem:[#allocation5 + $0xc00] sm:$0xff]
    %v528 = vld [vmem:[#allocation5 + $0xc08] sm:$0xff]
    %v529 = vld [vmem:[#allocation5 + $0xc10] sm:$0xff]
    %v530 = vld [vmem:[#allocation5 + $0xc18] sm:$0xff]
    %v531 = vld [vmem:[#allocation5 + $0xc20] sm:$0xff]
    %v532 = vld [vmem:[#allocation5 + $0xc28] sm:$0xff]
    %v533 = vld [vmem:[#allocation5 + $0xc30] sm:$0xff]
    %v534 = vld [vmem:[#allocation5 + $0xc38] sm:$0xff]
    %v535 = vld [vmem:[#allocation7] sm:$0xff]
    %v537 = vperm.slane %v535, 0
    %v538 = vperm.slane %v535, 1
    %v539 = vperm.slane %v535, 2
    %v540 = vperm.slane %v535, 3
    %v541 = vperm.slane %v535, 4
    %v542 = vperm.slane %v535, 5
    %v543 = vperm.slane %v535, 6
    %v544 = vperm.slane %v535, 7
    %v945 = vunpack.c.l.b16 %v143
    %v946 = vunpack.c.h.b16 %v143
    %v947 = vunpack.c.l.b16 %v144
    %v948 = vunpack.c.h.b16 %v144
    %v949 = vunpack.c.l.b16 %v145
    %v950 = vunpack.c.h.b16 %v145
    %v951 = vunpack.c.l.b16 %v146
    %v952 = vunpack.c.h.b16 %v146
    %v953 = vunpack.c.l.b16 %v147
    %v954 = vunpack.c.h.b16 %v147
    %v955 = vunpack.c.l.b16 %v148
    %v956 = vunpack.c.h.b16 %v148
    %v957 = vunpack.c.l.b16 %v149
    %v958 = vunpack.c.h.b16 %v149
    %v959 = vunpack.c.l.b16 %v150
    %v960 = vunpack.c.h.b16 %v150
    %v961 = vunpack.c.l.b16 %v151
    %v962 = vunpack.c.h.b16 %v151
    %v963 = vunpack.c.l.b16 %v152
    %v964 = vunpack.c.h.b16 %v152
    %v965 = vunpack.c.l.b16 %v153
    %v966 = vunpack.c.h.b16 %v153
    %v967 = vunpack.c.l.b16 %v154
    %v968 = vunpack.c.h.b16 %v154
    %v969 = vunpack.c.l.b16 %v155
    %v970 = vunpack.c.h.b16 %v155
    %v971 = vunpack.c.l.b16 %v156
    %v972 = vunpack.c.h.b16 %v156
    %v973 = vunpack.c.l.b16 %v157
    %v974 = vunpack.c.h.b16 %v157
    %v975 = vunpack.c.l.b16 %v158
    %v976 = vunpack.c.h.b16 %v158
    %v977 = vunpack.c.l.b16 %v159
    %v978 = vunpack.c.h.b16 %v159
    %v979 = vunpack.c.l.b16 %v160
    %v980 = vunpack.c.h.b16 %v160
    %v981 = vunpack.c.l.b16 %v161
    %v982 = vunpack.c.h.b16 %v161
    %v983 = vunpack.c.l.b16 %v162
    %v984 = vunpack.c.h.b16 %v162
    %v985 = vunpack.c.l.b16 %v163
    %v986 = vunpack.c.h.b16 %v163
    %v987 = vunpack.c.l.b16 %v164
    %v988 = vunpack.c.h.b16 %v164
    %v989 = vunpack.c.l.b16 %v165
    %v990 = vunpack.c.h.b16 %v165
    %v991 = vunpack.c.l.b16 %v166
    %v992 = vunpack.c.h.b16 %v166
    %v993 = vunpack.c.l.b16 %v167
    %v994 = vunpack.c.h.b16 %v167
    %v995 = vunpack.c.l.b16 %v168
    %v996 = vunpack.c.h.b16 %v168
    %v997 = vunpack.c.l.b16 %v169
    %v998 = vunpack.c.h.b16 %v169
    %v999 = vunpack.c.l.b16 %v170
    %v1000 = vunpack.c.h.b16 %v170
    %v1001 = vunpack.c.l.b16 %v171
    %v1002 = vunpack.c.h.b16 %v171
    %v1003 = vunpack.c.l.b16 %v172
    %v1004 = vunpack.c.h.b16 %v172
    %v1005 = vunpack.c.l.b16 %v173
    %v1006 = vunpack.c.h.b16 %v173
    %v1007 = vunpack.c.l.b16 %v174
    %v1008 = vunpack.c.h.b16 %v174
    %v1009 = vunpack.c.l.b16 %v175
    %v1010 = vunpack.c.h.b16 %v175
    %v1011 = vunpack.c.l.b16 %v176
    %v1012 = vunpack.c.h.b16 %v176
    %v1013 = vunpack.c.l.b16 %v177
    %v1014 = vunpack.c.h.b16 %v177
    %v1015 = vunpack.c.l.b16 %v178
    %v1016 = vunpack.c.h.b16 %v178
    %v1017 = vunpack.c.l.b16 %v179
    %v1018 = vunpack.c.h.b16 %v179
    %v1019 = vunpack.c.l.b16 %v180
    %v1020 = vunpack.c.h.b16 %v180
    %v1021 = vunpack.c.l.b16 %v181
    %v1022 = vunpack.c.h.b16 %v181
    %v1023 = vunpack.c.l.b16 %v182
    %v1024 = vunpack.c.h.b16 %v182
    %v1025 = vunpack.c.l.b16 %v183
    %v1026 = vunpack.c.h.b16 %v183
    %v1027 = vunpack.c.l.b16 %v184
    %v1028 = vunpack.c.h.b16 %v184
    %v1029 = vunpack.c.l.b16 %v185
    %v1030 = vunpack.c.h.b16 %v185
    %v1031 = vunpack.c.l.b16 %v186
    %v1032 = vunpack.c.h.b16 %v186
    %v1033 = vunpack.c.l.b16 %v187
    %v1034 = vunpack.c.h.b16 %v187
    %v1035 = vunpack.c.l.b16 %v188
    %v1036 = vunpack.c.h.b16 %v188
    %v1037 = vunpack.c.l.b16 %v189
    %v1038 = vunpack.c.h.b16 %v189
    %v1039 = vunpack.c.l.b16 %v190
    %v1040 = vunpack.c.h.b16 %v190
    %v1041 = vunpack.c.l.b16 %v191
    %v1042 = vunpack.c.h.b16 %v191
    %v1043 = vunpack.c.l.b16 %v192
    %v1044 = vunpack.c.h.b16 %v192
    %v1045 = vunpack.c.l.b16 %v193
    %v1046 = vunpack.c.h.b16 %v193
    %v1047 = vunpack.c.l.b16 %v194
    %v1048 = vunpack.c.h.b16 %v194
    %v1049 = vunpack.c.l.b16 %v195
    %v1050 = vunpack.c.h.b16 %v195
    %v1051 = vunpack.c.l.b16 %v196
    %v1052 = vunpack.c.h.b16 %v196
    %v1053 = vunpack.c.l.b16 %v197
    %v1054 = vunpack.c.h.b16 %v197
    %v1055 = vunpack.c.l.b16 %v198
    %v1056 = vunpack.c.h.b16 %v198
    %v1057 = vunpack.c.l.b16 %v199
    %v1058 = vunpack.c.h.b16 %v199
    %v1059 = vunpack.c.l.b16 %v200
    %v1060 = vunpack.c.h.b16 %v200
    %v1061 = vunpack.c.l.b16 %v201
    %v1062 = vunpack.c.h.b16 %v201
    %v1063 = vunpack.c.l.b16 %v202
    %v1064 = vunpack.c.h.b16 %v202
    %v1065 = vunpack.c.l.b16 %v203
    %v1066 = vunpack.c.h.b16 %v203
    %v1067 = vunpack.c.l.b16 %v204
    %v1068 = vunpack.c.h.b16 %v204
    %v1069 = vunpack.c.l.b16 %v205
    %v1070 = vunpack.c.h.b16 %v205
    %v1071 = vunpack.c.l.b16 %v206
    %v1072 = vunpack.c.h.b16 %v206
    %v1073 = vunpack.c.l.b16 %v207
    %v1074 = vunpack.c.h.b16 %v207
    %v1075 = vunpack.c.l.b16 %v208
    %v1076 = vunpack.c.h.b16 %v208
    %v1077 = vunpack.c.l.b16 %v209
    %v1078 = vunpack.c.h.b16 %v209
    %v1079 = vunpack.c.l.b16 %v210
    %v1080 = vunpack.c.h.b16 %v210
    %v1081 = vunpack.c.l.b16 %v211
    %v1082 = vunpack.c.h.b16 %v211
    %v1083 = vunpack.c.l.b16 %v212
    %v1084 = vunpack.c.h.b16 %v212
    %v1085 = vunpack.c.l.b16 %v213
    %v1086 = vunpack.c.h.b16 %v213
    %v1087 = vunpack.c.l.b16 %v214
    %v1088 = vunpack.c.h.b16 %v214
    %v1089 = vunpack.c.l.b16 %v215
    %v1090 = vunpack.c.h.b16 %v215
    %v1091 = vunpack.c.l.b16 %v216
    %v1092 = vunpack.c.h.b16 %v216
    %v1093 = vunpack.c.l.b16 %v217
    %v1094 = vunpack.c.h.b16 %v217
    %v1095 = vunpack.c.l.b16 %v218
    %v1096 = vunpack.c.h.b16 %v218
    %v1097 = vunpack.c.l.b16 %v219
    %v1098 = vunpack.c.h.b16 %v219
    %v1099 = vunpack.c.l.b16 %v220
    %v1100 = vunpack.c.h.b16 %v220
    %v1101 = vunpack.c.l.b16 %v221
    %v1102 = vunpack.c.h.b16 %v221
    %v1103 = vunpack.c.l.b16 %v222
    %v1104 = vunpack.c.h.b16 %v222
    %v1105 = vunpack.c.l.b16 %v223
    %v1106 = vunpack.c.h.b16 %v223
    %v1107 = vunpack.c.l.b16 %v224
    %v1108 = vunpack.c.h.b16 %v224
    %v1109 = vunpack.c.l.b16 %v225
    %v1110 = vunpack.c.h.b16 %v225
    %v1111 = vunpack.c.l.b16 %v226
    %v1112 = vunpack.c.h.b16 %v226
    %v1113 = vunpack.c.l.b16 %v227
    %v1114 = vunpack.c.h.b16 %v227
    %v1115 = vunpack.c.l.b16 %v228
    %v1116 = vunpack.c.h.b16 %v228
    %v1117 = vunpack.c.l.b16 %v229
    %v1118 = vunpack.c.h.b16 %v229
    %v1119 = vunpack.c.l.b16 %v230
    %v1120 = vunpack.c.h.b16 %v230
    %v1121 = vunpack.c.l.b16 %v231
    %v1122 = vunpack.c.h.b16 %v231
    %v1123 = vunpack.c.l.b16 %v232
    %v1124 = vunpack.c.h.b16 %v232
    %v1125 = vunpack.c.l.b16 %v233
    %v1126 = vunpack.c.h.b16 %v233
    %v1127 = vunpack.c.l.b16 %v234
    %v1128 = vunpack.c.h.b16 %v234
    %v1129 = vunpack.c.l.b16 %v235
    %v1130 = vunpack.c.h.b16 %v235
    %v1131 = vunpack.c.l.b16 %v236
    %v1132 = vunpack.c.h.b16 %v236
    %v1133 = vunpack.c.l.b16 %v237
    %v1134 = vunpack.c.h.b16 %v237
    %v1135 = vunpack.c.l.b16 %v238
    %v1136 = vunpack.c.h.b16 %v238
    %v1137 = vunpack.c.l.b16 %v239
    %v1138 = vunpack.c.h.b16 %v239
    %v1139 = vunpack.c.l.b16 %v240
    %v1140 = vunpack.c.h.b16 %v240
    %v1141 = vunpack.c.l.b16 %v241
    %v1142 = vunpack.c.h.b16 %v241
    %v1143 = vunpack.c.l.b16 %v242
    %v1144 = vunpack.c.h.b16 %v242
    %v1145 = vunpack.c.l.b16 %v243
    %v1146 = vunpack.c.h.b16 %v243
    %v1147 = vunpack.c.l.b16 %v244
    %v1148 = vunpack.c.h.b16 %v244
    %v1149 = vunpack.c.l.b16 %v245
    %v1150 = vunpack.c.h.b16 %v245
    %v1151 = vunpack.c.l.b16 %v246
    %v1152 = vunpack.c.h.b16 %v246
    %v1153 = vunpack.c.l.b16 %v247
    %v1154 = vunpack.c.h.b16 %v247
    %v1155 = vunpack.c.l.b16 %v248
    %v1156 = vunpack.c.h.b16 %v248
    %v1157 = vunpack.c.l.b16 %v249
    %v1158 = vunpack.c.h.b16 %v249
    %v1159 = vunpack.c.l.b16 %v250
    %v1160 = vunpack.c.h.b16 %v250
    %v1161 = vunpack.c.l.b16 %v251
    %v1162 = vunpack.c.h.b16 %v251
    %v1163 = vunpack.c.l.b16 %v252
    %v1164 = vunpack.c.h.b16 %v252
    %v1165 = vunpack.c.l.b16 %v253
    %v1166 = vunpack.c.h.b16 %v253
    %v1167 = vunpack.c.l.b16 %v254
    %v1168 = vunpack.c.h.b16 %v254
    %v1169 = vunpack.c.l.b16 %v255
    %v1170 = vunpack.c.h.b16 %v255
    %v1171 = vunpack.c.l.b16 %v256
    %v1172 = vunpack.c.h.b16 %v256
    %v1173 = vunpack.c.l.b16 %v257
    %v1174 = vunpack.c.h.b16 %v257
    %v1175 = vunpack.c.l.b16 %v258
    %v1176 = vunpack.c.h.b16 %v258
    %v1177 = vunpack.c.l.b16 %v259
    %v1178 = vunpack.c.h.b16 %v259
    %v1179 = vunpack.c.l.b16 %v260
    %v1180 = vunpack.c.h.b16 %v260
    %v1181 = vunpack.c.l.b16 %v261
    %v1182 = vunpack.c.h.b16 %v261
    %v1183 = vunpack.c.l.b16 %v262
    %v1184 = vunpack.c.h.b16 %v262
    %v1185 = vunpack.c.l.b16 %v263
    %v1186 = vunpack.c.h.b16 %v263
    %v1187 = vunpack.c.l.b16 %v264
    %v1188 = vunpack.c.h.b16 %v264
    %v1189 = vunpack.c.l.b16 %v265
    %v1190 = vunpack.c.h.b16 %v265
    %v1191 = vunpack.c.l.b16 %v266
    %v1192 = vunpack.c.h.b16 %v266
    %v1193 = vunpack.c.l.b16 %v267
    %v1194 = vunpack.c.h.b16 %v267
    %v1195 = vunpack.c.l.b16 %v268
    %v1196 = vunpack.c.h.b16 %v268
    %v1197 = vunpack.c.l.b16 %v269
    %v1198 = vunpack.c.h.b16 %v269
    %v1199 = vunpack.c.l.b16 %v270
    %v1200 = vunpack.c.h.b16 %v270
    %v1201 = vunpack.c.l.b16 %v271
    %v1202 = vunpack.c.h.b16 %v271
    %v1203 = vunpack.c.l.b16 %v272
    %v1204 = vunpack.c.h.b16 %v272
    %v1205 = vunpack.c.l.b16 %v273
    %v1206 = vunpack.c.h.b16 %v273
    %v1207 = vunpack.c.l.b16 %v274
    %v1208 = vunpack.c.h.b16 %v274
    %v1209 = vunpack.c.l.b16 %v275
    %v1210 = vunpack.c.h.b16 %v275
    %v1211 = vunpack.c.l.b16 %v276
    %v1212 = vunpack.c.h.b16 %v276
    %v1213 = vunpack.c.l.b16 %v277
    %v1214 = vunpack.c.h.b16 %v277
    %v1215 = vunpack.c.l.b16 %v278
    %v1216 = vunpack.c.h.b16 %v278
    %v1217 = vunpack.c.l.b16 %v279
    %v1218 = vunpack.c.h.b16 %v279
    %v1219 = vunpack.c.l.b16 %v280
    %v1220 = vunpack.c.h.b16 %v280
    %v1221 = vunpack.c.l.b16 %v281
    %v1222 = vunpack.c.h.b16 %v281
    %v1223 = vunpack.c.l.b16 %v282
    %v1224 = vunpack.c.h.b16 %v282
    %v1225 = vunpack.c.l.b16 %v283
    %v1226 = vunpack.c.h.b16 %v283
    %v1227 = vunpack.c.l.b16 %v284
    %v1228 = vunpack.c.h.b16 %v284
    %v1229 = vunpack.c.l.b16 %v285
    %v1230 = vunpack.c.h.b16 %v285
    %v1231 = vunpack.c.l.b16 %v286
    %v1232 = vunpack.c.h.b16 %v286
    %v1233 = vunpack.c.l.b16 %v287
    %v1234 = vunpack.c.h.b16 %v287
    %v1235 = vunpack.c.l.b16 %v288
    %v1236 = vunpack.c.h.b16 %v288
    %v1237 = vunpack.c.l.b16 %v289
    %v1238 = vunpack.c.h.b16 %v289
    %v1239 = vunpack.c.l.b16 %v290
    %v1240 = vunpack.c.h.b16 %v290
    %v1241 = vunpack.c.l.b16 %v291
    %v1242 = vunpack.c.h.b16 %v291
    %v1243 = vunpack.c.l.b16 %v292
    %v1244 = vunpack.c.h.b16 %v292
    %v1245 = vunpack.c.l.b16 %v293
    %v1246 = vunpack.c.h.b16 %v293
    %v1247 = vunpack.c.l.b16 %v294
    %v1248 = vunpack.c.h.b16 %v294
    %v1249 = vunpack.c.l.b16 %v295
    %v1250 = vunpack.c.h.b16 %v295
    %v1251 = vunpack.c.l.b16 %v296
    %v1252 = vunpack.c.h.b16 %v296
    %v1253 = vunpack.c.l.b16 %v297
    %v1254 = vunpack.c.h.b16 %v297
    %v1255 = vunpack.c.l.b16 %v298
    %v1256 = vunpack.c.h.b16 %v298
    %v1257 = vunpack.c.l.b16 %v299
    %v1258 = vunpack.c.h.b16 %v299
    %v1259 = vunpack.c.l.b16 %v300
    %v1260 = vunpack.c.h.b16 %v300
    %v1261 = vunpack.c.l.b16 %v301
    %v1262 = vunpack.c.h.b16 %v301
    %v1263 = vunpack.c.l.b16 %v302
    %v1264 = vunpack.c.h.b16 %v302
    %v1265 = vunpack.c.l.b16 %v303
    %v1266 = vunpack.c.h.b16 %v303
    %v1267 = vunpack.c.l.b16 %v304
    %v1268 = vunpack.c.h.b16 %v304
    %v1269 = vunpack.c.l.b16 %v305
    %v1270 = vunpack.c.h.b16 %v305
    %v1271 = vunpack.c.l.b16 %v306
    %v1272 = vunpack.c.h.b16 %v306
    %v1273 = vunpack.c.l.b16 %v307
    %v1274 = vunpack.c.h.b16 %v307
    %v1275 = vunpack.c.l.b16 %v308
    %v1276 = vunpack.c.h.b16 %v308
    %v1277 = vunpack.c.l.b16 %v309
    %v1278 = vunpack.c.h.b16 %v309
    %v1279 = vunpack.c.l.b16 %v310
    %v1280 = vunpack.c.h.b16 %v310
    %v1281 = vunpack.c.l.b16 %v311
    %v1282 = vunpack.c.h.b16 %v311
    %v1283 = vunpack.c.l.b16 %v312
    %v1284 = vunpack.c.h.b16 %v312
    %v1285 = vunpack.c.l.b16 %v313
    %v1286 = vunpack.c.h.b16 %v313
    %v1287 = vunpack.c.l.b16 %v314
    %v1288 = vunpack.c.h.b16 %v314
    %v1289 = vunpack.c.l.b16 %v315
    %v1290 = vunpack.c.h.b16 %v315
    %v1291 = vunpack.c.l.b16 %v316
    %v1292 = vunpack.c.h.b16 %v316
    %v1293 = vunpack.c.l.b16 %v317
    %v1294 = vunpack.c.h.b16 %v317
    %v1295 = vunpack.c.l.b16 %v318
    %v1296 = vunpack.c.h.b16 %v318
    %v1297 = vunpack.c.l.b16 %v319
    %v1298 = vunpack.c.h.b16 %v319
    %v1299 = vunpack.c.l.b16 %v320
    %v1300 = vunpack.c.h.b16 %v320
    %v1301 = vunpack.c.l.b16 %v321
    %v1302 = vunpack.c.h.b16 %v321
    %v1303 = vunpack.c.l.b16 %v322
    %v1304 = vunpack.c.h.b16 %v322
    %v1305 = vunpack.c.l.b16 %v323
    %v1306 = vunpack.c.h.b16 %v323
    %v1307 = vunpack.c.l.b16 %v324
    %v1308 = vunpack.c.h.b16 %v324
    %v1309 = vunpack.c.l.b16 %v325
    %v1310 = vunpack.c.h.b16 %v325
    %v1311 = vunpack.c.l.b16 %v326
    %v1312 = vunpack.c.h.b16 %v326
    %v1313 = vunpack.c.l.b16 %v327
    %v1314 = vunpack.c.h.b16 %v327
    %v1315 = vunpack.c.l.b16 %v328
    %v1316 = vunpack.c.h.b16 %v328
    %v1317 = vunpack.c.l.b16 %v329
    %v1318 = vunpack.c.h.b16 %v329
    %v1319 = vunpack.c.l.b16 %v330
    %v1320 = vunpack.c.h.b16 %v330
    %v1321 = vunpack.c.l.b16 %v331
    %v1322 = vunpack.c.h.b16 %v331
    %v1323 = vunpack.c.l.b16 %v332
    %v1324 = vunpack.c.h.b16 %v332
    %v1325 = vunpack.c.l.b16 %v333
    %v1326 = vunpack.c.h.b16 %v333
    %v1327 = vunpack.c.l.b16 %v334
    %v1328 = vunpack.c.h.b16 %v334
    %v1329 = vunpack.c.l.b16 %v335
    %v1330 = vunpack.c.h.b16 %v335
    %v1331 = vunpack.c.l.b16 %v336
    %v1332 = vunpack.c.h.b16 %v336
    %v1333 = vunpack.c.l.b16 %v337
    %v1334 = vunpack.c.h.b16 %v337
    %v1335 = vunpack.c.l.b16 %v338
    %v1336 = vunpack.c.h.b16 %v338
    %v1337 = vunpack.c.l.b16 %v339
    %v1338 = vunpack.c.h.b16 %v339
    %v1339 = vunpack.c.l.b16 %v340
    %v1340 = vunpack.c.h.b16 %v340
    %v1341 = vunpack.c.l.b16 %v341
    %v1342 = vunpack.c.h.b16 %v341
    %v1343 = vunpack.c.l.b16 %v342
    %v1344 = vunpack.c.h.b16 %v342
    %v1345 = vunpack.c.l.b16 %v343
    %v1346 = vunpack.c.h.b16 %v343
    %v1347 = vunpack.c.l.b16 %v344
    %v1348 = vunpack.c.h.b16 %v344
    %v1349 = vunpack.c.l.b16 %v345
    %v1350 = vunpack.c.h.b16 %v345
    %v1351 = vunpack.c.l.b16 %v346
    %v1352 = vunpack.c.h.b16 %v346
    %v1353 = vunpack.c.l.b16 %v347
    %v1354 = vunpack.c.h.b16 %v347
    %v1355 = vunpack.c.l.b16 %v348
    %v1356 = vunpack.c.h.b16 %v348
    %v1357 = vunpack.c.l.b16 %v349
    %v1358 = vunpack.c.h.b16 %v349
    %v1359 = vunpack.c.l.b16 %v350
    %v1360 = vunpack.c.h.b16 %v350
    %v1361 = vunpack.c.l.b16 %v351
    %v1362 = vunpack.c.h.b16 %v351
    %v1363 = vunpack.c.l.b16 %v352
    %v1364 = vunpack.c.h.b16 %v352
    %v1365 = vunpack.c.l.b16 %v353
    %v1366 = vunpack.c.h.b16 %v353
    %v1367 = vunpack.c.l.b16 %v354
    %v1368 = vunpack.c.h.b16 %v354
    %v1369 = vunpack.c.l.b16 %v355
    %v1370 = vunpack.c.h.b16 %v355
    %v1371 = vunpack.c.l.b16 %v356
    %v1372 = vunpack.c.h.b16 %v356
    %v1373 = vunpack.c.l.b16 %v357
    %v1374 = vunpack.c.h.b16 %v357
    %v1375 = vunpack.c.l.b16 %v358
    %v1376 = vunpack.c.h.b16 %v358
    %v1377 = vunpack.c.l.b16 %v359
    %v1378 = vunpack.c.h.b16 %v359
    %v1379 = vunpack.c.l.b16 %v360
    %v1380 = vunpack.c.h.b16 %v360
    %v1381 = vunpack.c.l.b16 %v361
    %v1382 = vunpack.c.h.b16 %v361
    %v1383 = vunpack.c.l.b16 %v362
    %v1384 = vunpack.c.h.b16 %v362
    %v1385 = vunpack.c.l.b16 %v363
    %v1386 = vunpack.c.h.b16 %v363
    %v1387 = vunpack.c.l.b16 %v364
    %v1388 = vunpack.c.h.b16 %v364
    %v1389 = vunpack.c.l.b16 %v365
    %v1390 = vunpack.c.h.b16 %v365
    %v1391 = vunpack.c.l.b16 %v366
    %v1392 = vunpack.c.h.b16 %v366
    %v1393 = vunpack.c.l.b16 %v367
    %v1394 = vunpack.c.h.b16 %v367
    %v1395 = vunpack.c.l.b16 %v368
    %v1396 = vunpack.c.h.b16 %v368
    %v1397 = vunpack.c.l.b16 %v369
    %v1398 = vunpack.c.h.b16 %v369
    %v1399 = vunpack.c.l.b16 %v370
    %v1400 = vunpack.c.h.b16 %v370
    %v1401 = vunpack.c.l.b16 %v371
    %v1402 = vunpack.c.h.b16 %v371
    %v1403 = vunpack.c.l.b16 %v372
    %v1404 = vunpack.c.h.b16 %v372
    %v1405 = vunpack.c.l.b16 %v373
    %v1406 = vunpack.c.h.b16 %v373
    %v1407 = vunpack.c.l.b16 %v374
    %v1408 = vunpack.c.h.b16 %v374
    %v1409 = vunpack.c.l.b16 %v375
    %v1410 = vunpack.c.h.b16 %v375
    %v1411 = vunpack.c.l.b16 %v376
    %v1412 = vunpack.c.h.b16 %v376
    %v1413 = vunpack.c.l.b16 %v377
    %v1414 = vunpack.c.h.b16 %v377
    %v1415 = vunpack.c.l.b16 %v378
    %v1416 = vunpack.c.h.b16 %v378
    %v1417 = vunpack.c.l.b16 %v379
    %v1418 = vunpack.c.h.b16 %v379
    %v1419 = vunpack.c.l.b16 %v380
    %v1420 = vunpack.c.h.b16 %v380
    %v1421 = vunpack.c.l.b16 %v381
    %v1422 = vunpack.c.h.b16 %v381
    %v1423 = vunpack.c.l.b16 %v382
    %v1424 = vunpack.c.h.b16 %v382
    %v1425 = vunpack.c.l.b16 %v383
    %v1426 = vunpack.c.h.b16 %v383
    %v1427 = vunpack.c.l.b16 %v384
    %v1428 = vunpack.c.h.b16 %v384
    %v1429 = vunpack.c.l.b16 %v385
    %v1430 = vunpack.c.h.b16 %v385
    %v1431 = vunpack.c.l.b16 %v386
    %v1432 = vunpack.c.h.b16 %v386
    %v1433 = vunpack.c.l.b16 %v387
    %v1434 = vunpack.c.h.b16 %v387
    %v1435 = vunpack.c.l.b16 %v388
    %v1436 = vunpack.c.h.b16 %v388
    %v1437 = vunpack.c.l.b16 %v389
    %v1438 = vunpack.c.h.b16 %v389
    %v1439 = vunpack.c.l.b16 %v390
    %v1440 = vunpack.c.h.b16 %v390
    %v1441 = vunpack.c.l.b16 %v391
    %v1442 = vunpack.c.h.b16 %v391
    %v1443 = vunpack.c.l.b16 %v392
    %v1444 = vunpack.c.h.b16 %v392
    %v1445 = vunpack.c.l.b16 %v393
    %v1446 = vunpack.c.h.b16 %v393
    %v1447 = vunpack.c.l.b16 %v394
    %v1448 = vunpack.c.h.b16 %v394
    %v1449 = vunpack.c.l.b16 %v395
    %v1450 = vunpack.c.h.b16 %v395
    %v1451 = vunpack.c.l.b16 %v396
    %v1452 = vunpack.c.h.b16 %v396
    %v1453 = vunpack.c.l.b16 %v397
    %v1454 = vunpack.c.h.b16 %v397
    %v1455 = vunpack.c.l.b16 %v398
    %v1456 = vunpack.c.h.b16 %v398
    %v1457 = vunpack.c.l.b16 %v399
    %v1458 = vunpack.c.h.b16 %v399
    %v1459 = vunpack.c.l.b16 %v400
    %v1460 = vunpack.c.h.b16 %v400
    %v1461 = vunpack.c.l.b16 %v401
    %v1462 = vunpack.c.h.b16 %v401
    %v1463 = vunpack.c.l.b16 %v402
    %v1464 = vunpack.c.h.b16 %v402
    %v1465 = vunpack.c.l.b16 %v403
    %v1466 = vunpack.c.h.b16 %v403
    %v1467 = vunpack.c.l.b16 %v404
    %v1468 = vunpack.c.h.b16 %v404
    %v1469 = vunpack.c.l.b16 %v405
    %v1470 = vunpack.c.h.b16 %v405
    %v1471 = vunpack.c.l.b16 %v406
    %v1472 = vunpack.c.h.b16 %v406
    %v1473 = vunpack.c.l.b16 %v407
    %v1474 = vunpack.c.h.b16 %v407
    %v1475 = vunpack.c.l.b16 %v408
    %v1476 = vunpack.c.h.b16 %v408
    %v1477 = vunpack.c.l.b16 %v409
    %v1478 = vunpack.c.h.b16 %v409
    %v1479 = vunpack.c.l.b16 %v410
    %v1480 = vunpack.c.h.b16 %v410
    %v1481 = vunpack.c.l.b16 %v411
    %v1482 = vunpack.c.h.b16 %v411
    %v1483 = vunpack.c.l.b16 %v412
    %v1484 = vunpack.c.h.b16 %v412
    %v1485 = vunpack.c.l.b16 %v413
    %v1486 = vunpack.c.h.b16 %v413
    %v1487 = vunpack.c.l.b16 %v414
    %v1488 = vunpack.c.h.b16 %v414
    %v1489 = vunpack.c.l.b16 %v415
    %v1490 = vunpack.c.h.b16 %v415
    %v1491 = vunpack.c.l.b16 %v416
    %v1492 = vunpack.c.h.b16 %v416
    %v1493 = vunpack.c.l.b16 %v417
    %v1494 = vunpack.c.h.b16 %v417
    %v1495 = vunpack.c.l.b16 %v418
    %v1496 = vunpack.c.h.b16 %v418
    %v1497 = vunpack.c.l.b16 %v419
    %v1498 = vunpack.c.h.b16 %v419
    %v1499 = vunpack.c.l.b16 %v420
    %v1500 = vunpack.c.h.b16 %v420
    %v1501 = vunpack.c.l.b16 %v421
    %v1502 = vunpack.c.h.b16 %v421
    %v1503 = vunpack.c.l.b16 %v422
    %v1504 = vunpack.c.h.b16 %v422
    %v1505 = vunpack.c.l.b16 %v423
    %v1506 = vunpack.c.h.b16 %v423
    %v1507 = vunpack.c.l.b16 %v424
    %v1508 = vunpack.c.h.b16 %v424
    %v1509 = vunpack.c.l.b16 %v425
    %v1510 = vunpack.c.h.b16 %v425
    %v1511 = vunpack.c.l.b16 %v426
    %v1512 = vunpack.c.h.b16 %v426
    %v1513 = vunpack.c.l.b16 %v427
    %v1514 = vunpack.c.h.b16 %v427
    %v1515 = vunpack.c.l.b16 %v428
    %v1516 = vunpack.c.h.b16 %v428
    %v1517 = vunpack.c.l.b16 %v429
    %v1518 = vunpack.c.h.b16 %v429
    %v1519 = vunpack.c.l.b16 %v430
    %v1520 = vunpack.c.h.b16 %v430
    %v1521 = vunpack.c.l.b16 %v431
    %v1522 = vunpack.c.h.b16 %v431
    %v1523 = vunpack.c.l.b16 %v432
    %v1524 = vunpack.c.h.b16 %v432
    %v1525 = vunpack.c.l.b16 %v433
    %v1526 = vunpack.c.h.b16 %v433
    %v1527 = vunpack.c.l.b16 %v434
    %v1528 = vunpack.c.h.b16 %v434
    %v1529 = vunpack.c.l.b16 %v435
    %v1530 = vunpack.c.h.b16 %v435
    %v1531 = vunpack.c.l.b16 %v436
    %v1532 = vunpack.c.h.b16 %v436
    %v1533 = vunpack.c.l.b16 %v437
    %v1534 = vunpack.c.h.b16 %v437
    %v1535 = vunpack.c.l.b16 %v438
    %v1536 = vunpack.c.h.b16 %v438
    %v1537 = vunpack.c.l.b16 %v439
    %v1538 = vunpack.c.h.b16 %v439
    %v1539 = vunpack.c.l.b16 %v440
    %v1540 = vunpack.c.h.b16 %v440
    %v1541 = vunpack.c.l.b16 %v441
    %v1542 = vunpack.c.h.b16 %v441
    %v1543 = vunpack.c.l.b16 %v442
    %v1544 = vunpack.c.h.b16 %v442
    %v1545 = vunpack.c.l.b16 %v443
    %v1546 = vunpack.c.h.b16 %v443
    %v1547 = vunpack.c.l.b16 %v444
    %v1548 = vunpack.c.h.b16 %v444
    %v1549 = vunpack.c.l.b16 %v445
    %v1550 = vunpack.c.h.b16 %v445
    %v1551 = vunpack.c.l.b16 %v446
    %v1552 = vunpack.c.h.b16 %v446
    %v1553 = vunpack.c.l.b16 %v447
    %v1554 = vunpack.c.h.b16 %v447
    %v1555 = vunpack.c.l.b16 %v448
    %v1556 = vunpack.c.h.b16 %v448
    %v1557 = vunpack.c.l.b16 %v449
    %v1558 = vunpack.c.h.b16 %v449
    %v1559 = vunpack.c.l.b16 %v450
    %v1560 = vunpack.c.h.b16 %v450
    %v1561 = vunpack.c.l.b16 %v451
    %v1562 = vunpack.c.h.b16 %v451
    %v1563 = vunpack.c.l.b16 %v452
    %v1564 = vunpack.c.h.b16 %v452
    %v1565 = vunpack.c.l.b16 %v453
    %v1566 = vunpack.c.h.b16 %v453
    %v1567 = vunpack.c.l.b16 %v454
    %v1568 = vunpack.c.h.b16 %v454
    %v1569 = vunpack.c.l.b16 %v455
    %v1570 = vunpack.c.h.b16 %v455
    %v1571 = vunpack.c.l.b16 %v456
    %v1572 = vunpack.c.h.b16 %v456
    %v1573 = vunpack.c.l.b16 %v457
    %v1574 = vunpack.c.h.b16 %v457
    %v1575 = vunpack.c.l.b16 %v458
    %v1576 = vunpack.c.h.b16 %v458
    %v1577 = vunpack.c.l.b16 %v459
    %v1578 = vunpack.c.h.b16 %v459
    %v1579 = vunpack.c.l.b16 %v460
    %v1580 = vunpack.c.h.b16 %v460
    %v1581 = vunpack.c.l.b16 %v461
    %v1582 = vunpack.c.h.b16 %v461
    %v1583 = vunpack.c.l.b16 %v462
    %v1584 = vunpack.c.h.b16 %v462
    %v1585 = vunpack.c.l.b16 %v463
    %v1586 = vunpack.c.h.b16 %v463
    %v1587 = vunpack.c.l.b16 %v464
    %v1588 = vunpack.c.h.b16 %v464
    %v1589 = vunpack.c.l.b16 %v465
    %v1590 = vunpack.c.h.b16 %v465
    %v1591 = vunpack.c.l.b16 %v466
    %v1592 = vunpack.c.h.b16 %v466
    %v1593 = vunpack.c.l.b16 %v467
    %v1594 = vunpack.c.h.b16 %v467
    %v1595 = vunpack.c.l.b16 %v468
    %v1596 = vunpack.c.h.b16 %v468
    %v1597 = vunpack.c.l.b16 %v469
    %v1598 = vunpack.c.h.b16 %v469
    %v1599 = vunpack.c.l.b16 %v470
    %v1600 = vunpack.c.h.b16 %v470
    %v1601 = vunpack.c.l.b16 %v471
    %v1602 = vunpack.c.h.b16 %v471
    %v1603 = vunpack.c.l.b16 %v472
    %v1604 = vunpack.c.h.b16 %v472
    %v1605 = vunpack.c.l.b16 %v473
    %v1606 = vunpack.c.h.b16 %v473
    %v1607 = vunpack.c.l.b16 %v474
    %v1608 = vunpack.c.h.b16 %v474
    %v1609 = vunpack.c.l.b16 %v475
    %v1610 = vunpack.c.h.b16 %v475
    %v1611 = vunpack.c.l.b16 %v476
    %v1612 = vunpack.c.h.b16 %v476
    %v1613 = vunpack.c.l.b16 %v477
    %v1614 = vunpack.c.h.b16 %v477
    %v1615 = vunpack.c.l.b16 %v478
    %v1616 = vunpack.c.h.b16 %v478
    %v1617 = vunpack.c.l.b16 %v479
    %v1618 = vunpack.c.h.b16 %v479
    %v1619 = vunpack.c.l.b16 %v480
    %v1620 = vunpack.c.h.b16 %v480
    %v1621 = vunpack.c.l.b16 %v481
    %v1622 = vunpack.c.h.b16 %v481
    %v1623 = vunpack.c.l.b16 %v482
    %v1624 = vunpack.c.h.b16 %v482
    %v1625 = vunpack.c.l.b16 %v483
    %v1626 = vunpack.c.h.b16 %v483
    %v1627 = vunpack.c.l.b16 %v484
    %v1628 = vunpack.c.h.b16 %v484
    %v1629 = vunpack.c.l.b16 %v485
    %v1630 = vunpack.c.h.b16 %v485
    %v1631 = vunpack.c.l.b16 %v486
    %v1632 = vunpack.c.h.b16 %v486
    %v1633 = vunpack.c.l.b16 %v487
    %v1634 = vunpack.c.h.b16 %v487
    %v1635 = vunpack.c.l.b16 %v488
    %v1636 = vunpack.c.h.b16 %v488
    %v1637 = vunpack.c.l.b16 %v489
    %v1638 = vunpack.c.h.b16 %v489
    %v1639 = vunpack.c.l.b16 %v490
    %v1640 = vunpack.c.h.b16 %v490
    %v1641 = vunpack.c.l.b16 %v491
    %v1642 = vunpack.c.h.b16 %v491
    %v1643 = vunpack.c.l.b16 %v492
    %v1644 = vunpack.c.h.b16 %v492
    %v1645 = vunpack.c.l.b16 %v493
    %v1646 = vunpack.c.h.b16 %v493
    %v1647 = vunpack.c.l.b16 %v494
    %v1648 = vunpack.c.h.b16 %v494
    %v1649 = vunpack.c.l.b16 %v495
    %v1650 = vunpack.c.h.b16 %v495
    %v1651 = vunpack.c.l.b16 %v496
    %v1652 = vunpack.c.h.b16 %v496
    %v1653 = vunpack.c.l.b16 %v497
    %v1654 = vunpack.c.h.b16 %v497
    %v1655 = vunpack.c.l.b16 %v498
    %v1656 = vunpack.c.h.b16 %v498
    %v1657 = vunpack.c.l.b16 %v499
    %v1658 = vunpack.c.h.b16 %v499
    %v1659 = vunpack.c.l.b16 %v500
    %v1660 = vunpack.c.h.b16 %v500
    %v1661 = vunpack.c.l.b16 %v501
    %v1662 = vunpack.c.h.b16 %v501
    %v1663 = vunpack.c.l.b16 %v502
    %v1664 = vunpack.c.h.b16 %v502
    %v1665 = vunpack.c.l.b16 %v503
    %v1666 = vunpack.c.h.b16 %v503
    %v1667 = vunpack.c.l.b16 %v504
    %v1668 = vunpack.c.h.b16 %v504
    %v1669 = vunpack.c.l.b16 %v505
    %v1670 = vunpack.c.h.b16 %v505
    %v1671 = vunpack.c.l.b16 %v506
    %v1672 = vunpack.c.h.b16 %v506
    %v1673 = vunpack.c.l.b16 %v507
    %v1674 = vunpack.c.h.b16 %v507
    %v1675 = vunpack.c.l.b16 %v508
    %v1676 = vunpack.c.h.b16 %v508
    %v1677 = vunpack.c.l.b16 %v509
    %v1678 = vunpack.c.h.b16 %v509
    %v1679 = vunpack.c.l.b16 %v510
    %v1680 = vunpack.c.h.b16 %v510
    %v1681 = vunpack.c.l.b16 %v511
    %v1682 = vunpack.c.h.b16 %v511
    %v1683 = vunpack.c.l.b16 %v512
    %v1684 = vunpack.c.h.b16 %v512
    %v1685 = vunpack.c.l.b16 %v513
    %v1686 = vunpack.c.h.b16 %v513
    %v1687 = vunpack.c.l.b16 %v514
    %v1688 = vunpack.c.h.b16 %v514
    %v1689 = vunpack.c.l.b16 %v515
    %v1690 = vunpack.c.h.b16 %v515
    %v1691 = vunpack.c.l.b16 %v516
    %v1692 = vunpack.c.h.b16 %v516
    %v1693 = vunpack.c.l.b16 %v517
    %v1694 = vunpack.c.h.b16 %v517
    %v1695 = vunpack.c.l.b16 %v518
    %v1696 = vunpack.c.h.b16 %v518
    %v1697 = vunpack.c.l.b16 %v519
    %v1698 = vunpack.c.h.b16 %v519
    %v1699 = vunpack.c.l.b16 %v520
    %v1700 = vunpack.c.h.b16 %v520
    %v1701 = vunpack.c.l.b16 %v521
    %v1702 = vunpack.c.h.b16 %v521
    %v1703 = vunpack.c.l.b16 %v522
    %v1704 = vunpack.c.h.b16 %v522
    %v1705 = vunpack.c.l.b16 %v523
    %v1706 = vunpack.c.h.b16 %v523
    %v1707 = vunpack.c.l.b16 %v524
    %v1708 = vunpack.c.h.b16 %v524
    %v1709 = vunpack.c.l.b16 %v525
    %v1710 = vunpack.c.h.b16 %v525
    %v1711 = vunpack.c.l.b16 %v526
    %v1712 = vunpack.c.h.b16 %v526
    %v1713 = vunpack.c.l.b16 %v527
    %v1714 = vunpack.c.h.b16 %v527
    %v1715 = vunpack.c.l.b16 %v528
    %v1716 = vunpack.c.h.b16 %v528
    %v1717 = vunpack.c.l.b16 %v529
    %v1718 = vunpack.c.h.b16 %v529
    %v1719 = vunpack.c.l.b16 %v530
    %v1720 = vunpack.c.h.b16 %v530
    %v1721 = vunpack.c.l.b16 %v531
    %v1722 = vunpack.c.h.b16 %v531
    %v1723 = vunpack.c.l.b16 %v532
    %v1724 = vunpack.c.h.b16 %v532
    %v1725 = vunpack.c.l.b16 %v533
    %v1726 = vunpack.c.h.b16 %v533
    %v1727 = vunpack.c.l.b16 %v534
    %v1728 = vunpack.c.h.b16 %v534
    %v1729 = vpack.c.b16 %v953, %v945
    %v1730 = vpack.c.b16 %v954, %v946
    %v1731 = vpack.c.b16 %v955, %v947
    %v1732 = vpack.c.b16 %v956, %v948
    %v1733 = vpack.c.b16 %v957, %v949
    %v1734 = vpack.c.b16 %v958, %v950
    %v1735 = vpack.c.b16 %v959, %v951
    %v1736 = vpack.c.b16 %v960, %v952
    %v1737 = vpack.c.b16 %v969, %v961
    %v1738 = vpack.c.b16 %v970, %v962
    %v1739 = vpack.c.b16 %v971, %v963
    %v1740 = vpack.c.b16 %v972, %v964
    %v1741 = vpack.c.b16 %v973, %v965
    %v1742 = vpack.c.b16 %v974, %v966
    %v1743 = vpack.c.b16 %v975, %v967
    %v1744 = vpack.c.b16 %v976, %v968
    %v1745 = vpack.c.b16 %v985, %v977
    %v1746 = vpack.c.b16 %v986, %v978
    %v1747 = vpack.c.b16 %v987, %v979
    %v1748 = vpack.c.b16 %v988, %v980
    %v1749 = vpack.c.b16 %v989, %v981
    %v1750 = vpack.c.b16 %v990, %v982
    %v1751 = vpack.c.b16 %v991, %v983
    %v1752 = vpack.c.b16 %v992, %v984
    %v1753 = vpack.c.b16 %v1001, %v993
    %v1754 = vpack.c.b16 %v1002, %v994
    %v1755 = vpack.c.b16 %v1003, %v995
    %v1756 = vpack.c.b16 %v1004, %v996
    %v1757 = vpack.c.b16 %v1005, %v997
    %v1758 = vpack.c.b16 %v1006, %v998
    %v1759 = vpack.c.b16 %v1007, %v999
    %v1760 = vpack.c.b16 %v1008, %v1000
    %v1761 = vpack.c.b16 %v1017, %v1009
    %v1762 = vpack.c.b16 %v1018, %v1010
    %v1763 = vpack.c.b16 %v1019, %v1011
    %v1764 = vpack.c.b16 %v1020, %v1012
    %v1765 = vpack.c.b16 %v1021, %v1013
    %v1766 = vpack.c.b16 %v1022, %v1014
    %v1767 = vpack.c.b16 %v1023, %v1015
    %v1768 = vpack.c.b16 %v1024, %v1016
    %v1769 = vpack.c.b16 %v1033, %v1025
    %v1770 = vpack.c.b16 %v1034, %v1026
    %v1771 = vpack.c.b16 %v1035, %v1027
    %v1772 = vpack.c.b16 %v1036, %v1028
    %v1773 = vpack.c.b16 %v1037, %v1029
    %v1774 = vpack.c.b16 %v1038, %v1030
    %v1775 = vpack.c.b16 %v1039, %v1031
    %v1776 = vpack.c.b16 %v1040, %v1032
    %v1777 = vpack.c.b16 %v1049, %v1041
    %v1778 = vpack.c.b16 %v1050, %v1042
    %v1779 = vpack.c.b16 %v1051, %v1043
    %v1780 = vpack.c.b16 %v1052, %v1044
    %v1781 = vpack.c.b16 %v1053, %v1045
    %v1782 = vpack.c.b16 %v1054, %v1046
    %v1783 = vpack.c.b16 %v1055, %v1047
    %v1784 = vpack.c.b16 %v1056, %v1048
    %v1785 = vpack.c.b16 %v1065, %v1057
    %v1786 = vpack.c.b16 %v1066, %v1058
    %v1787 = vpack.c.b16 %v1067, %v1059
    %v1788 = vpack.c.b16 %v1068, %v1060
    %v1789 = vpack.c.b16 %v1069, %v1061
    %v1790 = vpack.c.b16 %v1070, %v1062
    %v1791 = vpack.c.b16 %v1071, %v1063
    %v1792 = vpack.c.b16 %v1072, %v1064
    %v1793 = vpack.c.b16 %v1081, %v1073
    %v1794 = vpack.c.b16 %v1082, %v1074
    %v1795 = vpack.c.b16 %v1083, %v1075
    %v1796 = vpack.c.b16 %v1084, %v1076
    %v1797 = vpack.c.b16 %v1085, %v1077
    %v1798 = vpack.c.b16 %v1086, %v1078
    %v1799 = vpack.c.b16 %v1087, %v1079
    %v1800 = vpack.c.b16 %v1088, %v1080
    %v1801 = vpack.c.b16 %v1097, %v1089
    %v1802 = vpack.c.b16 %v1098, %v1090
    %v1803 = vpack.c.b16 %v1099, %v1091
    %v1804 = vpack.c.b16 %v1100, %v1092
    %v1805 = vpack.c.b16 %v1101, %v1093
    %v1806 = vpack.c.b16 %v1102, %v1094
    %v1807 = vpack.c.b16 %v1103, %v1095
    %v1808 = vpack.c.b16 %v1104, %v1096
    %v1809 = vpack.c.b16 %v1113, %v1105
    %v1810 = vpack.c.b16 %v1114, %v1106
    %v1811 = vpack.c.b16 %v1115, %v1107
    %v1812 = vpack.c.b16 %v1116, %v1108
    %v1813 = vpack.c.b16 %v1117, %v1109
    %v1814 = vpack.c.b16 %v1118, %v1110
    %v1815 = vpack.c.b16 %v1119, %v1111
    %v1816 = vpack.c.b16 %v1120, %v1112
    %v1817 = vpack.c.b16 %v1129, %v1121
    %v1818 = vpack.c.b16 %v1130, %v1122
    %v1819 = vpack.c.b16 %v1131, %v1123
    %v1820 = vpack.c.b16 %v1132, %v1124
    %v1821 = vpack.c.b16 %v1133, %v1125
    %v1822 = vpack.c.b16 %v1134, %v1126
    %v1823 = vpack.c.b16 %v1135, %v1127
    %v1824 = vpack.c.b16 %v1136, %v1128
    %v1825 = vpack.c.b16 %v1145, %v1137
    %v1826 = vpack.c.b16 %v1146, %v1138
    %v1827 = vpack.c.b16 %v1147, %v1139
    %v1828 = vpack.c.b16 %v1148, %v1140
    %v1829 = vpack.c.b16 %v1149, %v1141
    %v1830 = vpack.c.b16 %v1150, %v1142
    %v1831 = vpack.c.b16 %v1151, %v1143
    %v1832 = vpack.c.b16 %v1152, %v1144
    %v1833 = vpack.c.b16 %v1161, %v1153
    %v1834 = vpack.c.b16 %v1162, %v1154
    %v1835 = vpack.c.b16 %v1163, %v1155
    %v1836 = vpack.c.b16 %v1164, %v1156
    %v1837 = vpack.c.b16 %v1165, %v1157
    %v1838 = vpack.c.b16 %v1166, %v1158
    %v1839 = vpack.c.b16 %v1167, %v1159
    %v1840 = vpack.c.b16 %v1168, %v1160
    %v1841 = vpack.c.b16 %v1177, %v1169
    %v1842 = vpack.c.b16 %v1178, %v1170
    %v1843 = vpack.c.b16 %v1179, %v1171
    %v1844 = vpack.c.b16 %v1180, %v1172
    %v1845 = vpack.c.b16 %v1181, %v1173
    %v1846 = vpack.c.b16 %v1182, %v1174
    %v1847 = vpack.c.b16 %v1183, %v1175
    %v1848 = vpack.c.b16 %v1184, %v1176
    %v1849 = vpack.c.b16 %v1193, %v1185
    %v1850 = vpack.c.b16 %v1194, %v1186
    %v1851 = vpack.c.b16 %v1195, %v1187
    %v1852 = vpack.c.b16 %v1196, %v1188
    %v1853 = vpack.c.b16 %v1197, %v1189
    %v1854 = vpack.c.b16 %v1198, %v1190
    %v1855 = vpack.c.b16 %v1199, %v1191
    %v1856 = vpack.c.b16 %v1200, %v1192
    %v1857 = vpack.c.b16 %v1209, %v1201
    %v1858 = vpack.c.b16 %v1210, %v1202
    %v1859 = vpack.c.b16 %v1211, %v1203
    %v1860 = vpack.c.b16 %v1212, %v1204
    %v1861 = vpack.c.b16 %v1213, %v1205
    %v1862 = vpack.c.b16 %v1214, %v1206
    %v1863 = vpack.c.b16 %v1215, %v1207
    %v1864 = vpack.c.b16 %v1216, %v1208
    %v1865 = vpack.c.b16 %v1225, %v1217
    %v1866 = vpack.c.b16 %v1226, %v1218
    %v1867 = vpack.c.b16 %v1227, %v1219
    %v1868 = vpack.c.b16 %v1228, %v1220
    %v1869 = vpack.c.b16 %v1229, %v1221
    %v1870 = vpack.c.b16 %v1230, %v1222
    %v1871 = vpack.c.b16 %v1231, %v1223
    %v1872 = vpack.c.b16 %v1232, %v1224
    %v1873 = vpack.c.b16 %v1241, %v1233
    %v1874 = vpack.c.b16 %v1242, %v1234
    %v1875 = vpack.c.b16 %v1243, %v1235
    %v1876 = vpack.c.b16 %v1244, %v1236
    %v1877 = vpack.c.b16 %v1245, %v1237
    %v1878 = vpack.c.b16 %v1246, %v1238
    %v1879 = vpack.c.b16 %v1247, %v1239
    %v1880 = vpack.c.b16 %v1248, %v1240
    %v1881 = vpack.c.b16 %v1257, %v1249
    %v1882 = vpack.c.b16 %v1258, %v1250
    %v1883 = vpack.c.b16 %v1259, %v1251
    %v1884 = vpack.c.b16 %v1260, %v1252
    %v1885 = vpack.c.b16 %v1261, %v1253
    %v1886 = vpack.c.b16 %v1262, %v1254
    %v1887 = vpack.c.b16 %v1263, %v1255
    %v1888 = vpack.c.b16 %v1264, %v1256
    %v1889 = vpack.c.b16 %v1273, %v1265
    %v1890 = vpack.c.b16 %v1274, %v1266
    %v1891 = vpack.c.b16 %v1275, %v1267
    %v1892 = vpack.c.b16 %v1276, %v1268
    %v1893 = vpack.c.b16 %v1277, %v1269
    %v1894 = vpack.c.b16 %v1278, %v1270
    %v1895 = vpack.c.b16 %v1279, %v1271
    %v1896 = vpack.c.b16 %v1280, %v1272
    %v1897 = vpack.c.b16 %v1289, %v1281
    %v1898 = vpack.c.b16 %v1290, %v1282
    %v1899 = vpack.c.b16 %v1291, %v1283
    %v1900 = vpack.c.b16 %v1292, %v1284
    %v1901 = vpack.c.b16 %v1293, %v1285
    %v1902 = vpack.c.b16 %v1294, %v1286
    %v1903 = vpack.c.b16 %v1295, %v1287
    %v1904 = vpack.c.b16 %v1296, %v1288
    %v1905 = vpack.c.b16 %v1305, %v1297
    %v1906 = vpack.c.b16 %v1306, %v1298
    %v1907 = vpack.c.b16 %v1307, %v1299
    %v1908 = vpack.c.b16 %v1308, %v1300
    %v1909 = vpack.c.b16 %v1309, %v1301
    %v1910 = vpack.c.b16 %v1310, %v1302
    %v1911 = vpack.c.b16 %v1311, %v1303
    %v1912 = vpack.c.b16 %v1312, %v1304
    %v1913 = vpack.c.b16 %v1321, %v1313
    %v1914 = vpack.c.b16 %v1322, %v1314
    %v1915 = vpack.c.b16 %v1323, %v1315
    %v1916 = vpack.c.b16 %v1324, %v1316
    %v1917 = vpack.c.b16 %v1325, %v1317
    %v1918 = vpack.c.b16 %v1326, %v1318
    %v1919 = vpack.c.b16 %v1327, %v1319
    %v1920 = vpack.c.b16 %v1328, %v1320
    %v1921 = vpack.c.b16 %v1337, %v1329
    %v1922 = vpack.c.b16 %v1338, %v1330
    %v1923 = vpack.c.b16 %v1339, %v1331
    %v1924 = vpack.c.b16 %v1340, %v1332
    %v1925 = vpack.c.b16 %v1341, %v1333
    %v1926 = vpack.c.b16 %v1342, %v1334
    %v1927 = vpack.c.b16 %v1343, %v1335
    %v1928 = vpack.c.b16 %v1344, %v1336
    %v1929 = vpack.c.b16 %v1353, %v1345
    %v1930 = vpack.c.b16 %v1354, %v1346
    %v1931 = vpack.c.b16 %v1355, %v1347
    %v1932 = vpack.c.b16 %v1356, %v1348
    %v1933 = vpack.c.b16 %v1357, %v1349
    %v1934 = vpack.c.b16 %v1358, %v1350
    %v1935 = vpack.c.b16 %v1359, %v1351
    %v1936 = vpack.c.b16 %v1360, %v1352
    %v1937 = vpack.c.b16 %v1369, %v1361
    %v1938 = vpack.c.b16 %v1370, %v1362
    %v1939 = vpack.c.b16 %v1371, %v1363
    %v1940 = vpack.c.b16 %v1372, %v1364
    %v1941 = vpack.c.b16 %v1373, %v1365
    %v1942 = vpack.c.b16 %v1374, %v1366
    %v1943 = vpack.c.b16 %v1375, %v1367
    %v1944 = vpack.c.b16 %v1376, %v1368
    %v1945 = vpack.c.b16 %v1385, %v1377
    %v1946 = vpack.c.b16 %v1386, %v1378
    %v1947 = vpack.c.b16 %v1387, %v1379
    %v1948 = vpack.c.b16 %v1388, %v1380
    %v1949 = vpack.c.b16 %v1389, %v1381
    %v1950 = vpack.c.b16 %v1390, %v1382
    %v1951 = vpack.c.b16 %v1391, %v1383
    %v1952 = vpack.c.b16 %v1392, %v1384
    %v1953 = vpack.c.b16 %v1401, %v1393
    %v1954 = vpack.c.b16 %v1402, %v1394
    %v1955 = vpack.c.b16 %v1403, %v1395
    %v1956 = vpack.c.b16 %v1404, %v1396
    %v1957 = vpack.c.b16 %v1405, %v1397
    %v1958 = vpack.c.b16 %v1406, %v1398
    %v1959 = vpack.c.b16 %v1407, %v1399
    %v1960 = vpack.c.b16 %v1408, %v1400
    %v1961 = vpack.c.b16 %v1417, %v1409
    %v1962 = vpack.c.b16 %v1418, %v1410
    %v1963 = vpack.c.b16 %v1419, %v1411
    %v1964 = vpack.c.b16 %v1420, %v1412
    %v1965 = vpack.c.b16 %v1421, %v1413
    %v1966 = vpack.c.b16 %v1422, %v1414
    %v1967 = vpack.c.b16 %v1423, %v1415
    %v1968 = vpack.c.b16 %v1424, %v1416
    %v1969 = vpack.c.b16 %v1433, %v1425
    %v1970 = vpack.c.b16 %v1434, %v1426
    %v1971 = vpack.c.b16 %v1435, %v1427
    %v1972 = vpack.c.b16 %v1436, %v1428
    %v1973 = vpack.c.b16 %v1437, %v1429
    %v1974 = vpack.c.b16 %v1438, %v1430
    %v1975 = vpack.c.b16 %v1439, %v1431
    %v1976 = vpack.c.b16 %v1440, %v1432
    %v1977 = vpack.c.b16 %v1449, %v1441
    %v1978 = vpack.c.b16 %v1450, %v1442
    %v1979 = vpack.c.b16 %v1451, %v1443
    %v1980 = vpack.c.b16 %v1452, %v1444
    %v1981 = vpack.c.b16 %v1453, %v1445
    %v1982 = vpack.c.b16 %v1454, %v1446
    %v1983 = vpack.c.b16 %v1455, %v1447
    %v1984 = vpack.c.b16 %v1456, %v1448
    %v1985 = vpack.c.b16 %v1465, %v1457
    %v1986 = vpack.c.b16 %v1466, %v1458
    %v1987 = vpack.c.b16 %v1467, %v1459
    %v1988 = vpack.c.b16 %v1468, %v1460
    %v1989 = vpack.c.b16 %v1469, %v1461
    %v1990 = vpack.c.b16 %v1470, %v1462
    %v1991 = vpack.c.b16 %v1471, %v1463
    %v1992 = vpack.c.b16 %v1472, %v1464
    %v1993 = vpack.c.b16 %v1481, %v1473
    %v1994 = vpack.c.b16 %v1482, %v1474
    %v1995 = vpack.c.b16 %v1483, %v1475
    %v1996 = vpack.c.b16 %v1484, %v1476
    %v1997 = vpack.c.b16 %v1485, %v1477
    %v1998 = vpack.c.b16 %v1486, %v1478
    %v1999 = vpack.c.b16 %v1487, %v1479
    %v2000 = vpack.c.b16 %v1488, %v1480
    %v2001 = vpack.c.b16 %v1497, %v1489
    %v2002 = vpack.c.b16 %v1498, %v1490
    %v2003 = vpack.c.b16 %v1499, %v1491
    %v2004 = vpack.c.b16 %v1500, %v1492
    %v2005 = vpack.c.b16 %v1501, %v1493
    %v2006 = vpack.c.b16 %v1502, %v1494
    %v2007 = vpack.c.b16 %v1503, %v1495
    %v2008 = vpack.c.b16 %v1504, %v1496
    %v2009 = vpack.c.b16 %v1513, %v1505
    %v2010 = vpack.c.b16 %v1514, %v1506
    %v2011 = vpack.c.b16 %v1515, %v1507
    %v2012 = vpack.c.b16 %v1516, %v1508
    %v2013 = vpack.c.b16 %v1517, %v1509
    %v2014 = vpack.c.b16 %v1518, %v1510
    %v2015 = vpack.c.b16 %v1519, %v1511
    %v2016 = vpack.c.b16 %v1520, %v1512
    %v2017 = vpack.c.b16 %v1529, %v1521
    %v2018 = vpack.c.b16 %v1530, %v1522
    %v2019 = vpack.c.b16 %v1531, %v1523
    %v2020 = vpack.c.b16 %v1532, %v1524
    %v2021 = vpack.c.b16 %v1533, %v1525
    %v2022 = vpack.c.b16 %v1534, %v1526
    %v2023 = vpack.c.b16 %v1535, %v1527
    %v2024 = vpack.c.b16 %v1536, %v1528
    %v2025 = vpack.c.b16 %v1545, %v1537
    %v2026 = vpack.c.b16 %v1546, %v1538
    %v2027 = vpack.c.b16 %v1547, %v1539
    %v2028 = vpack.c.b16 %v1548, %v1540
    %v2029 = vpack.c.b16 %v1549, %v1541
    %v2030 = vpack.c.b16 %v1550, %v1542
    %v2031 = vpack.c.b16 %v1551, %v1543
    %v2032 = vpack.c.b16 %v1552, %v1544
    %v2033 = vpack.c.b16 %v1561, %v1553
    %v2034 = vpack.c.b16 %v1562, %v1554
    %v2035 = vpack.c.b16 %v1563, %v1555
    %v2036 = vpack.c.b16 %v1564, %v1556
    %v2037 = vpack.c.b16 %v1565, %v1557
    %v2038 = vpack.c.b16 %v1566, %v1558
    %v2039 = vpack.c.b16 %v1567, %v1559
    %v2040 = vpack.c.b16 %v1568, %v1560
    %v2041 = vpack.c.b16 %v1577, %v1569
    %v2042 = vpack.c.b16 %v1578, %v1570
    %v2043 = vpack.c.b16 %v1579, %v1571
    %v2044 = vpack.c.b16 %v1580, %v1572
    %v2045 = vpack.c.b16 %v1581, %v1573
    %v2046 = vpack.c.b16 %v1582, %v1574
    %v2047 = vpack.c.b16 %v1583, %v1575
    %v2048 = vpack.c.b16 %v1584, %v1576
    %v2049 = vpack.c.b16 %v1593, %v1585
    %v2050 = vpack.c.b16 %v1594, %v1586
    %v2051 = vpack.c.b16 %v1595, %v1587
    %v2052 = vpack.c.b16 %v1596, %v1588
    %v2053 = vpack.c.b16 %v1597, %v1589
    %v2054 = vpack.c.b16 %v1598, %v1590
    %v2055 = vpack.c.b16 %v1599, %v1591
    %v2056 = vpack.c.b16 %v1600, %v1592
    %v2057 = vpack.c.b16 %v1609, %v1601
    %v2058 = vpack.c.b16 %v1610, %v1602
    %v2059 = vpack.c.b16 %v1611, %v1603
    %v2060 = vpack.c.b16 %v1612, %v1604
    %v2061 = vpack.c.b16 %v1613, %v1605
    %v2062 = vpack.c.b16 %v1614, %v1606
    %v2063 = vpack.c.b16 %v1615, %v1607
    %v2064 = vpack.c.b16 %v1616, %v1608
    %v2065 = vpack.c.b16 %v1625, %v1617
    %v2066 = vpack.c.b16 %v1626, %v1618
    %v2067 = vpack.c.b16 %v1627, %v1619
    %v2068 = vpack.c.b16 %v1628, %v1620
    %v2069 = vpack.c.b16 %v1629, %v1621
    %v2070 = vpack.c.b16 %v1630, %v1622
    %v2071 = vpack.c.b16 %v1631, %v1623
    %v2072 = vpack.c.b16 %v1632, %v1624
    %v2073 = vpack.c.b16 %v1641, %v1633
    %v2074 = vpack.c.b16 %v1642, %v1634
    %v2075 = vpack.c.b16 %v1643, %v1635
    %v2076 = vpack.c.b16 %v1644, %v1636
    %v2077 = vpack.c.b16 %v1645, %v1637
    %v2078 = vpack.c.b16 %v1646, %v1638
    %v2079 = vpack.c.b16 %v1647, %v1639
    %v2080 = vpack.c.b16 %v1648, %v1640
    %v2081 = vpack.c.b16 %v1657, %v1649
    %v2082 = vpack.c.b16 %v1658, %v1650
    %v2083 = vpack.c.b16 %v1659, %v1651
    %v2084 = vpack.c.b16 %v1660, %v1652
    %v2085 = vpack.c.b16 %v1661, %v1653
    %v2086 = vpack.c.b16 %v1662, %v1654
    %v2087 = vpack.c.b16 %v1663, %v1655
    %v2088 = vpack.c.b16 %v1664, %v1656
    %v2089 = vpack.c.b16 %v1673, %v1665
    %v2090 = vpack.c.b16 %v1674, %v1666
    %v2091 = vpack.c.b16 %v1675, %v1667
    %v2092 = vpack.c.b16 %v1676, %v1668
    %v2093 = vpack.c.b16 %v1677, %v1669
    %v2094 = vpack.c.b16 %v1678, %v1670
    %v2095 = vpack.c.b16 %v1679, %v1671
    %v2096 = vpack.c.b16 %v1680, %v1672
    %v2097 = vpack.c.b16 %v1689, %v1681
    %v2098 = vpack.c.b16 %v1690, %v1682
    %v2099 = vpack.c.b16 %v1691, %v1683
    %v2100 = vpack.c.b16 %v1692, %v1684
    %v2101 = vpack.c.b16 %v1693, %v1685
    %v2102 = vpack.c.b16 %v1694, %v1686
    %v2103 = vpack.c.b16 %v1695, %v1687
    %v2104 = vpack.c.b16 %v1696, %v1688
    %v2105 = vpack.c.b16 %v1705, %v1697
    %v2106 = vpack.c.b16 %v1706, %v1698
    %v2107 = vpack.c.b16 %v1707, %v1699
    %v2108 = vpack.c.b16 %v1708, %v1700
    %v2109 = vpack.c.b16 %v1709, %v1701
    %v2110 = vpack.c.b16 %v1710, %v1702
    %v2111 = vpack.c.b16 %v1711, %v1703
    %v2112 = vpack.c.b16 %v1712, %v1704
    %v2113 = vpack.c.b16 %v1721, %v1713
    %v2114 = vpack.c.b16 %v1722, %v1714
    %v2115 = vpack.c.b16 %v1723, %v1715
    %v2116 = vpack.c.b16 %v1724, %v1716
    %v2117 = vpack.c.b16 %v1725, %v1717
    %v2118 = vpack.c.b16 %v1726, %v1718
    %v2119 = vpack.c.b16 %v1727, %v1719
    %v2120 = vpack.c.b16 %v1728, %v1720
    %vm2513 = vcmask 130048
    %v2515 = vsel %vm2513, %v142, 0
    %2517 = vmatpush.bf16.msra.mxu0 %v1785
    %2518 = vmatpush.bf16.msra.mxu0 %v1777
    %2519 = vmatpush.bf16.msra.mxu0 %v1769
    %2520 = vmatpush.bf16.msra.mxu0 %v1761
    %2521 = vmatpush.bf16.msra.mxu0 %v1753
    %2522 = vmatpush.bf16.msra.mxu0 %v1745
    %2523 = vmatpush.bf16.msra.mxu0 %v1737
    %2524 = vmatpush.bf16.msra.mxu0 %v1729
    %2525 = vmatmul.bf16.gmra.mxu0 %v136
    %v2526 = vpop.f32.mrf.mxu0
    %v2527 = vadd.f32 %v537, %v2526
    %v2528 = vpop.f32.mrf.mxu0
    %2529 = vdwg.mxu0
    %2530 = vmatpush.bf16.msra.mxu0 %v1849
    %2531 = vmatpush.bf16.msra.mxu0 %v1841
    %2532 = vmatpush.bf16.msra.mxu0 %v1833
    %2533 = vmatpush.bf16.msra.mxu0 %v1825
    %2534 = vmatpush.bf16.msra.mxu0 %v1817
    %2535 = vmatpush.bf16.msra.mxu0 %v1809
    %2536 = vmatpush.bf16.msra.mxu0 %v1801
    %2537 = vmatpush.bf16.msra.mxu0 %v1793
    %2538 = vmatmul.bf16.gmra.mxu0 %v137
    %v2539 = vpop.f32.mrf.mxu0
    %v2540 = vadd.f32 %v2527, %v2539
    %v2541 = vpop.f32.mrf.mxu0
    %2542 = vdwg.mxu0
    %2543 = vmatpush.bf16.msra.mxu0 %v1913
    %2544 = vmatpush.bf16.msra.mxu0 %v1905
    %2545 = vmatpush.bf16.msra.mxu0 %v1897
    %2546 = vmatpush.bf16.msra.mxu0 %v1889
    %2547 = vmatpush.bf16.msra.mxu0 %v1881
    %2548 = vmatpush.bf16.msra.mxu0 %v1873
    %2549 = vmatpush.bf16.msra.mxu0 %v1865
    %2550 = vmatpush.bf16.msra.mxu0 %v1857
    %2551 = vmatmul.bf16.gmra.mxu0 %v138
    %v2552 = vpop.f32.mrf.mxu0
    %v2553 = vadd.f32 %v2540, %v2552
    %v2554 = vpop.f32.mrf.mxu0
    %2555 = vdwg.mxu0
    %2556 = vmatpush.bf16.msra.mxu0 %v1977
    %2557 = vmatpush.bf16.msra.mxu0 %v1969
    %2558 = vmatpush.bf16.msra.mxu0 %v1961
    %2559 = vmatpush.bf16.msra.mxu0 %v1953
    %2560 = vmatpush.bf16.msra.mxu0 %v1945
    %2561 = vmatpush.bf16.msra.mxu0 %v1937
    %2562 = vmatpush.bf16.msra.mxu0 %v1929
    %2563 = vmatpush.bf16.msra.mxu0 %v1921
    %2564 = vmatmul.bf16.gmra.mxu0 %v139
    %v2565 = vpop.f32.mrf.mxu0
    %v2566 = vadd.f32 %v2553, %v2565
    %v2567 = vpop.f32.mrf.mxu0
    %2568 = vdwg.mxu0
    %2569 = vmatpush.bf16.msra.mxu0 %v2041
    %2570 = vmatpush.bf16.msra.mxu0 %v2033
    %2571 = vmatpush.bf16.msra.mxu0 %v2025
    %2572 = vmatpush.bf16.msra.mxu0 %v2017
    %2573 = vmatpush.bf16.msra.mxu0 %v2009
    %2574 = vmatpush.bf16.msra.mxu0 %v2001
    %2575 = vmatpush.bf16.msra.mxu0 %v1993
    %2576 = vmatpush.bf16.msra.mxu0 %v1985
    %2577 = vmatmul.bf16.gmra.mxu0 %v140
    %v2578 = vpop.f32.mrf.mxu0
    %v2579 = vadd.f32 %v2566, %v2578
    %v2580 = vpop.f32.mrf.mxu0
    %2581 = vdwg.mxu0
    %2582 = vmatpush.bf16.msra.mxu0 %v2105
    %2583 = vmatpush.bf16.msra.mxu0 %v2097
    %2584 = vmatpush.bf16.msra.mxu0 %v2089
    %2585 = vmatpush.bf16.msra.mxu0 %v2081
    %2586 = vmatpush.bf16.msra.mxu0 %v2073
    %2587 = vmatpush.bf16.msra.mxu0 %v2065
    %2588 = vmatpush.bf16.msra.mxu0 %v2057
    %2589 = vmatpush.bf16.msra.mxu0 %v2049
    %2590 = vmatmul.bf16.gmra.mxu0 %v141
    %v2591 = vpop.f32.mrf.mxu0
    %v2592 = vadd.f32 %v2579, %v2591
    %v2593 = vpop.f32.mrf.mxu0
    %2594 = vdwg.mxu0
    %2595 = vmatpush.bf16.msra.mxu0 0
    %2596 = vmatpush.bf16.msra.mxu0 0
    %2597 = vmatpush.bf16.msra.mxu0 0
    %2598 = vmatpush.bf16.msra.mxu0 0
    %2599 = vmatpush.bf16.msra.mxu0 0
    %2600 = vmatpush.bf16.msra.mxu0 0
    %2601 = vmatpush.bf16.msra.mxu0 0
    %2602 = vmatpush.bf16.msra.mxu0 %v2113
    %2603 = vmatmul.bf16.gmra.mxu0 %v2515
    %v2604 = vpop.f32.mrf.mxu0
    %v2605 = vadd.f32 %v2592, %v2604
    %v2606 = vpop.f32.mrf.mxu0
    %2607 = vdwg.mxu0
    %2608 = vmatpush.bf16.msra.mxu0 %v1786
    %2609 = vmatpush.bf16.msra.mxu0 %v1778
    %2610 = vmatpush.bf16.msra.mxu0 %v1770
    %2611 = vmatpush.bf16.msra.mxu0 %v1762
    %2612 = vmatpush.bf16.msra.mxu0 %v1754
    %2613 = vmatpush.bf16.msra.mxu0 %v1746
    %2614 = vmatpush.bf16.msra.mxu0 %v1738
    %2615 = vmatpush.bf16.msra.mxu0 %v1730
    %2616 = vmatmul.bf16.gmra.mxu0 %v136
    %v2617 = vpop.f32.mrf.mxu0
    %v2618 = vadd.f32 %v538, %v2617
    %v2619 = vpop.f32.mrf.mxu0
    %2620 = vdwg.mxu0
    %2621 = vmatpush.bf16.msra.mxu0 %v1850
    %2622 = vmatpush.bf16.msra.mxu0 %v1842
    %2623 = vmatpush.bf16.msra.mxu0 %v1834
    %2624 = vmatpush.bf16.msra.mxu0 %v1826
    %2625 = vmatpush.bf16.msra.mxu0 %v1818
    %2626 = vmatpush.bf16.msra.mxu0 %v1810
    %2627 = vmatpush.bf16.msra.mxu0 %v1802
    %2628 = vmatpush.bf16.msra.mxu0 %v1794
    %2629 = vmatmul.bf16.gmra.mxu0 %v137
    %v2630 = vpop.f32.mrf.mxu0
    %v2631 = vadd.f32 %v2618, %v2630
    %v2632 = vpop.f32.mrf.mxu0
    %2633 = vdwg.mxu0
    %2634 = vmatpush.bf16.msra.mxu0 %v1914
    %2635 = vmatpush.bf16.msra.mxu0 %v1906
    %2636 = vmatpush.bf16.msra.mxu0 %v1898
    %2637 = vmatpush.bf16.msra.mxu0 %v1890
    %2638 = vmatpush.bf16.msra.mxu0 %v1882
    %2639 = vmatpush.bf16.msra.mxu0 %v1874
    %2640 = vmatpush.bf16.msra.mxu0 %v1866
    %2641 = vmatpush.bf16.msra.mxu0 %v1858
    %2642 = vmatmul.bf16.gmra.mxu0 %v138
    %v2643 = vpop.f32.mrf.mxu0
    %v2644 = vadd.f32 %v2631, %v2643
    %v2645 = vpop.f32.mrf.mxu0
    %2646 = vdwg.mxu0
    %2647 = vmatpush.bf16.msra.mxu0 %v1978
    %2648 = vmatpush.bf16.msra.mxu0 %v1970
    %2649 = vmatpush.bf16.msra.mxu0 %v1962
    %2650 = vmatpush.bf16.msra.mxu0 %v1954
    %2651 = vmatpush.bf16.msra.mxu0 %v1946
    %2652 = vmatpush.bf16.msra.mxu0 %v1938
    %2653 = vmatpush.bf16.msra.mxu0 %v1930
    %2654 = vmatpush.bf16.msra.mxu0 %v1922
    %2655 = vmatmul.bf16.gmra.mxu0 %v139
    %v2656 = vpop.f32.mrf.mxu0
    %v2657 = vadd.f32 %v2644, %v2656
    %v2658 = vpop.f32.mrf.mxu0
    %2659 = vdwg.mxu0
    %2660 = vmatpush.bf16.msra.mxu0 %v2042
    %2661 = vmatpush.bf16.msra.mxu0 %v2034
    %2662 = vmatpush.bf16.msra.mxu0 %v2026
    %2663 = vmatpush.bf16.msra.mxu0 %v2018
    %2664 = vmatpush.bf16.msra.mxu0 %v2010
    %2665 = vmatpush.bf16.msra.mxu0 %v2002
    %2666 = vmatpush.bf16.msra.mxu0 %v1994
    %2667 = vmatpush.bf16.msra.mxu0 %v1986
    %2668 = vmatmul.bf16.gmra.mxu0 %v140
    %v2669 = vpop.f32.mrf.mxu0
    %v2670 = vadd.f32 %v2657, %v2669
    %v2671 = vpop.f32.mrf.mxu0
    %2672 = vdwg.mxu0
    %2673 = vmatpush.bf16.msra.mxu0 %v2106
    %2674 = vmatpush.bf16.msra.mxu0 %v2098
    %2675 = vmatpush.bf16.msra.mxu0 %v2090
    %2676 = vmatpush.bf16.msra.mxu0 %v2082
    %2677 = vmatpush.bf16.msra.mxu0 %v2074
    %2678 = vmatpush.bf16.msra.mxu0 %v2066
    %2679 = vmatpush.bf16.msra.mxu0 %v2058
    %2680 = vmatpush.bf16.msra.mxu0 %v2050
    %2681 = vmatmul.bf16.gmra.mxu0 %v141
    %v2682 = vpop.f32.mrf.mxu0
    %v2683 = vadd.f32 %v2670, %v2682
    %v2684 = vpop.f32.mrf.mxu0
    %2685 = vdwg.mxu0
    %2686 = vmatpush.bf16.msra.mxu0 0
    %2687 = vmatpush.bf16.msra.mxu0 0
    %2688 = vmatpush.bf16.msra.mxu0 0
    %2689 = vmatpush.bf16.msra.mxu0 0
    %2690 = vmatpush.bf16.msra.mxu0 0
    %2691 = vmatpush.bf16.msra.mxu0 0
    %2692 = vmatpush.bf16.msra.mxu0 0
    %2693 = vmatpush.bf16.msra.mxu0 %v2114
    %2694 = vmatmul.bf16.gmra.mxu0 %v2515
    %v2695 = vpop.f32.mrf.mxu0
    %v2696 = vadd.f32 %v2683, %v2695
    %v2697 = vpop.f32.mrf.mxu0
    %2698 = vdwg.mxu0
    %2699 = vmatpush.bf16.msra.mxu0 %v1787
    %2700 = vmatpush.bf16.msra.mxu0 %v1779
    %2701 = vmatpush.bf16.msra.mxu0 %v1771
    %2702 = vmatpush.bf16.msra.mxu0 %v1763
    %2703 = vmatpush.bf16.msra.mxu0 %v1755
    %2704 = vmatpush.bf16.msra.mxu0 %v1747
    %2705 = vmatpush.bf16.msra.mxu0 %v1739
    %2706 = vmatpush.bf16.msra.mxu0 %v1731
    %2707 = vmatmul.bf16.gmra.mxu0 %v136
    %v2708 = vpop.f32.mrf.mxu0
    %v2709 = vadd.f32 %v539, %v2708
    %v2710 = vpop.f32.mrf.mxu0
    %2711 = vdwg.mxu0
    %2712 = vmatpush.bf16.msra.mxu0 %v1851
    %2713 = vmatpush.bf16.msra.mxu0 %v1843
    %2714 = vmatpush.bf16.msra.mxu0 %v1835
    %2715 = vmatpush.bf16.msra.mxu0 %v1827
    %2716 = vmatpush.bf16.msra.mxu0 %v1819
    %2717 = vmatpush.bf16.msra.mxu0 %v1811
    %2718 = vmatpush.bf16.msra.mxu0 %v1803
    %2719 = vmatpush.bf16.msra.mxu0 %v1795
    %2720 = vmatmul.bf16.gmra.mxu0 %v137
    %v2721 = vpop.f32.mrf.mxu0
    %v2722 = vadd.f32 %v2709, %v2721
    %v2723 = vpop.f32.mrf.mxu0
    %2724 = vdwg.mxu0
    %2725 = vmatpush.bf16.msra.mxu0 %v1915
    %2726 = vmatpush.bf16.msra.mxu0 %v1907
    %2727 = vmatpush.bf16.msra.mxu0 %v1899
    %2728 = vmatpush.bf16.msra.mxu0 %v1891
    %2729 = vmatpush.bf16.msra.mxu0 %v1883
    %2730 = vmatpush.bf16.msra.mxu0 %v1875
    %2731 = vmatpush.bf16.msra.mxu0 %v1867
    %2732 = vmatpush.bf16.msra.mxu0 %v1859
    %2733 = vmatmul.bf16.gmra.mxu0 %v138
    %v2734 = vpop.f32.mrf.mxu0
    %v2735 = vadd.f32 %v2722, %v2734
    %v2736 = vpop.f32.mrf.mxu0
    %2737 = vdwg.mxu0
    %2738 = vmatpush.bf16.msra.mxu0 %v1979
    %2739 = vmatpush.bf16.msra.mxu0 %v1971
    %2740 = vmatpush.bf16.msra.mxu0 %v1963
    %2741 = vmatpush.bf16.msra.mxu0 %v1955
    %2742 = vmatpush.bf16.msra.mxu0 %v1947
    %2743 = vmatpush.bf16.msra.mxu0 %v1939
    %2744 = vmatpush.bf16.msra.mxu0 %v1931
    %2745 = vmatpush.bf16.msra.mxu0 %v1923
    %2746 = vmatmul.bf16.gmra.mxu0 %v139
    %v2747 = vpop.f32.mrf.mxu0
    %v2748 = vadd.f32 %v2735, %v2747
    %v2749 = vpop.f32.mrf.mxu0
    %2750 = vdwg.mxu0
    %2751 = vmatpush.bf16.msra.mxu0 %v2043
    %2752 = vmatpush.bf16.msra.mxu0 %v2035
    %2753 = vmatpush.bf16.msra.mxu0 %v2027
    %2754 = vmatpush.bf16.msra.mxu0 %v2019
    %2755 = vmatpush.bf16.msra.mxu0 %v2011
    %2756 = vmatpush.bf16.msra.mxu0 %v2003
    %2757 = vmatpush.bf16.msra.mxu0 %v1995
    %2758 = vmatpush.bf16.msra.mxu0 %v1987
    %2759 = vmatmul.bf16.gmra.mxu0 %v140
    %v2760 = vpop.f32.mrf.mxu0
    %v2761 = vadd.f32 %v2748, %v2760
    %v2762 = vpop.f32.mrf.mxu0
    %2763 = vdwg.mxu0
    %2764 = vmatpush.bf16.msra.mxu0 %v2107
    %2765 = vmatpush.bf16.msra.mxu0 %v2099
    %2766 = vmatpush.bf16.msra.mxu0 %v2091
    %2767 = vmatpush.bf16.msra.mxu0 %v2083
    %2768 = vmatpush.bf16.msra.mxu0 %v2075
    %2769 = vmatpush.bf16.msra.mxu0 %v2067
    %2770 = vmatpush.bf16.msra.mxu0 %v2059
    %2771 = vmatpush.bf16.msra.mxu0 %v2051
    %2772 = vmatmul.bf16.gmra.mxu0 %v141
    %v2773 = vpop.f32.mrf.mxu0
    %v2774 = vadd.f32 %v2761, %v2773
    %v2775 = vpop.f32.mrf.mxu0
    %2776 = vdwg.mxu0
    %2777 = vmatpush.bf16.msra.mxu0 0
    %2778 = vmatpush.bf16.msra.mxu0 0
    %2779 = vmatpush.bf16.msra.mxu0 0
    %2780 = vmatpush.bf16.msra.mxu0 0
    %2781 = vmatpush.bf16.msra.mxu0 0
    %2782 = vmatpush.bf16.msra.mxu0 0
    %2783 = vmatpush.bf16.msra.mxu0 0
    %2784 = vmatpush.bf16.msra.mxu0 %v2115
    %2785 = vmatmul.bf16.gmra.mxu0 %v2515
    %v2786 = vpop.f32.mrf.mxu0
    %v2787 = vadd.f32 %v2774, %v2786
    %v2788 = vpop.f32.mrf.mxu0
    %2789 = vdwg.mxu0
    %2790 = vmatpush.bf16.msra.mxu0 %v1788
    %2791 = vmatpush.bf16.msra.mxu0 %v1780
    %2792 = vmatpush.bf16.msra.mxu0 %v1772
    %2793 = vmatpush.bf16.msra.mxu0 %v1764
    %2794 = vmatpush.bf16.msra.mxu0 %v1756
    %2795 = vmatpush.bf16.msra.mxu0 %v1748
    %2796 = vmatpush.bf16.msra.mxu0 %v1740
    %2797 = vmatpush.bf16.msra.mxu0 %v1732
    %2798 = vmatmul.bf16.gmra.mxu0 %v136
    %v2799 = vpop.f32.mrf.mxu0
    %v2800 = vadd.f32 %v540, %v2799
    %v2801 = vpop.f32.mrf.mxu0
    %2802 = vdwg.mxu0
    %2803 = vmatpush.bf16.msra.mxu0 %v1852
    %2804 = vmatpush.bf16.msra.mxu0 %v1844
    %2805 = vmatpush.bf16.msra.mxu0 %v1836
    %2806 = vmatpush.bf16.msra.mxu0 %v1828
    %2807 = vmatpush.bf16.msra.mxu0 %v1820
    %2808 = vmatpush.bf16.msra.mxu0 %v1812
    %2809 = vmatpush.bf16.msra.mxu0 %v1804
    %2810 = vmatpush.bf16.msra.mxu0 %v1796
    %2811 = vmatmul.bf16.gmra.mxu0 %v137
    %v2812 = vpop.f32.mrf.mxu0
    %v2813 = vadd.f32 %v2800, %v2812
    %v2814 = vpop.f32.mrf.mxu0
    %2815 = vdwg.mxu0
    %2816 = vmatpush.bf16.msra.mxu0 %v1916
    %2817 = vmatpush.bf16.msra.mxu0 %v1908
    %2818 = vmatpush.bf16.msra.mxu0 %v1900
    %2819 = vmatpush.bf16.msra.mxu0 %v1892
    %2820 = vmatpush.bf16.msra.mxu0 %v1884
    %2821 = vmatpush.bf16.msra.mxu0 %v1876
    %2822 = vmatpush.bf16.msra.mxu0 %v1868
    %2823 = vmatpush.bf16.msra.mxu0 %v1860
    %2824 = vmatmul.bf16.gmra.mxu0 %v138
    %v2825 = vpop.f32.mrf.mxu0
    %v2826 = vadd.f32 %v2813, %v2825
    %v2827 = vpop.f32.mrf.mxu0
    %2828 = vdwg.mxu0
    %2829 = vmatpush.bf16.msra.mxu0 %v1980
    %2830 = vmatpush.bf16.msra.mxu0 %v1972
    %2831 = vmatpush.bf16.msra.mxu0 %v1964
    %2832 = vmatpush.bf16.msra.mxu0 %v1956
    %2833 = vmatpush.bf16.msra.mxu0 %v1948
    %2834 = vmatpush.bf16.msra.mxu0 %v1940
    %2835 = vmatpush.bf16.msra.mxu0 %v1932
    %2836 = vmatpush.bf16.msra.mxu0 %v1924
    %2837 = vmatmul.bf16.gmra.mxu0 %v139
    %v2838 = vpop.f32.mrf.mxu0
    %v2839 = vadd.f32 %v2826, %v2838
    %v2840 = vpop.f32.mrf.mxu0
    %2841 = vdwg.mxu0
    %2842 = vmatpush.bf16.msra.mxu0 %v2044
    %2843 = vmatpush.bf16.msra.mxu0 %v2036
    %2844 = vmatpush.bf16.msra.mxu0 %v2028
    %2845 = vmatpush.bf16.msra.mxu0 %v2020
    %2846 = vmatpush.bf16.msra.mxu0 %v2012
    %2847 = vmatpush.bf16.msra.mxu0 %v2004
    %2848 = vmatpush.bf16.msra.mxu0 %v1996
    %2849 = vmatpush.bf16.msra.mxu0 %v1988
    %2850 = vmatmul.bf16.gmra.mxu0 %v140
    %v2851 = vpop.f32.mrf.mxu0
    %v2852 = vadd.f32 %v2839, %v2851
    %v2853 = vpop.f32.mrf.mxu0
    %2854 = vdwg.mxu0
    %2855 = vmatpush.bf16.msra.mxu0 %v2108
    %2856 = vmatpush.bf16.msra.mxu0 %v2100
    %2857 = vmatpush.bf16.msra.mxu0 %v2092
    %2858 = vmatpush.bf16.msra.mxu0 %v2084
    %2859 = vmatpush.bf16.msra.mxu0 %v2076
    %2860 = vmatpush.bf16.msra.mxu0 %v2068
    %2861 = vmatpush.bf16.msra.mxu0 %v2060
    %2862 = vmatpush.bf16.msra.mxu0 %v2052
    %2863 = vmatmul.bf16.gmra.mxu0 %v141
    %v2864 = vpop.f32.mrf.mxu0
    %v2865 = vadd.f32 %v2852, %v2864
    %v2866 = vpop.f32.mrf.mxu0
    %2867 = vdwg.mxu0
    %2868 = vmatpush.bf16.msra.mxu0 0
    %2869 = vmatpush.bf16.msra.mxu0 0
    %2870 = vmatpush.bf16.msra.mxu0 0
    %2871 = vmatpush.bf16.msra.mxu0 0
    %2872 = vmatpush.bf16.msra.mxu0 0
    %2873 = vmatpush.bf16.msra.mxu0 0
    %2874 = vmatpush.bf16.msra.mxu0 0
    %2875 = vmatpush.bf16.msra.mxu0 %v2116
    %2876 = vmatmul.bf16.gmra.mxu0 %v2515
    %v2877 = vpop.f32.mrf.mxu0
    %v2878 = vadd.f32 %v2865, %v2877
    %v2879 = vpop.f32.mrf.mxu0
    %2880 = vdwg.mxu0
    %2881 = vmatpush.bf16.msra.mxu0 %v1789
    %2882 = vmatpush.bf16.msra.mxu0 %v1781
    %2883 = vmatpush.bf16.msra.mxu0 %v1773
    %2884 = vmatpush.bf16.msra.mxu0 %v1765
    %2885 = vmatpush.bf16.msra.mxu0 %v1757
    %2886 = vmatpush.bf16.msra.mxu0 %v1749
    %2887 = vmatpush.bf16.msra.mxu0 %v1741
    %2888 = vmatpush.bf16.msra.mxu0 %v1733
    %2889 = vmatmul.bf16.gmra.mxu0 %v136
    %v2890 = vpop.f32.mrf.mxu0
    %v2891 = vadd.f32 %v541, %v2890
    %v2892 = vpop.f32.mrf.mxu0
    %2893 = vdwg.mxu0
    %2894 = vmatpush.bf16.msra.mxu0 %v1853
    %2895 = vmatpush.bf16.msra.mxu0 %v1845
    %2896 = vmatpush.bf16.msra.mxu0 %v1837
    %2897 = vmatpush.bf16.msra.mxu0 %v1829
    %2898 = vmatpush.bf16.msra.mxu0 %v1821
    %2899 = vmatpush.bf16.msra.mxu0 %v1813
    %2900 = vmatpush.bf16.msra.mxu0 %v1805
    %2901 = vmatpush.bf16.msra.mxu0 %v1797
    %2902 = vmatmul.bf16.gmra.mxu0 %v137
    %v2903 = vpop.f32.mrf.mxu0
    %v2904 = vadd.f32 %v2891, %v2903
    %v2905 = vpop.f32.mrf.mxu0
    %2906 = vdwg.mxu0
    %2907 = vmatpush.bf16.msra.mxu0 %v1917
    %2908 = vmatpush.bf16.msra.mxu0 %v1909
    %2909 = vmatpush.bf16.msra.mxu0 %v1901
    %2910 = vmatpush.bf16.msra.mxu0 %v1893
    %2911 = vmatpush.bf16.msra.mxu0 %v1885
    %2912 = vmatpush.bf16.msra.mxu0 %v1877
    %2913 = vmatpush.bf16.msra.mxu0 %v1869
    %2914 = vmatpush.bf16.msra.mxu0 %v1861
    %2915 = vmatmul.bf16.gmra.mxu0 %v138
    %v2916 = vpop.f32.mrf.mxu0
    %v2917 = vadd.f32 %v2904, %v2916
    %v2918 = vpop.f32.mrf.mxu0
    %2919 = vdwg.mxu0
    %2920 = vmatpush.bf16.msra.mxu0 %v1981
    %2921 = vmatpush.bf16.msra.mxu0 %v1973
    %2922 = vmatpush.bf16.msra.mxu0 %v1965
    %2923 = vmatpush.bf16.msra.mxu0 %v1957
    %2924 = vmatpush.bf16.msra.mxu0 %v1949
    %2925 = vmatpush.bf16.msra.mxu0 %v1941
    %2926 = vmatpush.bf16.msra.mxu0 %v1933
    %2927 = vmatpush.bf16.msra.mxu0 %v1925
    %2928 = vmatmul.bf16.gmra.mxu0 %v139
    %v2929 = vpop.f32.mrf.mxu0
    %v2930 = vadd.f32 %v2917, %v2929
    %v2931 = vpop.f32.mrf.mxu0
    %2932 = vdwg.mxu0
    %2933 = vmatpush.bf16.msra.mxu0 %v2045
    %2934 = vmatpush.bf16.msra.mxu0 %v2037
    %2935 = vmatpush.bf16.msra.mxu0 %v2029
    %2936 = vmatpush.bf16.msra.mxu0 %v2021
    %2937 = vmatpush.bf16.msra.mxu0 %v2013
    %2938 = vmatpush.bf16.msra.mxu0 %v2005
    %2939 = vmatpush.bf16.msra.mxu0 %v1997
    %2940 = vmatpush.bf16.msra.mxu0 %v1989
    %2941 = vmatmul.bf16.gmra.mxu0 %v140
    %v2942 = vpop.f32.mrf.mxu0
    %v2943 = vadd.f32 %v2930, %v2942
    %v2944 = vpop.f32.mrf.mxu0
    %2945 = vdwg.mxu0
    %2946 = vmatpush.bf16.msra.mxu0 %v2109
    %2947 = vmatpush.bf16.msra.mxu0 %v2101
    %2948 = vmatpush.bf16.msra.mxu0 %v2093
    %2949 = vmatpush.bf16.msra.mxu0 %v2085
    %2950 = vmatpush.bf16.msra.mxu0 %v2077
    %2951 = vmatpush.bf16.msra.mxu0 %v2069
    %2952 = vmatpush.bf16.msra.mxu0 %v2061
    %2953 = vmatpush.bf16.msra.mxu0 %v2053
    %2954 = vmatmul.bf16.gmra.mxu0 %v141
    %v2955 = vpop.f32.mrf.mxu0
    %v2956 = vadd.f32 %v2943, %v2955
    %v2957 = vpop.f32.mrf.mxu0
    %2958 = vdwg.mxu0
    %2959 = vmatpush.bf16.msra.mxu0 0
    %2960 = vmatpush.bf16.msra.mxu0 0
    %2961 = vmatpush.bf16.msra.mxu0 0
    %2962 = vmatpush.bf16.msra.mxu0 0
    %2963 = vmatpush.bf16.msra.mxu0 0
    %2964 = vmatpush.bf16.msra.mxu0 0
    %2965 = vmatpush.bf16.msra.mxu0 0
    %2966 = vmatpush.bf16.msra.mxu0 %v2117
    %2967 = vmatmul.bf16.gmra.mxu0 %v2515
    %v2968 = vpop.f32.mrf.mxu0
    %v2969 = vadd.f32 %v2956, %v2968
    %v2970 = vpop.f32.mrf.mxu0
    %2971 = vdwg.mxu0
    %2972 = vmatpush.bf16.msra.mxu0 %v1790
    %2973 = vmatpush.bf16.msra.mxu0 %v1782
    %2974 = vmatpush.bf16.msra.mxu0 %v1774
    %2975 = vmatpush.bf16.msra.mxu0 %v1766
    %2976 = vmatpush.bf16.msra.mxu0 %v1758
    %2977 = vmatpush.bf16.msra.mxu0 %v1750
    %2978 = vmatpush.bf16.msra.mxu0 %v1742
    %2979 = vmatpush.bf16.msra.mxu0 %v1734
    %2980 = vmatmul.bf16.gmra.mxu0 %v136
    %v2981 = vpop.f32.mrf.mxu0
    %v2982 = vadd.f32 %v542, %v2981
    %v2983 = vpop.f32.mrf.mxu0
    %2984 = vdwg.mxu0
    %2985 = vmatpush.bf16.msra.mxu0 %v1854
    %2986 = vmatpush.bf16.msra.mxu0 %v1846
    %2987 = vmatpush.bf16.msra.mxu0 %v1838
    %2988 = vmatpush.bf16.msra.mxu0 %v1830
    %2989 = vmatpush.bf16.msra.mxu0 %v1822
    %2990 = vmatpush.bf16.msra.mxu0 %v1814
    %2991 = vmatpush.bf16.msra.mxu0 %v1806
    %2992 = vmatpush.bf16.msra.mxu0 %v1798
    %2993 = vmatmul.bf16.gmra.mxu0 %v137
    %v2994 = vpop.f32.mrf.mxu0
    %v2995 = vadd.f32 %v2982, %v2994
    %v2996 = vpop.f32.mrf.mxu0
    %2997 = vdwg.mxu0
    %2998 = vmatpush.bf16.msra.mxu0 %v1918
    %2999 = vmatpush.bf16.msra.mxu0 %v1910
    %3000 = vmatpush.bf16.msra.mxu0 %v1902
    %3001 = vmatpush.bf16.msra.mxu0 %v1894
    %3002 = vmatpush.bf16.msra.mxu0 %v1886
    %3003 = vmatpush.bf16.msra.mxu0 %v1878
    %3004 = vmatpush.bf16.msra.mxu0 %v1870
    %3005 = vmatpush.bf16.msra.mxu0 %v1862
    %3006 = vmatmul.bf16.gmra.mxu0 %v138
    %v3007 = vpop.f32.mrf.mxu0
    %v3008 = vadd.f32 %v2995, %v3007
    %v3009 = vpop.f32.mrf.mxu0
    %3010 = vdwg.mxu0
    %3011 = vmatpush.bf16.msra.mxu0 %v1982
    %3012 = vmatpush.bf16.msra.mxu0 %v1974
    %3013 = vmatpush.bf16.msra.mxu0 %v1966
    %3014 = vmatpush.bf16.msra.mxu0 %v1958
    %3015 = vmatpush.bf16.msra.mxu0 %v1950
    %3016 = vmatpush.bf16.msra.mxu0 %v1942
    %3017 = vmatpush.bf16.msra.mxu0 %v1934
    %3018 = vmatpush.bf16.msra.mxu0 %v1926
    %3019 = vmatmul.bf16.gmra.mxu0 %v139
    %v3020 = vpop.f32.mrf.mxu0
    %v3021 = vadd.f32 %v3008, %v3020
    %v3022 = vpop.f32.mrf.mxu0
    %3023 = vdwg.mxu0
    %3024 = vmatpush.bf16.msra.mxu0 %v2046
    %3025 = vmatpush.bf16.msra.mxu0 %v2038
    %3026 = vmatpush.bf16.msra.mxu0 %v2030
    %3027 = vmatpush.bf16.msra.mxu0 %v2022
    %3028 = vmatpush.bf16.msra.mxu0 %v2014
    %3029 = vmatpush.bf16.msra.mxu0 %v2006
    %3030 = vmatpush.bf16.msra.mxu0 %v1998
    %3031 = vmatpush.bf16.msra.mxu0 %v1990
    %3032 = vmatmul.bf16.gmra.mxu0 %v140
    %v3033 = vpop.f32.mrf.mxu0
    %v3034 = vadd.f32 %v3021, %v3033
    %v3035 = vpop.f32.mrf.mxu0
    %3036 = vdwg.mxu0
    %3037 = vmatpush.bf16.msra.mxu0 %v2110
    %3038 = vmatpush.bf16.msra.mxu0 %v2102
    %3039 = vmatpush.bf16.msra.mxu0 %v2094
    %3040 = vmatpush.bf16.msra.mxu0 %v2086
    %3041 = vmatpush.bf16.msra.mxu0 %v2078
    %3042 = vmatpush.bf16.msra.mxu0 %v2070
    %3043 = vmatpush.bf16.msra.mxu0 %v2062
    %3044 = vmatpush.bf16.msra.mxu0 %v2054
    %3045 = vmatmul.bf16.gmra.mxu0 %v141
    %v3046 = vpop.f32.mrf.mxu0
    %v3047 = vadd.f32 %v3034, %v3046
    %v3048 = vpop.f32.mrf.mxu0
    %3049 = vdwg.mxu0
    %3050 = vmatpush.bf16.msra.mxu0 0
    %3051 = vmatpush.bf16.msra.mxu0 0
    %3052 = vmatpush.bf16.msra.mxu0 0
    %3053 = vmatpush.bf16.msra.mxu0 0
    %3054 = vmatpush.bf16.msra.mxu0 0
    %3055 = vmatpush.bf16.msra.mxu0 0
    %3056 = vmatpush.bf16.msra.mxu0 0
    %3057 = vmatpush.bf16.msra.mxu0 %v2118
    %3058 = vmatmul.bf16.gmra.mxu0 %v2515
    %v3059 = vpop.f32.mrf.mxu0
    %v3060 = vadd.f32 %v3047, %v3059
    %v3061 = vpop.f32.mrf.mxu0
    %3062 = vdwg.mxu0
    %3063 = vmatpush.bf16.msra.mxu0 %v1791
    %3064 = vmatpush.bf16.msra.mxu0 %v1783
    %3065 = vmatpush.bf16.msra.mxu0 %v1775
    %3066 = vmatpush.bf16.msra.mxu0 %v1767
    %3067 = vmatpush.bf16.msra.mxu0 %v1759
    %3068 = vmatpush.bf16.msra.mxu0 %v1751
    %3069 = vmatpush.bf16.msra.mxu0 %v1743
    %3070 = vmatpush.bf16.msra.mxu0 %v1735
    %3071 = vmatmul.bf16.gmra.mxu0 %v136
    %v3072 = vpop.f32.mrf.mxu0
    %v3073 = vadd.f32 %v543, %v3072
    %v3074 = vpop.f32.mrf.mxu0
    %3075 = vdwg.mxu0
    %3076 = vmatpush.bf16.msra.mxu0 %v1855
    %3077 = vmatpush.bf16.msra.mxu0 %v1847
    %3078 = vmatpush.bf16.msra.mxu0 %v1839
    %3079 = vmatpush.bf16.msra.mxu0 %v1831
    %3080 = vmatpush.bf16.msra.mxu0 %v1823
    %3081 = vmatpush.bf16.msra.mxu0 %v1815
    %3082 = vmatpush.bf16.msra.mxu0 %v1807
    %3083 = vmatpush.bf16.msra.mxu0 %v1799
    %3084 = vmatmul.bf16.gmra.mxu0 %v137
    %v3085 = vpop.f32.mrf.mxu0
    %v3086 = vadd.f32 %v3073, %v3085
    %v3087 = vpop.f32.mrf.mxu0
    %3088 = vdwg.mxu0
    %3089 = vmatpush.bf16.msra.mxu0 %v1919
    %3090 = vmatpush.bf16.msra.mxu0 %v1911
    %3091 = vmatpush.bf16.msra.mxu0 %v1903
    %3092 = vmatpush.bf16.msra.mxu0 %v1895
    %3093 = vmatpush.bf16.msra.mxu0 %v1887
    %3094 = vmatpush.bf16.msra.mxu0 %v1879
    %3095 = vmatpush.bf16.msra.mxu0 %v1871
    %3096 = vmatpush.bf16.msra.mxu0 %v1863
    %3097 = vmatmul.bf16.gmra.mxu0 %v138
    %v3098 = vpop.f32.mrf.mxu0
    %v3099 = vadd.f32 %v3086, %v3098
    %v3100 = vpop.f32.mrf.mxu0
    %3101 = vdwg.mxu0
    %3102 = vmatpush.bf16.msra.mxu0 %v1983
    %3103 = vmatpush.bf16.msra.mxu0 %v1975
    %3104 = vmatpush.bf16.msra.mxu0 %v1967
    %3105 = vmatpush.bf16.msra.mxu0 %v1959
    %3106 = vmatpush.bf16.msra.mxu0 %v1951
    %3107 = vmatpush.bf16.msra.mxu0 %v1943
    %3108 = vmatpush.bf16.msra.mxu0 %v1935
    %3109 = vmatpush.bf16.msra.mxu0 %v1927
    %3110 = vmatmul.bf16.gmra.mxu0 %v139
    %v3111 = vpop.f32.mrf.mxu0
    %v3112 = vadd.f32 %v3099, %v3111
    %v3113 = vpop.f32.mrf.mxu0
    %3114 = vdwg.mxu0
    %3115 = vmatpush.bf16.msra.mxu0 %v2047
    %3116 = vmatpush.bf16.msra.mxu0 %v2039
    %3117 = vmatpush.bf16.msra.mxu0 %v2031
    %3118 = vmatpush.bf16.msra.mxu0 %v2023
    %3119 = vmatpush.bf16.msra.mxu0 %v2015
    %3120 = vmatpush.bf16.msra.mxu0 %v2007
    %3121 = vmatpush.bf16.msra.mxu0 %v1999
    %3122 = vmatpush.bf16.msra.mxu0 %v1991
    %3123 = vmatmul.bf16.gmra.mxu0 %v140
    %v3124 = vpop.f32.mrf.mxu0
    %v3125 = vadd.f32 %v3112, %v3124
    %v3126 = vpop.f32.mrf.mxu0
    %3127 = vdwg.mxu0
    %3128 = vmatpush.bf16.msra.mxu0 %v2111
    %3129 = vmatpush.bf16.msra.mxu0 %v2103
    %3130 = vmatpush.bf16.msra.mxu0 %v2095
    %3131 = vmatpush.bf16.msra.mxu0 %v2087
    %3132 = vmatpush.bf16.msra.mxu0 %v2079
    %3133 = vmatpush.bf16.msra.mxu0 %v2071
    %3134 = vmatpush.bf16.msra.mxu0 %v2063
    %3135 = vmatpush.bf16.msra.mxu0 %v2055
    %3136 = vmatmul.bf16.gmra.mxu0 %v141
    %v3137 = vpop.f32.mrf.mxu0
    %v3138 = vadd.f32 %v3125, %v3137
    %v3139 = vpop.f32.mrf.mxu0
    %3140 = vdwg.mxu0
    %3141 = vmatpush.bf16.msra.mxu0 0
    %3142 = vmatpush.bf16.msra.mxu0 0
    %3143 = vmatpush.bf16.msra.mxu0 0
    %3144 = vmatpush.bf16.msra.mxu0 0
    %3145 = vmatpush.bf16.msra.mxu0 0
    %3146 = vmatpush.bf16.msra.mxu0 0
    %3147 = vmatpush.bf16.msra.mxu0 0
    %3148 = vmatpush.bf16.msra.mxu0 %v2119
    %3149 = vmatmul.bf16.gmra.mxu0 %v2515
    %v3150 = vpop.f32.mrf.mxu0
    %v3151 = vadd.f32 %v3138, %v3150
    %v3152 = vpop.f32.mrf.mxu0
    %3153 = vdwg.mxu0
    %3154 = vmatpush.bf16.msra.mxu0 %v1792
    %3155 = vmatpush.bf16.msra.mxu0 %v1784
    %3156 = vmatpush.bf16.msra.mxu0 %v1776
    %3157 = vmatpush.bf16.msra.mxu0 %v1768
    %3158 = vmatpush.bf16.msra.mxu0 %v1760
    %3159 = vmatpush.bf16.msra.mxu0 %v1752
    %3160 = vmatpush.bf16.msra.mxu0 %v1744
    %3161 = vmatpush.bf16.msra.mxu0 %v1736
    %3162 = vmatmul.bf16.gmra.mxu0 %v136
    %v3163 = vpop.f32.mrf.mxu0
    %v3164 = vadd.f32 %v544, %v3163
    %v3165 = vpop.f32.mrf.mxu0
    %3166 = vdwg.mxu0
    %3167 = vmatpush.bf16.msra.mxu0 %v1856
    %3168 = vmatpush.bf16.msra.mxu0 %v1848
    %3169 = vmatpush.bf16.msra.mxu0 %v1840
    %3170 = vmatpush.bf16.msra.mxu0 %v1832
    %3171 = vmatpush.bf16.msra.mxu0 %v1824
    %3172 = vmatpush.bf16.msra.mxu0 %v1816
    %3173 = vmatpush.bf16.msra.mxu0 %v1808
    %3174 = vmatpush.bf16.msra.mxu0 %v1800
    %3175 = vmatmul.bf16.gmra.mxu0 %v137
    %v3176 = vpop.f32.mrf.mxu0
    %v3177 = vadd.f32 %v3164, %v3176
    %v3178 = vpop.f32.mrf.mxu0
    %3179 = vdwg.mxu0
    %3180 = vmatpush.bf16.msra.mxu0 %v1920
    %3181 = vmatpush.bf16.msra.mxu0 %v1912
    %3182 = vmatpush.bf16.msra.mxu0 %v1904
    %3183 = vmatpush.bf16.msra.mxu0 %v1896
    %3184 = vmatpush.bf16.msra.mxu0 %v1888
    %3185 = vmatpush.bf16.msra.mxu0 %v1880
    %3186 = vmatpush.bf16.msra.mxu0 %v1872
    %3187 = vmatpush.bf16.msra.mxu0 %v1864
    %3188 = vmatmul.bf16.gmra.mxu0 %v138
    %v3189 = vpop.f32.mrf.mxu0
    %v3190 = vadd.f32 %v3177, %v3189
    %v3191 = vpop.f32.mrf.mxu0
    %3192 = vdwg.mxu0
    %3193 = vmatpush.bf16.msra.mxu0 %v1984
    %3194 = vmatpush.bf16.msra.mxu0 %v1976
    %3195 = vmatpush.bf16.msra.mxu0 %v1968
    %3196 = vmatpush.bf16.msra.mxu0 %v1960
    %3197 = vmatpush.bf16.msra.mxu0 %v1952
    %3198 = vmatpush.bf16.msra.mxu0 %v1944
    %3199 = vmatpush.bf16.msra.mxu0 %v1936
    %3200 = vmatpush.bf16.msra.mxu0 %v1928
    %3201 = vmatmul.bf16.gmra.mxu0 %v139
    %v3202 = vpop.f32.mrf.mxu0
    %v3203 = vadd.f32 %v3190, %v3202
    %v3204 = vpop.f32.mrf.mxu0
    %3205 = vdwg.mxu0
    %3206 = vmatpush.bf16.msra.mxu0 %v2048
    %3207 = vmatpush.bf16.msra.mxu0 %v2040
    %3208 = vmatpush.bf16.msra.mxu0 %v2032
    %3209 = vmatpush.bf16.msra.mxu0 %v2024
    %3210 = vmatpush.bf16.msra.mxu0 %v2016
    %3211 = vmatpush.bf16.msra.mxu0 %v2008
    %3212 = vmatpush.bf16.msra.mxu0 %v2000
    %3213 = vmatpush.bf16.msra.mxu0 %v1992
    %3214 = vmatmul.bf16.gmra.mxu0 %v140
    %v3215 = vpop.f32.mrf.mxu0
    %v3216 = vadd.f32 %v3203, %v3215
    %v3217 = vpop.f32.mrf.mxu0
    %3218 = vdwg.mxu0
    %3219 = vmatpush.bf16.msra.mxu0 %v2112
    %3220 = vmatpush.bf16.msra.mxu0 %v2104
    %3221 = vmatpush.bf16.msra.mxu0 %v2096
    %3222 = vmatpush.bf16.msra.mxu0 %v2088
    %3223 = vmatpush.bf16.msra.mxu0 %v2080
    %3224 = vmatpush.bf16.msra.mxu0 %v2072
    %3225 = vmatpush.bf16.msra.mxu0 %v2064
    %3226 = vmatpush.bf16.msra.mxu0 %v2056
    %3227 = vmatmul.bf16.gmra.mxu0 %v141
    %v3228 = vpop.f32.mrf.mxu0
    %v3229 = vadd.f32 %v3216, %v3228
    %v3230 = vpop.f32.mrf.mxu0
    %3231 = vdwg.mxu0
    %3232 = vmatpush.bf16.msra.mxu0 0
    %3233 = vmatpush.bf16.msra.mxu0 0
    %3234 = vmatpush.bf16.msra.mxu0 0
    %3235 = vmatpush.bf16.msra.mxu0 0
    %3236 = vmatpush.bf16.msra.mxu0 0
    %3237 = vmatpush.bf16.msra.mxu0 0
    %3238 = vmatpush.bf16.msra.mxu0 0
    %3239 = vmatpush.bf16.msra.mxu0 %v2120
    %3240 = vmatmul.bf16.gmra.mxu0 %v2515
    %v3241 = vpop.f32.mrf.mxu0
    %v3242 = vadd.f32 %v3229, %v3241
    %v3243 = vpop.f32.mrf.mxu0
    %3244 = vdwg.mxu0
    %v3245 = vmax.f32 %v2605, 0.0
    %v3246 = vmax.f32 %v2696, 0.0
    %v3247 = vmax.f32 %v2787, 0.0
    %v3248 = vmax.f32 %v2878, 0.0
    %v3249 = vmax.f32 %v2969, 0.0
    %v3250 = vmax.f32 %v3060, 0.0
    %v3251 = vmax.f32 %v3151, 0.0
    %v3252 = vmax.f32 %v3242, 0.0
    %v3253 = vpack.c.bf16 %v3245, %v3245
    %v3254 = vpack.c.bf16 %v3246, %v3246
    %v3255 = vpack.c.bf16 %v3247, %v3247
    %v3256 = vpack.c.bf16 %v3248, %v3248
    %v3257 = vpack.c.bf16 %v3249, %v3249
    %v3258 = vpack.c.bf16 %v3250, %v3250
    %v3259 = vpack.c.bf16 %v3251, %v3251
    %v3260 = vpack.c.bf16 %v3252, %v3252
    %v3261 = vld [vmem:[#allocation8] sm:$0xff]
    %v3262 = vld [vmem:[#allocation8 + $0x8] sm:$0xff]
    %v3263 = vld [vmem:[#allocation8 + $0x10] sm:$0xff]
    %v3264 = vld [vmem:[#allocation8 + $0x18] sm:$0xff]
    %v3265 = vld [vmem:[#allocation8 + $0x20] sm:$0xff]
    %v3266 = vld [vmem:[#allocation8 + $0x28] sm:$0xff]
    %v3267 = vld [vmem:[#allocation8 + $0x30] sm:$0xff]
    %v3268 = vld [vmem:[#allocation8 + $0x38] sm:$0xff]
    %v3269 = vld [vmem:[#allocation8 + $0x40] sm:$0xff]
    %v3270 = vld [vmem:[#allocation8 + $0x48] sm:$0xff]
    %v3271 = vld [vmem:[#allocation8 + $0x50] sm:$0xff]
    %v3272 = vld [vmem:[#allocation8 + $0x58] sm:$0xff]
    %v3273 = vld [vmem:[#allocation8 + $0x60] sm:$0xff]
    %v3274 = vld [vmem:[#allocation8 + $0x68] sm:$0xff]
    %v3275 = vld [vmem:[#allocation8 + $0x70] sm:$0xff]
    %v3276 = vld [vmem:[#allocation8 + $0x78] sm:$0xff]
    %v3277 = vld [vmem:[#allocation8 + $0x80] sm:$0xff]
    %v3278 = vld [vmem:[#allocation8 + $0x88] sm:$0xff]
    %v3279 = vld [vmem:[#allocation8 + $0x90] sm:$0xff]
    %v3280 = vld [vmem:[#allocation8 + $0x98] sm:$0xff]
    %v3281 = vld [vmem:[#allocation8 + $0xa0] sm:$0xff]
    %v3282 = vld [vmem:[#allocation8 + $0xa8] sm:$0xff]
    %v3283 = vld [vmem:[#allocation8 + $0xb0] sm:$0xff]
    %v3284 = vld [vmem:[#allocation8 + $0xb8] sm:$0xff]
    %v3285 = vld [vmem:[#allocation8 + $0xc0] sm:$0xff]
    %v3286 = vld [vmem:[#allocation8 + $0xc8] sm:$0xff]
    %v3287 = vld [vmem:[#allocation8 + $0xd0] sm:$0xff]
    %v3288 = vld [vmem:[#allocation8 + $0xd8] sm:$0xff]
    %v3289 = vld [vmem:[#allocation8 + $0xe0] sm:$0xff]
    %v3290 = vld [vmem:[#allocation8 + $0xe8] sm:$0xff]
    %v3291 = vld [vmem:[#allocation8 + $0xf0] sm:$0xff]
    %v3292 = vld [vmem:[#allocation8 + $0xf8] sm:$0xff]
    %v3293 = vld [vmem:[#allocation8 + $0x100] sm:$0xff]
    %v3294 = vld [vmem:[#allocation8 + $0x108] sm:$0xff]
    %v3295 = vld [vmem:[#allocation8 + $0x110] sm:$0xff]
    %v3296 = vld [vmem:[#allocation8 + $0x118] sm:$0xff]
    %v3297 = vld [vmem:[#allocation8 + $0x120] sm:$0xff]
    %v3298 = vld [vmem:[#allocation8 + $0x128] sm:$0xff]
    %v3299 = vld [vmem:[#allocation8 + $0x130] sm:$0xff]
    %v3300 = vld [vmem:[#allocation8 + $0x138] sm:$0xff]
    %v3301 = vld [vmem:[#allocation8 + $0x140] sm:$0xff]
    %v3302 = vld [vmem:[#allocation8 + $0x148] sm:$0xff]
    %v3303 = vld [vmem:[#allocation8 + $0x150] sm:$0xff]
    %v3304 = vld [vmem:[#allocation8 + $0x158] sm:$0xff]
    %v3305 = vld [vmem:[#allocation8 + $0x160] sm:$0xff]
    %v3306 = vld [vmem:[#allocation8 + $0x168] sm:$0xff]
    %v3307 = vld [vmem:[#allocation8 + $0x170] sm:$0xff]
    %v3308 = vld [vmem:[#allocation8 + $0x178] sm:$0xff]
    %v3309 = vld [vmem:[#allocation8 + $0x180] sm:$0xff]
    %v3310 = vld [vmem:[#allocation8 + $0x188] sm:$0xff]
    %v3311 = vld [vmem:[#allocation8 + $0x190] sm:$0xff]
    %v3312 = vld [vmem:[#allocation8 + $0x198] sm:$0xff]
    %v3313 = vld [vmem:[#allocation8 + $0x1a0] sm:$0xff]
    %v3314 = vld [vmem:[#allocation8 + $0x1a8] sm:$0xff]
    %v3315 = vld [vmem:[#allocation8 + $0x1b0] sm:$0xff]
    %v3316 = vld [vmem:[#allocation8 + $0x1b8] sm:$0xff]
    %v3317 = vld [vmem:[#allocation8 + $0x1c0] sm:$0xff]
    %v3318 = vld [vmem:[#allocation8 + $0x1c8] sm:$0xff]
    %v3319 = vld [vmem:[#allocation8 + $0x1d0] sm:$0xff]
    %v3320 = vld [vmem:[#allocation8 + $0x1d8] sm:$0xff]
    %v3321 = vld [vmem:[#allocation8 + $0x1e0] sm:$0xff]
    %v3322 = vld [vmem:[#allocation8 + $0x1e8] sm:$0xff]
    %v3323 = vld [vmem:[#allocation8 + $0x1f0] sm:$0xff]
    %v3324 = vld [vmem:[#allocation8 + $0x1f8] sm:$0xff]
    %v3325 = vld [vmem:[#allocation8 + $0x200] sm:$0xff]
    %v3326 = vld [vmem:[#allocation8 + $0x208] sm:$0xff]
    %v3327 = vld [vmem:[#allocation8 + $0x210] sm:$0xff]
    %v3328 = vld [vmem:[#allocation8 + $0x218] sm:$0xff]
    %v3329 = vld [vmem:[#allocation8 + $0x220] sm:$0xff]
    %v3330 = vld [vmem:[#allocation8 + $0x228] sm:$0xff]
    %v3331 = vld [vmem:[#allocation8 + $0x230] sm:$0xff]
    %v3332 = vld [vmem:[#allocation8 + $0x238] sm:$0xff]
    %v3333 = vld [vmem:[#allocation8 + $0x240] sm:$0xff]
    %v3334 = vld [vmem:[#allocation8 + $0x248] sm:$0xff]
    %v3335 = vld [vmem:[#allocation8 + $0x250] sm:$0xff]
    %v3336 = vld [vmem:[#allocation8 + $0x258] sm:$0xff]
    %v3337 = vld [vmem:[#allocation8 + $0x260] sm:$0xff]
    %v3338 = vld [vmem:[#allocation8 + $0x268] sm:$0xff]
    %v3339 = vld [vmem:[#allocation8 + $0x270] sm:$0xff]
    %v3340 = vld [vmem:[#allocation8 + $0x278] sm:$0xff]
    %v3341 = vld [vmem:[#allocation8 + $0x280] sm:$0xff]
    %v3342 = vld [vmem:[#allocation8 + $0x288] sm:$0xff]
    %v3343 = vld [vmem:[#allocation8 + $0x290] sm:$0xff]
    %v3344 = vld [vmem:[#allocation8 + $0x298] sm:$0xff]
    %v3345 = vld [vmem:[#allocation8 + $0x2a0] sm:$0xff]
    %v3346 = vld [vmem:[#allocation8 + $0x2a8] sm:$0xff]
    %v3347 = vld [vmem:[#allocation8 + $0x2b0] sm:$0xff]
    %v3348 = vld [vmem:[#allocation8 + $0x2b8] sm:$0xff]
    %v3349 = vld [vmem:[#allocation8 + $0x2c0] sm:$0xff]
    %v3350 = vld [vmem:[#allocation8 + $0x2c8] sm:$0xff]
    %v3351 = vld [vmem:[#allocation8 + $0x2d0] sm:$0xff]
    %v3352 = vld [vmem:[#allocation8 + $0x2d8] sm:$0xff]
    %v3353 = vld [vmem:[#allocation8 + $0x2e0] sm:$0xff]
    %v3354 = vld [vmem:[#allocation8 + $0x2e8] sm:$0xff]
    %v3355 = vld [vmem:[#allocation8 + $0x2f0] sm:$0xff]
    %v3356 = vld [vmem:[#allocation8 + $0x2f8] sm:$0xff]
    %v3357 = vld [vmem:[#allocation8 + $0x300] sm:$0xff]
    %v3358 = vld [vmem:[#allocation8 + $0x308] sm:$0xff]
    %v3359 = vld [vmem:[#allocation8 + $0x310] sm:$0xff]
    %v3360 = vld [vmem:[#allocation8 + $0x318] sm:$0xff]
    %v3361 = vld [vmem:[#allocation8 + $0x320] sm:$0xff]
    %v3362 = vld [vmem:[#allocation8 + $0x328] sm:$0xff]
    %v3363 = vld [vmem:[#allocation8 + $0x330] sm:$0xff]
    %v3364 = vld [vmem:[#allocation8 + $0x338] sm:$0xff]
    %v3365 = vld [vmem:[#allocation8 + $0x340] sm:$0xff]
    %v3366 = vld [vmem:[#allocation8 + $0x348] sm:$0xff]
    %v3367 = vld [vmem:[#allocation8 + $0x350] sm:$0xff]
    %v3368 = vld [vmem:[#allocation8 + $0x358] sm:$0xff]
    %v3369 = vld [vmem:[#allocation8 + $0x360] sm:$0xff]
    %v3370 = vld [vmem:[#allocation8 + $0x368] sm:$0xff]
    %v3371 = vld [vmem:[#allocation8 + $0x370] sm:$0xff]
    %v3372 = vld [vmem:[#allocation8 + $0x378] sm:$0xff]
    %v3373 = vld [vmem:[#allocation8 + $0x380] sm:$0xff]
    %v3374 = vld [vmem:[#allocation8 + $0x388] sm:$0xff]
    %v3375 = vld [vmem:[#allocation8 + $0x390] sm:$0xff]
    %v3376 = vld [vmem:[#allocation8 + $0x398] sm:$0xff]
    %v3377 = vld [vmem:[#allocation8 + $0x3a0] sm:$0xff]
    %v3378 = vld [vmem:[#allocation8 + $0x3a8] sm:$0xff]
    %v3379 = vld [vmem:[#allocation8 + $0x3b0] sm:$0xff]
    %v3380 = vld [vmem:[#allocation8 + $0x3b8] sm:$0xff]
    %v3381 = vld [vmem:[#allocation8 + $0x3c0] sm:$0xff]
    %v3382 = vld [vmem:[#allocation8 + $0x3c8] sm:$0xff]
    %v3383 = vld [vmem:[#allocation8 + $0x3d0] sm:$0xff]
    %v3384 = vld [vmem:[#allocation8 + $0x3d8] sm:$0xff]
    %v3385 = vld [vmem:[#allocation8 + $0x3e0] sm:$0xff]
    %v3386 = vld [vmem:[#allocation8 + $0x3e8] sm:$0xff]
    %v3387 = vld [vmem:[#allocation8 + $0x3f0] sm:$0xff]
    %v3388 = vld [vmem:[#allocation8 + $0x3f8] sm:$0xff]
    %v3389 = vld [vmem:[#allocation8 + $0x400] sm:$0xff]
    %v3390 = vld [vmem:[#allocation8 + $0x408] sm:$0xff]
    %v3391 = vld [vmem:[#allocation8 + $0x410] sm:$0xff]
    %v3392 = vld [vmem:[#allocation8 + $0x418] sm:$0xff]
    %v3393 = vld [vmem:[#allocation8 + $0x420] sm:$0xff]
    %v3394 = vld [vmem:[#allocation8 + $0x428] sm:$0xff]
    %v3395 = vld [vmem:[#allocation8 + $0x430] sm:$0xff]
    %v3396 = vld [vmem:[#allocation8 + $0x438] sm:$0xff]
    %v3397 = vld [vmem:[#allocation8 + $0x440] sm:$0xff]
    %v3398 = vld [vmem:[#allocation8 + $0x448] sm:$0xff]
    %v3399 = vld [vmem:[#allocation8 + $0x450] sm:$0xff]
    %v3400 = vld [vmem:[#allocation8 + $0x458] sm:$0xff]
    %v3401 = vld [vmem:[#allocation8 + $0x460] sm:$0xff]
    %v3402 = vld [vmem:[#allocation8 + $0x468] sm:$0xff]
    %v3403 = vld [vmem:[#allocation8 + $0x470] sm:$0xff]
    %v3404 = vld [vmem:[#allocation8 + $0x478] sm:$0xff]
    %v3405 = vld [vmem:[#allocation8 + $0x480] sm:$0xff]
    %v3406 = vld [vmem:[#allocation8 + $0x488] sm:$0xff]
    %v3407 = vld [vmem:[#allocation8 + $0x490] sm:$0xff]
    %v3408 = vld [vmem:[#allocation8 + $0x498] sm:$0xff]
    %v3409 = vld [vmem:[#allocation8 + $0x4a0] sm:$0xff]
    %v3410 = vld [vmem:[#allocation8 + $0x4a8] sm:$0xff]
    %v3411 = vld [vmem:[#allocation8 + $0x4b0] sm:$0xff]
    %v3412 = vld [vmem:[#allocation8 + $0x4b8] sm:$0xff]
    %v3413 = vld [vmem:[#allocation8 + $0x4c0] sm:$0xff]
    %v3414 = vld [vmem:[#allocation8 + $0x4c8] sm:$0xff]
    %v3415 = vld [vmem:[#allocation8 + $0x4d0] sm:$0xff]
    %v3416 = vld [vmem:[#allocation8 + $0x4d8] sm:$0xff]
    %v3417 = vld [vmem:[#allocation8 + $0x4e0] sm:$0xff]
    %v3418 = vld [vmem:[#allocation8 + $0x4e8] sm:$0xff]
    %v3419 = vld [vmem:[#allocation8 + $0x4f0] sm:$0xff]
    %v3420 = vld [vmem:[#allocation8 + $0x4f8] sm:$0xff]
    %v3421 = vld [vmem:[#allocation8 + $0x500] sm:$0xff]
    %v3422 = vld [vmem:[#allocation8 + $0x508] sm:$0xff]
    %v3423 = vld [vmem:[#allocation8 + $0x510] sm:$0xff]
    %v3424 = vld [vmem:[#allocation8 + $0x518] sm:$0xff]
    %v3425 = vld [vmem:[#allocation8 + $0x520] sm:$0xff]
    %v3426 = vld [vmem:[#allocation8 + $0x528] sm:$0xff]
    %v3427 = vld [vmem:[#allocation8 + $0x530] sm:$0xff]
    %v3428 = vld [vmem:[#allocation8 + $0x538] sm:$0xff]
    %v3429 = vld [vmem:[#allocation8 + $0x540] sm:$0xff]
    %v3430 = vld [vmem:[#allocation8 + $0x548] sm:$0xff]
    %v3431 = vld [vmem:[#allocation8 + $0x550] sm:$0xff]
    %v3432 = vld [vmem:[#allocation8 + $0x558] sm:$0xff]
    %v3433 = vld [vmem:[#allocation8 + $0x560] sm:$0xff]
    %v3434 = vld [vmem:[#allocation8 + $0x568] sm:$0xff]
    %v3435 = vld [vmem:[#allocation8 + $0x570] sm:$0xff]
    %v3436 = vld [vmem:[#allocation8 + $0x578] sm:$0xff]
    %v3437 = vld [vmem:[#allocation8 + $0x580] sm:$0xff]
    %v3438 = vld [vmem:[#allocation8 + $0x588] sm:$0xff]
    %v3439 = vld [vmem:[#allocation8 + $0x590] sm:$0xff]
    %v3440 = vld [vmem:[#allocation8 + $0x598] sm:$0xff]
    %v3441 = vld [vmem:[#allocation8 + $0x5a0] sm:$0xff]
    %v3442 = vld [vmem:[#allocation8 + $0x5a8] sm:$0xff]
    %v3443 = vld [vmem:[#allocation8 + $0x5b0] sm:$0xff]
    %v3444 = vld [vmem:[#allocation8 + $0x5b8] sm:$0xff]
    %v3445 = vld [vmem:[#allocation8 + $0x5c0] sm:$0xff]
    %v3446 = vld [vmem:[#allocation8 + $0x5c8] sm:$0xff]
    %v3447 = vld [vmem:[#allocation8 + $0x5d0] sm:$0xff]
    %v3448 = vld [vmem:[#allocation8 + $0x5d8] sm:$0xff]
    %v3449 = vld [vmem:[#allocation8 + $0x5e0] sm:$0xff]
    %v3450 = vld [vmem:[#allocation8 + $0x5e8] sm:$0xff]
    %v3451 = vld [vmem:[#allocation8 + $0x5f0] sm:$0xff]
    %v3452 = vld [vmem:[#allocation8 + $0x5f8] sm:$0xff]
    %v3453 = vld [vmem:[#allocation8 + $0x600] sm:$0xff]
    %v3454 = vld [vmem:[#allocation8 + $0x608] sm:$0xff]
    %v3455 = vld [vmem:[#allocation8 + $0x610] sm:$0xff]
    %v3456 = vld [vmem:[#allocation8 + $0x618] sm:$0xff]
    %v3457 = vld [vmem:[#allocation8 + $0x620] sm:$0xff]
    %v3458 = vld [vmem:[#allocation8 + $0x628] sm:$0xff]
    %v3459 = vld [vmem:[#allocation8 + $0x630] sm:$0xff]
    %v3460 = vld [vmem:[#allocation8 + $0x638] sm:$0xff]
    %v3461 = vld [vmem:[#allocation8 + $0x640] sm:$0xff]
    %v3462 = vld [vmem:[#allocation8 + $0x648] sm:$0xff]
    %v3463 = vld [vmem:[#allocation8 + $0x650] sm:$0xff]
    %v3464 = vld [vmem:[#allocation8 + $0x658] sm:$0xff]
    %v3465 = vld [vmem:[#allocation8 + $0x660] sm:$0xff]
    %v3466 = vld [vmem:[#allocation8 + $0x668] sm:$0xff]
    %v3467 = vld [vmem:[#allocation8 + $0x670] sm:$0xff]
    %v3468 = vld [vmem:[#allocation8 + $0x678] sm:$0xff]
    %v3469 = vld [vmem:[#allocation8 + $0x680] sm:$0xff]
    %v3470 = vld [vmem:[#allocation8 + $0x688] sm:$0xff]
    %v3471 = vld [vmem:[#allocation8 + $0x690] sm:$0xff]
    %v3472 = vld [vmem:[#allocation8 + $0x698] sm:$0xff]
    %v3473 = vld [vmem:[#allocation8 + $0x6a0] sm:$0xff]
    %v3474 = vld [vmem:[#allocation8 + $0x6a8] sm:$0xff]
    %v3475 = vld [vmem:[#allocation8 + $0x6b0] sm:$0xff]
    %v3476 = vld [vmem:[#allocation8 + $0x6b8] sm:$0xff]
    %v3477 = vld [vmem:[#allocation8 + $0x6c0] sm:$0xff]
    %v3478 = vld [vmem:[#allocation8 + $0x6c8] sm:$0xff]
    %v3479 = vld [vmem:[#allocation8 + $0x6d0] sm:$0xff]
    %v3480 = vld [vmem:[#allocation8 + $0x6d8] sm:$0xff]
    %v3481 = vld [vmem:[#allocation8 + $0x6e0] sm:$0xff]
    %v3482 = vld [vmem:[#allocation8 + $0x6e8] sm:$0xff]
    %v3483 = vld [vmem:[#allocation8 + $0x6f0] sm:$0xff]
    %v3484 = vld [vmem:[#allocation8 + $0x6f8] sm:$0xff]
    %v3485 = vld [vmem:[#allocation8 + $0x700] sm:$0xff]
    %v3486 = vld [vmem:[#allocation8 + $0x708] sm:$0xff]
    %v3487 = vld [vmem:[#allocation8 + $0x710] sm:$0xff]
    %v3488 = vld [vmem:[#allocation8 + $0x718] sm:$0xff]
    %v3489 = vld [vmem:[#allocation8 + $0x720] sm:$0xff]
    %v3490 = vld [vmem:[#allocation8 + $0x728] sm:$0xff]
    %v3491 = vld [vmem:[#allocation8 + $0x730] sm:$0xff]
    %v3492 = vld [vmem:[#allocation8 + $0x738] sm:$0xff]
    %v3493 = vld [vmem:[#allocation8 + $0x740] sm:$0xff]
    %v3494 = vld [vmem:[#allocation8 + $0x748] sm:$0xff]
    %v3495 = vld [vmem:[#allocation8 + $0x750] sm:$0xff]
    %v3496 = vld [vmem:[#allocation8 + $0x758] sm:$0xff]
    %v3497 = vld [vmem:[#allocation8 + $0x760] sm:$0xff]
    %v3498 = vld [vmem:[#allocation8 + $0x768] sm:$0xff]
    %v3499 = vld [vmem:[#allocation8 + $0x770] sm:$0xff]
    %v3500 = vld [vmem:[#allocation8 + $0x778] sm:$0xff]
    %v3501 = vld [vmem:[#allocation8 + $0x780] sm:$0xff]
    %v3502 = vld [vmem:[#allocation8 + $0x788] sm:$0xff]
    %v3503 = vld [vmem:[#allocation8 + $0x790] sm:$0xff]
    %v3504 = vld [vmem:[#allocation8 + $0x798] sm:$0xff]
    %v3505 = vld [vmem:[#allocation8 + $0x7a0] sm:$0xff]
    %v3506 = vld [vmem:[#allocation8 + $0x7a8] sm:$0xff]
    %v3507 = vld [vmem:[#allocation8 + $0x7b0] sm:$0xff]
    %v3508 = vld [vmem:[#allocation8 + $0x7b8] sm:$0xff]
    %v3509 = vld [vmem:[#allocation8 + $0x7c0] sm:$0xff]
    %v3510 = vld [vmem:[#allocation8 + $0x7c8] sm:$0xff]
    %v3511 = vld [vmem:[#allocation8 + $0x7d0] sm:$0xff]
    %v3512 = vld [vmem:[#allocation8 + $0x7d8] sm:$0xff]
    %v3513 = vld [vmem:[#allocation8 + $0x7e0] sm:$0xff]
    %v3514 = vld [vmem:[#allocation8 + $0x7e8] sm:$0xff]
    %v3515 = vld [vmem:[#allocation8 + $0x7f0] sm:$0xff]
    %v3516 = vld [vmem:[#allocation8 + $0x7f8] sm:$0xff]
    %v3517 = vld [vmem:[#allocation10] sm:$0xf]
    %v3519 = vperm.slane %v3517, 0
    %v3520 = vperm.slane %v3517, 1
    %v3521 = vperm.slane %v3517, 2
    %v3522 = vperm.slane %v3517, 3
    %v3783 = vunpack.c.l.b16 %v3261
    %v3784 = vunpack.c.h.b16 %v3261
    %v3785 = vunpack.c.l.b16 %v3262
    %v3786 = vunpack.c.h.b16 %v3262
    %v3787 = vunpack.c.l.b16 %v3263
    %v3788 = vunpack.c.h.b16 %v3263
    %v3789 = vunpack.c.l.b16 %v3264
    %v3790 = vunpack.c.h.b16 %v3264
    %v3791 = vunpack.c.l.b16 %v3265
    %v3792 = vunpack.c.h.b16 %v3265
    %v3793 = vunpack.c.l.b16 %v3266
    %v3794 = vunpack.c.h.b16 %v3266
    %v3795 = vunpack.c.l.b16 %v3267
    %v3796 = vunpack.c.h.b16 %v3267
    %v3797 = vunpack.c.l.b16 %v3268
    %v3798 = vunpack.c.h.b16 %v3268
    %v3799 = vunpack.c.l.b16 %v3269
    %v3800 = vunpack.c.h.b16 %v3269
    %v3801 = vunpack.c.l.b16 %v3270
    %v3802 = vunpack.c.h.b16 %v3270
    %v3803 = vunpack.c.l.b16 %v3271
    %v3804 = vunpack.c.h.b16 %v3271
    %v3805 = vunpack.c.l.b16 %v3272
    %v3806 = vunpack.c.h.b16 %v3272
    %v3807 = vunpack.c.l.b16 %v3273
    %v3808 = vunpack.c.h.b16 %v3273
    %v3809 = vunpack.c.l.b16 %v3274
    %v3810 = vunpack.c.h.b16 %v3274
    %v3811 = vunpack.c.l.b16 %v3275
    %v3812 = vunpack.c.h.b16 %v3275
    %v3813 = vunpack.c.l.b16 %v3276
    %v3814 = vunpack.c.h.b16 %v3276
    %v3815 = vunpack.c.l.b16 %v3277
    %v3816 = vunpack.c.h.b16 %v3277
    %v3817 = vunpack.c.l.b16 %v3278
    %v3818 = vunpack.c.h.b16 %v3278
    %v3819 = vunpack.c.l.b16 %v3279
    %v3820 = vunpack.c.h.b16 %v3279
    %v3821 = vunpack.c.l.b16 %v3280
    %v3822 = vunpack.c.h.b16 %v3280
    %v3823 = vunpack.c.l.b16 %v3281
    %v3824 = vunpack.c.h.b16 %v3281
    %v3825 = vunpack.c.l.b16 %v3282
    %v3826 = vunpack.c.h.b16 %v3282
    %v3827 = vunpack.c.l.b16 %v3283
    %v3828 = vunpack.c.h.b16 %v3283
    %v3829 = vunpack.c.l.b16 %v3284
    %v3830 = vunpack.c.h.b16 %v3284
    %v3831 = vunpack.c.l.b16 %v3285
    %v3832 = vunpack.c.h.b16 %v3285
    %v3833 = vunpack.c.l.b16 %v3286
    %v3834 = vunpack.c.h.b16 %v3286
    %v3835 = vunpack.c.l.b16 %v3287
    %v3836 = vunpack.c.h.b16 %v3287
    %v3837 = vunpack.c.l.b16 %v3288
    %v3838 = vunpack.c.h.b16 %v3288
    %v3839 = vunpack.c.l.b16 %v3289
    %v3840 = vunpack.c.h.b16 %v3289
    %v3841 = vunpack.c.l.b16 %v3290
    %v3842 = vunpack.c.h.b16 %v3290
    %v3843 = vunpack.c.l.b16 %v3291
    %v3844 = vunpack.c.h.b16 %v3291
    %v3845 = vunpack.c.l.b16 %v3292
    %v3846 = vunpack.c.h.b16 %v3292
    %v3847 = vunpack.c.l.b16 %v3293
    %v3848 = vunpack.c.h.b16 %v3293
    %v3849 = vunpack.c.l.b16 %v3294
    %v3850 = vunpack.c.h.b16 %v3294
    %v3851 = vunpack.c.l.b16 %v3295
    %v3852 = vunpack.c.h.b16 %v3295
    %v3853 = vunpack.c.l.b16 %v3296
    %v3854 = vunpack.c.h.b16 %v3296
    %v3855 = vunpack.c.l.b16 %v3297
    %v3856 = vunpack.c.h.b16 %v3297
    %v3857 = vunpack.c.l.b16 %v3298
    %v3858 = vunpack.c.h.b16 %v3298
    %v3859 = vunpack.c.l.b16 %v3299
    %v3860 = vunpack.c.h.b16 %v3299
    %v3861 = vunpack.c.l.b16 %v3300
    %v3862 = vunpack.c.h.b16 %v3300
    %v3863 = vunpack.c.l.b16 %v3301
    %v3864 = vunpack.c.h.b16 %v3301
    %v3865 = vunpack.c.l.b16 %v3302
    %v3866 = vunpack.c.h.b16 %v3302
    %v3867 = vunpack.c.l.b16 %v3303
    %v3868 = vunpack.c.h.b16 %v3303
    %v3869 = vunpack.c.l.b16 %v3304
    %v3870 = vunpack.c.h.b16 %v3304
    %v3871 = vunpack.c.l.b16 %v3305
    %v3872 = vunpack.c.h.b16 %v3305
    %v3873 = vunpack.c.l.b16 %v3306
    %v3874 = vunpack.c.h.b16 %v3306
    %v3875 = vunpack.c.l.b16 %v3307
    %v3876 = vunpack.c.h.b16 %v3307
    %v3877 = vunpack.c.l.b16 %v3308
    %v3878 = vunpack.c.h.b16 %v3308
    %v3879 = vunpack.c.l.b16 %v3309
    %v3880 = vunpack.c.h.b16 %v3309
    %v3881 = vunpack.c.l.b16 %v3310
    %v3882 = vunpack.c.h.b16 %v3310
    %v3883 = vunpack.c.l.b16 %v3311
    %v3884 = vunpack.c.h.b16 %v3311
    %v3885 = vunpack.c.l.b16 %v3312
    %v3886 = vunpack.c.h.b16 %v3312
    %v3887 = vunpack.c.l.b16 %v3313
    %v3888 = vunpack.c.h.b16 %v3313
    %v3889 = vunpack.c.l.b16 %v3314
    %v3890 = vunpack.c.h.b16 %v3314
    %v3891 = vunpack.c.l.b16 %v3315
    %v3892 = vunpack.c.h.b16 %v3315
    %v3893 = vunpack.c.l.b16 %v3316
    %v3894 = vunpack.c.h.b16 %v3316
    %v3895 = vunpack.c.l.b16 %v3317
    %v3896 = vunpack.c.h.b16 %v3317
    %v3897 = vunpack.c.l.b16 %v3318
    %v3898 = vunpack.c.h.b16 %v3318
    %v3899 = vunpack.c.l.b16 %v3319
    %v3900 = vunpack.c.h.b16 %v3319
    %v3901 = vunpack.c.l.b16 %v3320
    %v3902 = vunpack.c.h.b16 %v3320
    %v3903 = vunpack.c.l.b16 %v3321
    %v3904 = vunpack.c.h.b16 %v3321
    %v3905 = vunpack.c.l.b16 %v3322
    %v3906 = vunpack.c.h.b16 %v3322
    %v3907 = vunpack.c.l.b16 %v3323
    %v3908 = vunpack.c.h.b16 %v3323
    %v3909 = vunpack.c.l.b16 %v3324
    %v3910 = vunpack.c.h.b16 %v3324
    %v3911 = vunpack.c.l.b16 %v3325
    %v3912 = vunpack.c.h.b16 %v3325
    %v3913 = vunpack.c.l.b16 %v3326
    %v3914 = vunpack.c.h.b16 %v3326
    %v3915 = vunpack.c.l.b16 %v3327
    %v3916 = vunpack.c.h.b16 %v3327
    %v3917 = vunpack.c.l.b16 %v3328
    %v3918 = vunpack.c.h.b16 %v3328
    %v3919 = vunpack.c.l.b16 %v3329
    %v3920 = vunpack.c.h.b16 %v3329
    %v3921 = vunpack.c.l.b16 %v3330
    %v3922 = vunpack.c.h.b16 %v3330
    %v3923 = vunpack.c.l.b16 %v3331
    %v3924 = vunpack.c.h.b16 %v3331
    %v3925 = vunpack.c.l.b16 %v3332
    %v3926 = vunpack.c.h.b16 %v3332
    %v3927 = vunpack.c.l.b16 %v3333
    %v3928 = vunpack.c.h.b16 %v3333
    %v3929 = vunpack.c.l.b16 %v3334
    %v3930 = vunpack.c.h.b16 %v3334
    %v3931 = vunpack.c.l.b16 %v3335
    %v3932 = vunpack.c.h.b16 %v3335
    %v3933 = vunpack.c.l.b16 %v3336
    %v3934 = vunpack.c.h.b16 %v3336
    %v3935 = vunpack.c.l.b16 %v3337
    %v3936 = vunpack.c.h.b16 %v3337
    %v3937 = vunpack.c.l.b16 %v3338
    %v3938 = vunpack.c.h.b16 %v3338
    %v3939 = vunpack.c.l.b16 %v3339
    %v3940 = vunpack.c.h.b16 %v3339
    %v3941 = vunpack.c.l.b16 %v3340
    %v3942 = vunpack.c.h.b16 %v3340
    %v3943 = vunpack.c.l.b16 %v3341
    %v3944 = vunpack.c.h.b16 %v3341
    %v3945 = vunpack.c.l.b16 %v3342
    %v3946 = vunpack.c.h.b16 %v3342
    %v3947 = vunpack.c.l.b16 %v3343
    %v3948 = vunpack.c.h.b16 %v3343
    %v3949 = vunpack.c.l.b16 %v3344
    %v3950 = vunpack.c.h.b16 %v3344
    %v3951 = vunpack.c.l.b16 %v3345
    %v3952 = vunpack.c.h.b16 %v3345
    %v3953 = vunpack.c.l.b16 %v3346
    %v3954 = vunpack.c.h.b16 %v3346
    %v3955 = vunpack.c.l.b16 %v3347
    %v3956 = vunpack.c.h.b16 %v3347
    %v3957 = vunpack.c.l.b16 %v3348
    %v3958 = vunpack.c.h.b16 %v3348
    %v3959 = vunpack.c.l.b16 %v3349
    %v3960 = vunpack.c.h.b16 %v3349
    %v3961 = vunpack.c.l.b16 %v3350
    %v3962 = vunpack.c.h.b16 %v3350
    %v3963 = vunpack.c.l.b16 %v3351
    %v3964 = vunpack.c.h.b16 %v3351
    %v3965 = vunpack.c.l.b16 %v3352
    %v3966 = vunpack.c.h.b16 %v3352
    %v3967 = vunpack.c.l.b16 %v3353
    %v3968 = vunpack.c.h.b16 %v3353
    %v3969 = vunpack.c.l.b16 %v3354
    %v3970 = vunpack.c.h.b16 %v3354
    %v3971 = vunpack.c.l.b16 %v3355
    %v3972 = vunpack.c.h.b16 %v3355
    %v3973 = vunpack.c.l.b16 %v3356
    %v3974 = vunpack.c.h.b16 %v3356
    %v3975 = vunpack.c.l.b16 %v3357
    %v3976 = vunpack.c.h.b16 %v3357
    %v3977 = vunpack.c.l.b16 %v3358
    %v3978 = vunpack.c.h.b16 %v3358
    %v3979 = vunpack.c.l.b16 %v3359
    %v3980 = vunpack.c.h.b16 %v3359
    %v3981 = vunpack.c.l.b16 %v3360
    %v3982 = vunpack.c.h.b16 %v3360
    %v3983 = vunpack.c.l.b16 %v3361
    %v3984 = vunpack.c.h.b16 %v3361
    %v3985 = vunpack.c.l.b16 %v3362
    %v3986 = vunpack.c.h.b16 %v3362
    %v3987 = vunpack.c.l.b16 %v3363
    %v3988 = vunpack.c.h.b16 %v3363
    %v3989 = vunpack.c.l.b16 %v3364
    %v3990 = vunpack.c.h.b16 %v3364
    %v3991 = vunpack.c.l.b16 %v3365
    %v3992 = vunpack.c.h.b16 %v3365
    %v3993 = vunpack.c.l.b16 %v3366
    %v3994 = vunpack.c.h.b16 %v3366
    %v3995 = vunpack.c.l.b16 %v3367
    %v3996 = vunpack.c.h.b16 %v3367
    %v3997 = vunpack.c.l.b16 %v3368
    %v3998 = vunpack.c.h.b16 %v3368
    %v3999 = vunpack.c.l.b16 %v3369
    %v4000 = vunpack.c.h.b16 %v3369
    %v4001 = vunpack.c.l.b16 %v3370
    %v4002 = vunpack.c.h.b16 %v3370
    %v4003 = vunpack.c.l.b16 %v3371
    %v4004 = vunpack.c.h.b16 %v3371
    %v4005 = vunpack.c.l.b16 %v3372
    %v4006 = vunpack.c.h.b16 %v3372
    %v4007 = vunpack.c.l.b16 %v3373
    %v4008 = vunpack.c.h.b16 %v3373
    %v4009 = vunpack.c.l.b16 %v3374
    %v4010 = vunpack.c.h.b16 %v3374
    %v4011 = vunpack.c.l.b16 %v3375
    %v4012 = vunpack.c.h.b16 %v3375
    %v4013 = vunpack.c.l.b16 %v3376
    %v4014 = vunpack.c.h.b16 %v3376
    %v4015 = vunpack.c.l.b16 %v3377
    %v4016 = vunpack.c.h.b16 %v3377
    %v4017 = vunpack.c.l.b16 %v3378
    %v4018 = vunpack.c.h.b16 %v3378
    %v4019 = vunpack.c.l.b16 %v3379
    %v4020 = vunpack.c.h.b16 %v3379
    %v4021 = vunpack.c.l.b16 %v3380
    %v4022 = vunpack.c.h.b16 %v3380
    %v4023 = vunpack.c.l.b16 %v3381
    %v4024 = vunpack.c.h.b16 %v3381
    %v4025 = vunpack.c.l.b16 %v3382
    %v4026 = vunpack.c.h.b16 %v3382
    %v4027 = vunpack.c.l.b16 %v3383
    %v4028 = vunpack.c.h.b16 %v3383
    %v4029 = vunpack.c.l.b16 %v3384
    %v4030 = vunpack.c.h.b16 %v3384
    %v4031 = vunpack.c.l.b16 %v3385
    %v4032 = vunpack.c.h.b16 %v3385
    %v4033 = vunpack.c.l.b16 %v3386
    %v4034 = vunpack.c.h.b16 %v3386
    %v4035 = vunpack.c.l.b16 %v3387
    %v4036 = vunpack.c.h.b16 %v3387
    %v4037 = vunpack.c.l.b16 %v3388
    %v4038 = vunpack.c.h.b16 %v3388
    %v4039 = vunpack.c.l.b16 %v3389
    %v4040 = vunpack.c.h.b16 %v3389
    %v4041 = vunpack.c.l.b16 %v3390
    %v4042 = vunpack.c.h.b16 %v3390
    %v4043 = vunpack.c.l.b16 %v3391
    %v4044 = vunpack.c.h.b16 %v3391
    %v4045 = vunpack.c.l.b16 %v3392
    %v4046 = vunpack.c.h.b16 %v3392
    %v4047 = vunpack.c.l.b16 %v3393
    %v4048 = vunpack.c.h.b16 %v3393
    %v4049 = vunpack.c.l.b16 %v3394
    %v4050 = vunpack.c.h.b16 %v3394
    %v4051 = vunpack.c.l.b16 %v3395
    %v4052 = vunpack.c.h.b16 %v3395
    %v4053 = vunpack.c.l.b16 %v3396
    %v4054 = vunpack.c.h.b16 %v3396
    %v4055 = vunpack.c.l.b16 %v3397
    %v4056 = vunpack.c.h.b16 %v3397
    %v4057 = vunpack.c.l.b16 %v3398
    %v4058 = vunpack.c.h.b16 %v3398
    %v4059 = vunpack.c.l.b16 %v3399
    %v4060 = vunpack.c.h.b16 %v3399
    %v4061 = vunpack.c.l.b16 %v3400
    %v4062 = vunpack.c.h.b16 %v3400
    %v4063 = vunpack.c.l.b16 %v3401
    %v4064 = vunpack.c.h.b16 %v3401
    %v4065 = vunpack.c.l.b16 %v3402
    %v4066 = vunpack.c.h.b16 %v3402
    %v4067 = vunpack.c.l.b16 %v3403
    %v4068 = vunpack.c.h.b16 %v3403
    %v4069 = vunpack.c.l.b16 %v3404
    %v4070 = vunpack.c.h.b16 %v3404
    %v4071 = vunpack.c.l.b16 %v3405
    %v4072 = vunpack.c.h.b16 %v3405
    %v4073 = vunpack.c.l.b16 %v3406
    %v4074 = vunpack.c.h.b16 %v3406
    %v4075 = vunpack.c.l.b16 %v3407
    %v4076 = vunpack.c.h.b16 %v3407
    %v4077 = vunpack.c.l.b16 %v3408
    %v4078 = vunpack.c.h.b16 %v3408
    %v4079 = vunpack.c.l.b16 %v3409
    %v4080 = vunpack.c.h.b16 %v3409
    %v4081 = vunpack.c.l.b16 %v3410
    %v4082 = vunpack.c.h.b16 %v3410
    %v4083 = vunpack.c.l.b16 %v3411
    %v4084 = vunpack.c.h.b16 %v3411
    %v4085 = vunpack.c.l.b16 %v3412
    %v4086 = vunpack.c.h.b16 %v3412
    %v4087 = vunpack.c.l.b16 %v3413
    %v4088 = vunpack.c.h.b16 %v3413
    %v4089 = vunpack.c.l.b16 %v3414
    %v4090 = vunpack.c.h.b16 %v3414
    %v4091 = vunpack.c.l.b16 %v3415
    %v4092 = vunpack.c.h.b16 %v3415
    %v4093 = vunpack.c.l.b16 %v3416
    %v4094 = vunpack.c.h.b16 %v3416
    %v4095 = vunpack.c.l.b16 %v3417
    %v4096 = vunpack.c.h.b16 %v3417
    %v4097 = vunpack.c.l.b16 %v3418
    %v4098 = vunpack.c.h.b16 %v3418
    %v4099 = vunpack.c.l.b16 %v3419
    %v4100 = vunpack.c.h.b16 %v3419
    %v4101 = vunpack.c.l.b16 %v3420
    %v4102 = vunpack.c.h.b16 %v3420
    %v4103 = vunpack.c.l.b16 %v3421
    %v4104 = vunpack.c.h.b16 %v3421
    %v4105 = vunpack.c.l.b16 %v3422
    %v4106 = vunpack.c.h.b16 %v3422
    %v4107 = vunpack.c.l.b16 %v3423
    %v4108 = vunpack.c.h.b16 %v3423
    %v4109 = vunpack.c.l.b16 %v3424
    %v4110 = vunpack.c.h.b16 %v3424
    %v4111 = vunpack.c.l.b16 %v3425
    %v4112 = vunpack.c.h.b16 %v3425
    %v4113 = vunpack.c.l.b16 %v3426
    %v4114 = vunpack.c.h.b16 %v3426
    %v4115 = vunpack.c.l.b16 %v3427
    %v4116 = vunpack.c.h.b16 %v3427
    %v4117 = vunpack.c.l.b16 %v3428
    %v4118 = vunpack.c.h.b16 %v3428
    %v4119 = vunpack.c.l.b16 %v3429
    %v4120 = vunpack.c.h.b16 %v3429
    %v4121 = vunpack.c.l.b16 %v3430
    %v4122 = vunpack.c.h.b16 %v3430
    %v4123 = vunpack.c.l.b16 %v3431
    %v4124 = vunpack.c.h.b16 %v3431
    %v4125 = vunpack.c.l.b16 %v3432
    %v4126 = vunpack.c.h.b16 %v3432
    %v4127 = vunpack.c.l.b16 %v3433
    %v4128 = vunpack.c.h.b16 %v3433
    %v4129 = vunpack.c.l.b16 %v3434
    %v4130 = vunpack.c.h.b16 %v3434
    %v4131 = vunpack.c.l.b16 %v3435
    %v4132 = vunpack.c.h.b16 %v3435
    %v4133 = vunpack.c.l.b16 %v3436
    %v4134 = vunpack.c.h.b16 %v3436
    %v4135 = vunpack.c.l.b16 %v3437
    %v4136 = vunpack.c.h.b16 %v3437
    %v4137 = vunpack.c.l.b16 %v3438
    %v4138 = vunpack.c.h.b16 %v3438
    %v4139 = vunpack.c.l.b16 %v3439
    %v4140 = vunpack.c.h.b16 %v3439
    %v4141 = vunpack.c.l.b16 %v3440
    %v4142 = vunpack.c.h.b16 %v3440
    %v4143 = vunpack.c.l.b16 %v3441
    %v4144 = vunpack.c.h.b16 %v3441
    %v4145 = vunpack.c.l.b16 %v3442
    %v4146 = vunpack.c.h.b16 %v3442
    %v4147 = vunpack.c.l.b16 %v3443
    %v4148 = vunpack.c.h.b16 %v3443
    %v4149 = vunpack.c.l.b16 %v3444
    %v4150 = vunpack.c.h.b16 %v3444
    %v4151 = vunpack.c.l.b16 %v3445
    %v4152 = vunpack.c.h.b16 %v3445
    %v4153 = vunpack.c.l.b16 %v3446
    %v4154 = vunpack.c.h.b16 %v3446
    %v4155 = vunpack.c.l.b16 %v3447
    %v4156 = vunpack.c.h.b16 %v3447
    %v4157 = vunpack.c.l.b16 %v3448
    %v4158 = vunpack.c.h.b16 %v3448
    %v4159 = vunpack.c.l.b16 %v3449
    %v4160 = vunpack.c.h.b16 %v3449
    %v4161 = vunpack.c.l.b16 %v3450
    %v4162 = vunpack.c.h.b16 %v3450
    %v4163 = vunpack.c.l.b16 %v3451
    %v4164 = vunpack.c.h.b16 %v3451
    %v4165 = vunpack.c.l.b16 %v3452
    %v4166 = vunpack.c.h.b16 %v3452
    %v4167 = vunpack.c.l.b16 %v3453
    %v4168 = vunpack.c.h.b16 %v3453
    %v4169 = vunpack.c.l.b16 %v3454
    %v4170 = vunpack.c.h.b16 %v3454
    %v4171 = vunpack.c.l.b16 %v3455
    %v4172 = vunpack.c.h.b16 %v3455
    %v4173 = vunpack.c.l.b16 %v3456
    %v4174 = vunpack.c.h.b16 %v3456
    %v4175 = vunpack.c.l.b16 %v3457
    %v4176 = vunpack.c.h.b16 %v3457
    %v4177 = vunpack.c.l.b16 %v3458
    %v4178 = vunpack.c.h.b16 %v3458
    %v4179 = vunpack.c.l.b16 %v3459
    %v4180 = vunpack.c.h.b16 %v3459
    %v4181 = vunpack.c.l.b16 %v3460
    %v4182 = vunpack.c.h.b16 %v3460
    %v4183 = vunpack.c.l.b16 %v3461
    %v4184 = vunpack.c.h.b16 %v3461
    %v4185 = vunpack.c.l.b16 %v3462
    %v4186 = vunpack.c.h.b16 %v3462
    %v4187 = vunpack.c.l.b16 %v3463
    %v4188 = vunpack.c.h.b16 %v3463
    %v4189 = vunpack.c.l.b16 %v3464
    %v4190 = vunpack.c.h.b16 %v3464
    %v4191 = vunpack.c.l.b16 %v3465
    %v4192 = vunpack.c.h.b16 %v3465
    %v4193 = vunpack.c.l.b16 %v3466
    %v4194 = vunpack.c.h.b16 %v3466
    %v4195 = vunpack.c.l.b16 %v3467
    %v4196 = vunpack.c.h.b16 %v3467
    %v4197 = vunpack.c.l.b16 %v3468
    %v4198 = vunpack.c.h.b16 %v3468
    %v4199 = vunpack.c.l.b16 %v3469
    %v4200 = vunpack.c.h.b16 %v3469
    %v4201 = vunpack.c.l.b16 %v3470
    %v4202 = vunpack.c.h.b16 %v3470
    %v4203 = vunpack.c.l.b16 %v3471
    %v4204 = vunpack.c.h.b16 %v3471
    %v4205 = vunpack.c.l.b16 %v3472
    %v4206 = vunpack.c.h.b16 %v3472
    %v4207 = vunpack.c.l.b16 %v3473
    %v4208 = vunpack.c.h.b16 %v3473
    %v4209 = vunpack.c.l.b16 %v3474
    %v4210 = vunpack.c.h.b16 %v3474
    %v4211 = vunpack.c.l.b16 %v3475
    %v4212 = vunpack.c.h.b16 %v3475
    %v4213 = vunpack.c.l.b16 %v3476
    %v4214 = vunpack.c.h.b16 %v3476
    %v4215 = vunpack.c.l.b16 %v3477
    %v4216 = vunpack.c.h.b16 %v3477
    %v4217 = vunpack.c.l.b16 %v3478
    %v4218 = vunpack.c.h.b16 %v3478
    %v4219 = vunpack.c.l.b16 %v3479
    %v4220 = vunpack.c.h.b16 %v3479
    %v4221 = vunpack.c.l.b16 %v3480
    %v4222 = vunpack.c.h.b16 %v3480
    %v4223 = vunpack.c.l.b16 %v3481
    %v4224 = vunpack.c.h.b16 %v3481
    %v4225 = vunpack.c.l.b16 %v3482
    %v4226 = vunpack.c.h.b16 %v3482
    %v4227 = vunpack.c.l.b16 %v3483
    %v4228 = vunpack.c.h.b16 %v3483
    %v4229 = vunpack.c.l.b16 %v3484
    %v4230 = vunpack.c.h.b16 %v3484
    %v4231 = vunpack.c.l.b16 %v3485
    %v4232 = vunpack.c.h.b16 %v3485
    %v4233 = vunpack.c.l.b16 %v3486
    %v4234 = vunpack.c.h.b16 %v3486
    %v4235 = vunpack.c.l.b16 %v3487
    %v4236 = vunpack.c.h.b16 %v3487
    %v4237 = vunpack.c.l.b16 %v3488
    %v4238 = vunpack.c.h.b16 %v3488
    %v4239 = vunpack.c.l.b16 %v3489
    %v4240 = vunpack.c.h.b16 %v3489
    %v4241 = vunpack.c.l.b16 %v3490
    %v4242 = vunpack.c.h.b16 %v3490
    %v4243 = vunpack.c.l.b16 %v3491
    %v4244 = vunpack.c.h.b16 %v3491
    %v4245 = vunpack.c.l.b16 %v3492
    %v4246 = vunpack.c.h.b16 %v3492
    %v4247 = vunpack.c.l.b16 %v3493
    %v4248 = vunpack.c.h.b16 %v3493
    %v4249 = vunpack.c.l.b16 %v3494
    %v4250 = vunpack.c.h.b16 %v3494
    %v4251 = vunpack.c.l.b16 %v3495
    %v4252 = vunpack.c.h.b16 %v3495
    %v4253 = vunpack.c.l.b16 %v3496
    %v4254 = vunpack.c.h.b16 %v3496
    %v4255 = vunpack.c.l.b16 %v3497
    %v4256 = vunpack.c.h.b16 %v3497
    %v4257 = vunpack.c.l.b16 %v3498
    %v4258 = vunpack.c.h.b16 %v3498
    %v4259 = vunpack.c.l.b16 %v3499
    %v4260 = vunpack.c.h.b16 %v3499
    %v4261 = vunpack.c.l.b16 %v3500
    %v4262 = vunpack.c.h.b16 %v3500
    %v4263 = vunpack.c.l.b16 %v3501
    %v4264 = vunpack.c.h.b16 %v3501
    %v4265 = vunpack.c.l.b16 %v3502
    %v4266 = vunpack.c.h.b16 %v3502
    %v4267 = vunpack.c.l.b16 %v3503
    %v4268 = vunpack.c.h.b16 %v3503
    %v4269 = vunpack.c.l.b16 %v3504
    %v4270 = vunpack.c.h.b16 %v3504
    %v4271 = vunpack.c.l.b16 %v3505
    %v4272 = vunpack.c.h.b16 %v3505
    %v4273 = vunpack.c.l.b16 %v3506
    %v4274 = vunpack.c.h.b16 %v3506
    %v4275 = vunpack.c.l.b16 %v3507
    %v4276 = vunpack.c.h.b16 %v3507
    %v4277 = vunpack.c.l.b16 %v3508
    %v4278 = vunpack.c.h.b16 %v3508
    %v4279 = vunpack.c.l.b16 %v3509
    %v4280 = vunpack.c.h.b16 %v3509
    %v4281 = vunpack.c.l.b16 %v3510
    %v4282 = vunpack.c.h.b16 %v3510
    %v4283 = vunpack.c.l.b16 %v3511
    %v4284 = vunpack.c.h.b16 %v3511
    %v4285 = vunpack.c.l.b16 %v3512
    %v4286 = vunpack.c.h.b16 %v3512
    %v4287 = vunpack.c.l.b16 %v3513
    %v4288 = vunpack.c.h.b16 %v3513
    %v4289 = vunpack.c.l.b16 %v3514
    %v4290 = vunpack.c.h.b16 %v3514
    %v4291 = vunpack.c.l.b16 %v3515
    %v4292 = vunpack.c.h.b16 %v3515
    %v4293 = vunpack.c.l.b16 %v3516
    %v4294 = vunpack.c.h.b16 %v3516
    %v4295 = vpack.c.b16 %v3787, %v3783
    %v4296 = vpack.c.b16 %v3788, %v3784
    %v4297 = vpack.c.b16 %v3789, %v3785
    %v4298 = vpack.c.b16 %v3790, %v3786
    %v4299 = vpack.c.b16 %v3795, %v3791
    %v4300 = vpack.c.b16 %v3796, %v3792
    %v4301 = vpack.c.b16 %v3797, %v3793
    %v4302 = vpack.c.b16 %v3798, %v3794
    %v4303 = vpack.c.b16 %v3803, %v3799
    %v4304 = vpack.c.b16 %v3804, %v3800
    %v4305 = vpack.c.b16 %v3805, %v3801
    %v4306 = vpack.c.b16 %v3806, %v3802
    %v4307 = vpack.c.b16 %v3811, %v3807
    %v4308 = vpack.c.b16 %v3812, %v3808
    %v4309 = vpack.c.b16 %v3813, %v3809
    %v4310 = vpack.c.b16 %v3814, %v3810
    %v4311 = vpack.c.b16 %v3819, %v3815
    %v4312 = vpack.c.b16 %v3820, %v3816
    %v4313 = vpack.c.b16 %v3821, %v3817
    %v4314 = vpack.c.b16 %v3822, %v3818
    %v4315 = vpack.c.b16 %v3827, %v3823
    %v4316 = vpack.c.b16 %v3828, %v3824
    %v4317 = vpack.c.b16 %v3829, %v3825
    %v4318 = vpack.c.b16 %v3830, %v3826
    %v4319 = vpack.c.b16 %v3835, %v3831
    %v4320 = vpack.c.b16 %v3836, %v3832
    %v4321 = vpack.c.b16 %v3837, %v3833
    %v4322 = vpack.c.b16 %v3838, %v3834
    %v4323 = vpack.c.b16 %v3843, %v3839
    %v4324 = vpack.c.b16 %v3844, %v3840
    %v4325 = vpack.c.b16 %v3845, %v3841
    %v4326 = vpack.c.b16 %v3846, %v3842
    %v4327 = vpack.c.b16 %v3851, %v3847
    %v4328 = vpack.c.b16 %v3852, %v3848
    %v4329 = vpack.c.b16 %v3853, %v3849
    %v4330 = vpack.c.b16 %v3854, %v3850
    %v4331 = vpack.c.b16 %v3859, %v3855
    %v4332 = vpack.c.b16 %v3860, %v3856
    %v4333 = vpack.c.b16 %v3861, %v3857
    %v4334 = vpack.c.b16 %v3862, %v3858
    %v4335 = vpack.c.b16 %v3867, %v3863
    %v4336 = vpack.c.b16 %v3868, %v3864
    %v4337 = vpack.c.b16 %v3869, %v3865
    %v4338 = vpack.c.b16 %v3870, %v3866
    %v4339 = vpack.c.b16 %v3875, %v3871
    %v4340 = vpack.c.b16 %v3876, %v3872
    %v4341 = vpack.c.b16 %v3877, %v3873
    %v4342 = vpack.c.b16 %v3878, %v3874
    %v4343 = vpack.c.b16 %v3883, %v3879
    %v4344 = vpack.c.b16 %v3884, %v3880
    %v4345 = vpack.c.b16 %v3885, %v3881
    %v4346 = vpack.c.b16 %v3886, %v3882
    %v4347 = vpack.c.b16 %v3891, %v3887
    %v4348 = vpack.c.b16 %v3892, %v3888
    %v4349 = vpack.c.b16 %v3893, %v3889
    %v4350 = vpack.c.b16 %v3894, %v3890
    %v4351 = vpack.c.b16 %v3899, %v3895
    %v4352 = vpack.c.b16 %v3900, %v3896
    %v4353 = vpack.c.b16 %v3901, %v3897
    %v4354 = vpack.c.b16 %v3902, %v3898
    %v4355 = vpack.c.b16 %v3907, %v3903
    %v4356 = vpack.c.b16 %v3908, %v3904
    %v4357 = vpack.c.b16 %v3909, %v3905
    %v4358 = vpack.c.b16 %v3910, %v3906
    %v4359 = vpack.c.b16 %v3915, %v3911
    %v4360 = vpack.c.b16 %v3916, %v3912
    %v4361 = vpack.c.b16 %v3917, %v3913
    %v4362 = vpack.c.b16 %v3918, %v3914
    %v4363 = vpack.c.b16 %v3923, %v3919
    %v4364 = vpack.c.b16 %v3924, %v3920
    %v4365 = vpack.c.b16 %v3925, %v3921
    %v4366 = vpack.c.b16 %v3926, %v3922
    %v4367 = vpack.c.b16 %v3931, %v3927
    %v4368 = vpack.c.b16 %v3932, %v3928
    %v4369 = vpack.c.b16 %v3933, %v3929
    %v4370 = vpack.c.b16 %v3934, %v3930
    %v4371 = vpack.c.b16 %v3939, %v3935
    %v4372 = vpack.c.b16 %v3940, %v3936
    %v4373 = vpack.c.b16 %v3941, %v3937
    %v4374 = vpack.c.b16 %v3942, %v3938
    %v4375 = vpack.c.b16 %v3947, %v3943
    %v4376 = vpack.c.b16 %v3948, %v3944
    %v4377 = vpack.c.b16 %v3949, %v3945
    %v4378 = vpack.c.b16 %v3950, %v3946
    %v4379 = vpack.c.b16 %v3955, %v3951
    %v4380 = vpack.c.b16 %v3956, %v3952
    %v4381 = vpack.c.b16 %v3957, %v3953
    %v4382 = vpack.c.b16 %v3958, %v3954
    %v4383 = vpack.c.b16 %v3963, %v3959
    %v4384 = vpack.c.b16 %v3964, %v3960
    %v4385 = vpack.c.b16 %v3965, %v3961
    %v4386 = vpack.c.b16 %v3966, %v3962
    %v4387 = vpack.c.b16 %v3971, %v3967
    %v4388 = vpack.c.b16 %v3972, %v3968
    %v4389 = vpack.c.b16 %v3973, %v3969
    %v4390 = vpack.c.b16 %v3974, %v3970
    %v4391 = vpack.c.b16 %v3979, %v3975
    %v4392 = vpack.c.b16 %v3980, %v3976
    %v4393 = vpack.c.b16 %v3981, %v3977
    %v4394 = vpack.c.b16 %v3982, %v3978
    %v4395 = vpack.c.b16 %v3987, %v3983
    %v4396 = vpack.c.b16 %v3988, %v3984
    %v4397 = vpack.c.b16 %v3989, %v3985
    %v4398 = vpack.c.b16 %v3990, %v3986
    %v4399 = vpack.c.b16 %v3995, %v3991
    %v4400 = vpack.c.b16 %v3996, %v3992
    %v4401 = vpack.c.b16 %v3997, %v3993
    %v4402 = vpack.c.b16 %v3998, %v3994
    %v4403 = vpack.c.b16 %v4003, %v3999
    %v4404 = vpack.c.b16 %v4004, %v4000
    %v4405 = vpack.c.b16 %v4005, %v4001
    %v4406 = vpack.c.b16 %v4006, %v4002
    %v4407 = vpack.c.b16 %v4011, %v4007
    %v4408 = vpack.c.b16 %v4012, %v4008
    %v4409 = vpack.c.b16 %v4013, %v4009
    %v4410 = vpack.c.b16 %v4014, %v4010
    %v4411 = vpack.c.b16 %v4019, %v4015
    %v4412 = vpack.c.b16 %v4020, %v4016
    %v4413 = vpack.c.b16 %v4021, %v4017
    %v4414 = vpack.c.b16 %v4022, %v4018
    %v4415 = vpack.c.b16 %v4027, %v4023
    %v4416 = vpack.c.b16 %v4028, %v4024
    %v4417 = vpack.c.b16 %v4029, %v4025
    %v4418 = vpack.c.b16 %v4030, %v4026
    %v4419 = vpack.c.b16 %v4035, %v4031
    %v4420 = vpack.c.b16 %v4036, %v4032
    %v4421 = vpack.c.b16 %v4037, %v4033
    %v4422 = vpack.c.b16 %v4038, %v4034
    %v4423 = vpack.c.b16 %v4043, %v4039
    %v4424 = vpack.c.b16 %v4044, %v4040
    %v4425 = vpack.c.b16 %v4045, %v4041
    %v4426 = vpack.c.b16 %v4046, %v4042
    %v4427 = vpack.c.b16 %v4051, %v4047
    %v4428 = vpack.c.b16 %v4052, %v4048
    %v4429 = vpack.c.b16 %v4053, %v4049
    %v4430 = vpack.c.b16 %v4054, %v4050
    %v4431 = vpack.c.b16 %v4059, %v4055
    %v4432 = vpack.c.b16 %v4060, %v4056
    %v4433 = vpack.c.b16 %v4061, %v4057
    %v4434 = vpack.c.b16 %v4062, %v4058
    %v4435 = vpack.c.b16 %v4067, %v4063
    %v4436 = vpack.c.b16 %v4068, %v4064
    %v4437 = vpack.c.b16 %v4069, %v4065
    %v4438 = vpack.c.b16 %v4070, %v4066
    %v4439 = vpack.c.b16 %v4075, %v4071
    %v4440 = vpack.c.b16 %v4076, %v4072
    %v4441 = vpack.c.b16 %v4077, %v4073
    %v4442 = vpack.c.b16 %v4078, %v4074
    %v4443 = vpack.c.b16 %v4083, %v4079
    %v4444 = vpack.c.b16 %v4084, %v4080
    %v4445 = vpack.c.b16 %v4085, %v4081
    %v4446 = vpack.c.b16 %v4086, %v4082
    %v4447 = vpack.c.b16 %v4091, %v4087
    %v4448 = vpack.c.b16 %v4092, %v4088
    %v4449 = vpack.c.b16 %v4093, %v4089
    %v4450 = vpack.c.b16 %v4094, %v4090
    %v4451 = vpack.c.b16 %v4099, %v4095
    %v4452 = vpack.c.b16 %v4100, %v4096
    %v4453 = vpack.c.b16 %v4101, %v4097
    %v4454 = vpack.c.b16 %v4102, %v4098
    %v4455 = vpack.c.b16 %v4107, %v4103
    %v4456 = vpack.c.b16 %v4108, %v4104
    %v4457 = vpack.c.b16 %v4109, %v4105
    %v4458 = vpack.c.b16 %v4110, %v4106
    %v4459 = vpack.c.b16 %v4115, %v4111
    %v4460 = vpack.c.b16 %v4116, %v4112
    %v4461 = vpack.c.b16 %v4117, %v4113
    %v4462 = vpack.c.b16 %v4118, %v4114
    %v4463 = vpack.c.b16 %v4123, %v4119
    %v4464 = vpack.c.b16 %v4124, %v4120
    %v4465 = vpack.c.b16 %v4125, %v4121
    %v4466 = vpack.c.b16 %v4126, %v4122
    %v4467 = vpack.c.b16 %v4131, %v4127
    %v4468 = vpack.c.b16 %v4132, %v4128
    %v4469 = vpack.c.b16 %v4133, %v4129
    %v4470 = vpack.c.b16 %v4134, %v4130
    %v4471 = vpack.c.b16 %v4139, %v4135
    %v4472 = vpack.c.b16 %v4140, %v4136
    %v4473 = vpack.c.b16 %v4141, %v4137
    %v4474 = vpack.c.b16 %v4142, %v4138
    %v4475 = vpack.c.b16 %v4147, %v4143
    %v4476 = vpack.c.b16 %v4148, %v4144
    %v4477 = vpack.c.b16 %v4149, %v4145
    %v4478 = vpack.c.b16 %v4150, %v4146
    %v4479 = vpack.c.b16 %v4155, %v4151
    %v4480 = vpack.c.b16 %v4156, %v4152
    %v4481 = vpack.c.b16 %v4157, %v4153
    %v4482 = vpack.c.b16 %v4158, %v4154
    %v4483 = vpack.c.b16 %v4163, %v4159
    %v4484 = vpack.c.b16 %v4164, %v4160
    %v4485 = vpack.c.b16 %v4165, %v4161
    %v4486 = vpack.c.b16 %v4166, %v4162
    %v4487 = vpack.c.b16 %v4171, %v4167
    %v4488 = vpack.c.b16 %v4172, %v4168
    %v4489 = vpack.c.b16 %v4173, %v4169
    %v4490 = vpack.c.b16 %v4174, %v4170
    %v4491 = vpack.c.b16 %v4179, %v4175
    %v4492 = vpack.c.b16 %v4180, %v4176
    %v4493 = vpack.c.b16 %v4181, %v4177
    %v4494 = vpack.c.b16 %v4182, %v4178
    %v4495 = vpack.c.b16 %v4187, %v4183
    %v4496 = vpack.c.b16 %v4188, %v4184
    %v4497 = vpack.c.b16 %v4189, %v4185
    %v4498 = vpack.c.b16 %v4190, %v4186
    %v4499 = vpack.c.b16 %v4195, %v4191
    %v4500 = vpack.c.b16 %v4196, %v4192
    %v4501 = vpack.c.b16 %v4197, %v4193
    %v4502 = vpack.c.b16 %v4198, %v4194
    %v4503 = vpack.c.b16 %v4203, %v4199
    %v4504 = vpack.c.b16 %v4204, %v4200
    %v4505 = vpack.c.b16 %v4205, %v4201
    %v4506 = vpack.c.b16 %v4206, %v4202
    %v4507 = vpack.c.b16 %v4211, %v4207
    %v4508 = vpack.c.b16 %v4212, %v4208
    %v4509 = vpack.c.b16 %v4213, %v4209
    %v4510 = vpack.c.b16 %v4214, %v4210
    %v4511 = vpack.c.b16 %v4219, %v4215
    %v4512 = vpack.c.b16 %v4220, %v4216
    %v4513 = vpack.c.b16 %v4221, %v4217
    %v4514 = vpack.c.b16 %v4222, %v4218
    %v4515 = vpack.c.b16 %v4227, %v4223
    %v4516 = vpack.c.b16 %v4228, %v4224
    %v4517 = vpack.c.b16 %v4229, %v4225
    %v4518 = vpack.c.b16 %v4230, %v4226
    %v4519 = vpack.c.b16 %v4235, %v4231
    %v4520 = vpack.c.b16 %v4236, %v4232
    %v4521 = vpack.c.b16 %v4237, %v4233
    %v4522 = vpack.c.b16 %v4238, %v4234
    %v4523 = vpack.c.b16 %v4243, %v4239
    %v4524 = vpack.c.b16 %v4244, %v4240
    %v4525 = vpack.c.b16 %v4245, %v4241
    %v4526 = vpack.c.b16 %v4246, %v4242
    %v4527 = vpack.c.b16 %v4251, %v4247
    %v4528 = vpack.c.b16 %v4252, %v4248
    %v4529 = vpack.c.b16 %v4253, %v4249
    %v4530 = vpack.c.b16 %v4254, %v4250
    %v4531 = vpack.c.b16 %v4259, %v4255
    %v4532 = vpack.c.b16 %v4260, %v4256
    %v4533 = vpack.c.b16 %v4261, %v4257
    %v4534 = vpack.c.b16 %v4262, %v4258
    %v4535 = vpack.c.b16 %v4267, %v4263
    %v4536 = vpack.c.b16 %v4268, %v4264
    %v4537 = vpack.c.b16 %v4269, %v4265
    %v4538 = vpack.c.b16 %v4270, %v4266
    %v4539 = vpack.c.b16 %v4275, %v4271
    %v4540 = vpack.c.b16 %v4276, %v4272
    %v4541 = vpack.c.b16 %v4277, %v4273
    %v4542 = vpack.c.b16 %v4278, %v4274
    %v4543 = vpack.c.b16 %v4283, %v4279
    %v4544 = vpack.c.b16 %v4284, %v4280
    %v4545 = vpack.c.b16 %v4285, %v4281
    %v4546 = vpack.c.b16 %v4286, %v4282
    %v4547 = vpack.c.b16 %v4291, %v4287
    %v4548 = vpack.c.b16 %v4292, %v4288
    %v4549 = vpack.c.b16 %v4293, %v4289
    %v4550 = vpack.c.b16 %v4294, %v4290
    %4807 = vmatpush.bf16.msra.mxu0 %v4323
    %4808 = vmatpush.bf16.msra.mxu0 %v4319
    %4809 = vmatpush.bf16.msra.mxu0 %v4315
    %4810 = vmatpush.bf16.msra.mxu0 %v4311
    %4811 = vmatpush.bf16.msra.mxu0 %v4307
    %4812 = vmatpush.bf16.msra.mxu0 %v4303
    %4813 = vmatpush.bf16.msra.mxu0 %v4299
    %4814 = vmatpush.bf16.msra.mxu0 %v4295
    %4815 = vmatmul.bf16.gmra.mxu0 %v3253
    %v4816 = vpop.f32.mrf.mxu0
    %v4817 = vadd.f32 %v3519, %v4816
    %v4818 = vpop.f32.mrf.mxu0
    %4819 = vdwg.mxu0
    %4820 = vmatpush.bf16.msra.mxu0 %v4355
    %4821 = vmatpush.bf16.msra.mxu0 %v4351
    %4822 = vmatpush.bf16.msra.mxu0 %v4347
    %4823 = vmatpush.bf16.msra.mxu0 %v4343
    %4824 = vmatpush.bf16.msra.mxu0 %v4339
    %4825 = vmatpush.bf16.msra.mxu0 %v4335
    %4826 = vmatpush.bf16.msra.mxu0 %v4331
    %4827 = vmatpush.bf16.msra.mxu0 %v4327
    %4828 = vmatmul.bf16.gmra.mxu0 %v3254
    %v4829 = vpop.f32.mrf.mxu0
    %v4830 = vadd.f32 %v4817, %v4829
    %v4831 = vpop.f32.mrf.mxu0
    %4832 = vdwg.mxu0
    %4833 = vmatpush.bf16.msra.mxu0 %v4387
    %4834 = vmatpush.bf16.msra.mxu0 %v4383
    %4835 = vmatpush.bf16.msra.mxu0 %v4379
    %4836 = vmatpush.bf16.msra.mxu0 %v4375
    %4837 = vmatpush.bf16.msra.mxu0 %v4371
    %4838 = vmatpush.bf16.msra.mxu0 %v4367
    %4839 = vmatpush.bf16.msra.mxu0 %v4363
    %4840 = vmatpush.bf16.msra.mxu0 %v4359
    %4841 = vmatmul.bf16.gmra.mxu0 %v3255
    %v4842 = vpop.f32.mrf.mxu0
    %v4843 = vadd.f32 %v4830, %v4842
    %v4844 = vpop.f32.mrf.mxu0
    %4845 = vdwg.mxu0
    %4846 = vmatpush.bf16.msra.mxu0 %v4419
    %4847 = vmatpush.bf16.msra.mxu0 %v4415
    %4848 = vmatpush.bf16.msra.mxu0 %v4411
    %4849 = vmatpush.bf16.msra.mxu0 %v4407
    %4850 = vmatpush.bf16.msra.mxu0 %v4403
    %4851 = vmatpush.bf16.msra.mxu0 %v4399
    %4852 = vmatpush.bf16.msra.mxu0 %v4395
    %4853 = vmatpush.bf16.msra.mxu0 %v4391
    %4854 = vmatmul.bf16.gmra.mxu0 %v3256
    %v4855 = vpop.f32.mrf.mxu0
    %v4856 = vadd.f32 %v4843, %v4855
    %v4857 = vpop.f32.mrf.mxu0
    %4858 = vdwg.mxu0
    %4859 = vmatpush.bf16.msra.mxu0 %v4451
    %4860 = vmatpush.bf16.msra.mxu0 %v4447
    %4861 = vmatpush.bf16.msra.mxu0 %v4443
    %4862 = vmatpush.bf16.msra.mxu0 %v4439
    %4863 = vmatpush.bf16.msra.mxu0 %v4435
    %4864 = vmatpush.bf16.msra.mxu0 %v4431
    %4865 = vmatpush.bf16.msra.mxu0 %v4427
    %4866 = vmatpush.bf16.msra.mxu0 %v4423
    %4867 = vmatmul.bf16.gmra.mxu0 %v3257
    %v4868 = vpop.f32.mrf.mxu0
    %v4869 = vadd.f32 %v4856, %v4868
    %v4870 = vpop.f32.mrf.mxu0
    %4871 = vdwg.mxu0
    %4872 = vmatpush.bf16.msra.mxu0 %v4483
    %4873 = vmatpush.bf16.msra.mxu0 %v4479
    %4874 = vmatpush.bf16.msra.mxu0 %v4475
    %4875 = vmatpush.bf16.msra.mxu0 %v4471
    %4876 = vmatpush.bf16.msra.mxu0 %v4467
    %4877 = vmatpush.bf16.msra.mxu0 %v4463
    %4878 = vmatpush.bf16.msra.mxu0 %v4459
    %4879 = vmatpush.bf16.msra.mxu0 %v4455
    %4880 = vmatmul.bf16.gmra.mxu0 %v3258
    %v4881 = vpop.f32.mrf.mxu0
    %v4882 = vadd.f32 %v4869, %v4881
    %v4883 = vpop.f32.mrf.mxu0
    %4884 = vdwg.mxu0
    %4885 = vmatpush.bf16.msra.mxu0 %v4515
    %4886 = vmatpush.bf16.msra.mxu0 %v4511
    %4887 = vmatpush.bf16.msra.mxu0 %v4507
    %4888 = vmatpush.bf16.msra.mxu0 %v4503
    %4889 = vmatpush.bf16.msra.mxu0 %v4499
    %4890 = vmatpush.bf16.msra.mxu0 %v4495
    %4891 = vmatpush.bf16.msra.mxu0 %v4491
    %4892 = vmatpush.bf16.msra.mxu0 %v4487
    %4893 = vmatmul.bf16.gmra.mxu0 %v3259
    %v4894 = vpop.f32.mrf.mxu0
    %v4895 = vadd.f32 %v4882, %v4894
    %v4896 = vpop.f32.mrf.mxu0
    %4897 = vdwg.mxu0
    %4898 = vmatpush.bf16.msra.mxu0 %v4547
    %4899 = vmatpush.bf16.msra.mxu0 %v4543
    %4900 = vmatpush.bf16.msra.mxu0 %v4539
    %4901 = vmatpush.bf16.msra.mxu0 %v4535
    %4902 = vmatpush.bf16.msra.mxu0 %v4531
    %4903 = vmatpush.bf16.msra.mxu0 %v4527
    %4904 = vmatpush.bf16.msra.mxu0 %v4523
    %4905 = vmatpush.bf16.msra.mxu0 %v4519
    %4906 = vmatmul.bf16.gmra.mxu0 %v3260
    %v4907 = vpop.f32.mrf.mxu0
    %v4908 = vadd.f32 %v4895, %v4907
    %v4909 = vpop.f32.mrf.mxu0
    %4910 = vdwg.mxu0
    %4911 = vmatpush.bf16.msra.mxu0 %v4324
    %4912 = vmatpush.bf16.msra.mxu0 %v4320
    %4913 = vmatpush.bf16.msra.mxu0 %v4316
    %4914 = vmatpush.bf16.msra.mxu0 %v4312
    %4915 = vmatpush.bf16.msra.mxu0 %v4308
    %4916 = vmatpush.bf16.msra.mxu0 %v4304
    %4917 = vmatpush.bf16.msra.mxu0 %v4300
    %4918 = vmatpush.bf16.msra.mxu0 %v4296
    %4919 = vmatmul.bf16.gmra.mxu0 %v3253
    %v4920 = vpop.f32.mrf.mxu0
    %v4921 = vadd.f32 %v3520, %v4920
    %v4922 = vpop.f32.mrf.mxu0
    %4923 = vdwg.mxu0
    %4924 = vmatpush.bf16.msra.mxu0 %v4356
    %4925 = vmatpush.bf16.msra.mxu0 %v4352
    %4926 = vmatpush.bf16.msra.mxu0 %v4348
    %4927 = vmatpush.bf16.msra.mxu0 %v4344
    %4928 = vmatpush.bf16.msra.mxu0 %v4340
    %4929 = vmatpush.bf16.msra.mxu0 %v4336
    %4930 = vmatpush.bf16.msra.mxu0 %v4332
    %4931 = vmatpush.bf16.msra.mxu0 %v4328
    %4932 = vmatmul.bf16.gmra.mxu0 %v3254
    %v4933 = vpop.f32.mrf.mxu0
    %v4934 = vadd.f32 %v4921, %v4933
    %v4935 = vpop.f32.mrf.mxu0
    %4936 = vdwg.mxu0
    %4937 = vmatpush.bf16.msra.mxu0 %v4388
    %4938 = vmatpush.bf16.msra.mxu0 %v4384
    %4939 = vmatpush.bf16.msra.mxu0 %v4380
    %4940 = vmatpush.bf16.msra.mxu0 %v4376
    %4941 = vmatpush.bf16.msra.mxu0 %v4372
    %4942 = vmatpush.bf16.msra.mxu0 %v4368
    %4943 = vmatpush.bf16.msra.mxu0 %v4364
    %4944 = vmatpush.bf16.msra.mxu0 %v4360
    %4945 = vmatmul.bf16.gmra.mxu0 %v3255
    %v4946 = vpop.f32.mrf.mxu0
    %v4947 = vadd.f32 %v4934, %v4946
    %v4948 = vpop.f32.mrf.mxu0
    %4949 = vdwg.mxu0
    %4950 = vmatpush.bf16.msra.mxu0 %v4420
    %4951 = vmatpush.bf16.msra.mxu0 %v4416
    %4952 = vmatpush.bf16.msra.mxu0 %v4412
    %4953 = vmatpush.bf16.msra.mxu0 %v4408
    %4954 = vmatpush.bf16.msra.mxu0 %v4404
    %4955 = vmatpush.bf16.msra.mxu0 %v4400
    %4956 = vmatpush.bf16.msra.mxu0 %v4396
    %4957 = vmatpush.bf16.msra.mxu0 %v4392
    %4958 = vmatmul.bf16.gmra.mxu0 %v3256
    %v4959 = vpop.f32.mrf.mxu0
    %v4960 = vadd.f32 %v4947, %v4959
    %v4961 = vpop.f32.mrf.mxu0
    %4962 = vdwg.mxu0
    %4963 = vmatpush.bf16.msra.mxu0 %v4452
    %4964 = vmatpush.bf16.msra.mxu0 %v4448
    %4965 = vmatpush.bf16.msra.mxu0 %v4444
    %4966 = vmatpush.bf16.msra.mxu0 %v4440
    %4967 = vmatpush.bf16.msra.mxu0 %v4436
    %4968 = vmatpush.bf16.msra.mxu0 %v4432
    %4969 = vmatpush.bf16.msra.mxu0 %v4428
    %4970 = vmatpush.bf16.msra.mxu0 %v4424
    %4971 = vmatmul.bf16.gmra.mxu0 %v3257
    %v4972 = vpop.f32.mrf.mxu0
    %v4973 = vadd.f32 %v4960, %v4972
    %v4974 = vpop.f32.mrf.mxu0
    %4975 = vdwg.mxu0
    %4976 = vmatpush.bf16.msra.mxu0 %v4484
    %4977 = vmatpush.bf16.msra.mxu0 %v4480
    %4978 = vmatpush.bf16.msra.mxu0 %v4476
    %4979 = vmatpush.bf16.msra.mxu0 %v4472
    %4980 = vmatpush.bf16.msra.mxu0 %v4468
    %4981 = vmatpush.bf16.msra.mxu0 %v4464
    %4982 = vmatpush.bf16.msra.mxu0 %v4460
    %4983 = vmatpush.bf16.msra.mxu0 %v4456
    %4984 = vmatmul.bf16.gmra.mxu0 %v3258
    %v4985 = vpop.f32.mrf.mxu0
    %v4986 = vadd.f32 %v4973, %v4985
    %v4987 = vpop.f32.mrf.mxu0
    %4988 = vdwg.mxu0
    %4989 = vmatpush.bf16.msra.mxu0 %v4516
    %4990 = vmatpush.bf16.msra.mxu0 %v4512
    %4991 = vmatpush.bf16.msra.mxu0 %v4508
    %4992 = vmatpush.bf16.msra.mxu0 %v4504
    %4993 = vmatpush.bf16.msra.mxu0 %v4500
    %4994 = vmatpush.bf16.msra.mxu0 %v4496
    %4995 = vmatpush.bf16.msra.mxu0 %v4492
    %4996 = vmatpush.bf16.msra.mxu0 %v4488
    %4997 = vmatmul.bf16.gmra.mxu0 %v3259
    %v4998 = vpop.f32.mrf.mxu0
    %v4999 = vadd.f32 %v4986, %v4998
    %v5000 = vpop.f32.mrf.mxu0
    %5001 = vdwg.mxu0
    %5002 = vmatpush.bf16.msra.mxu0 %v4548
    %5003 = vmatpush.bf16.msra.mxu0 %v4544
    %5004 = vmatpush.bf16.msra.mxu0 %v4540
    %5005 = vmatpush.bf16.msra.mxu0 %v4536
    %5006 = vmatpush.bf16.msra.mxu0 %v4532
    %5007 = vmatpush.bf16.msra.mxu0 %v4528
    %5008 = vmatpush.bf16.msra.mxu0 %v4524
    %5009 = vmatpush.bf16.msra.mxu0 %v4520
    %5010 = vmatmul.bf16.gmra.mxu0 %v3260
    %v5011 = vpop.f32.mrf.mxu0
    %v5012 = vadd.f32 %v4999, %v5011
    %v5013 = vpop.f32.mrf.mxu0
    %5014 = vdwg.mxu0
    %5015 = vmatpush.bf16.msra.mxu0 %v4325
    %5016 = vmatpush.bf16.msra.mxu0 %v4321
    %5017 = vmatpush.bf16.msra.mxu0 %v4317
    %5018 = vmatpush.bf16.msra.mxu0 %v4313
    %5019 = vmatpush.bf16.msra.mxu0 %v4309
    %5020 = vmatpush.bf16.msra.mxu0 %v4305
    %5021 = vmatpush.bf16.msra.mxu0 %v4301
    %5022 = vmatpush.bf16.msra.mxu0 %v4297
    %5023 = vmatmul.bf16.gmra.mxu0 %v3253
    %v5024 = vpop.f32.mrf.mxu0
    %v5025 = vadd.f32 %v3521, %v5024
    %v5026 = vpop.f32.mrf.mxu0
    %5027 = vdwg.mxu0
    %5028 = vmatpush.bf16.msra.mxu0 %v4357
    %5029 = vmatpush.bf16.msra.mxu0 %v4353
    %5030 = vmatpush.bf16.msra.mxu0 %v4349
    %5031 = vmatpush.bf16.msra.mxu0 %v4345
    %5032 = vmatpush.bf16.msra.mxu0 %v4341
    %5033 = vmatpush.bf16.msra.mxu0 %v4337
    %5034 = vmatpush.bf16.msra.mxu0 %v4333
    %5035 = vmatpush.bf16.msra.mxu0 %v4329
    %5036 = vmatmul.bf16.gmra.mxu0 %v3254
    %v5037 = vpop.f32.mrf.mxu0
    %v5038 = vadd.f32 %v5025, %v5037
    %v5039 = vpop.f32.mrf.mxu0
    %5040 = vdwg.mxu0
    %5041 = vmatpush.bf16.msra.mxu0 %v4389
    %5042 = vmatpush.bf16.msra.mxu0 %v4385
    %5043 = vmatpush.bf16.msra.mxu0 %v4381
    %5044 = vmatpush.bf16.msra.mxu0 %v4377
    %5045 = vmatpush.bf16.msra.mxu0 %v4373
    %5046 = vmatpush.bf16.msra.mxu0 %v4369
    %5047 = vmatpush.bf16.msra.mxu0 %v4365
    %5048 = vmatpush.bf16.msra.mxu0 %v4361
    %5049 = vmatmul.bf16.gmra.mxu0 %v3255
    %v5050 = vpop.f32.mrf.mxu0
    %v5051 = vadd.f32 %v5038, %v5050
    %v5052 = vpop.f32.mrf.mxu0
    %5053 = vdwg.mxu0
    %5054 = vmatpush.bf16.msra.mxu0 %v4421
    %5055 = vmatpush.bf16.msra.mxu0 %v4417
    %5056 = vmatpush.bf16.msra.mxu0 %v4413
    %5057 = vmatpush.bf16.msra.mxu0 %v4409
    %5058 = vmatpush.bf16.msra.mxu0 %v4405
    %5059 = vmatpush.bf16.msra.mxu0 %v4401
    %5060 = vmatpush.bf16.msra.mxu0 %v4397
    %5061 = vmatpush.bf16.msra.mxu0 %v4393
    %5062 = vmatmul.bf16.gmra.mxu0 %v3256
    %v5063 = vpop.f32.mrf.mxu0
    %v5064 = vadd.f32 %v5051, %v5063
    %v5065 = vpop.f32.mrf.mxu0
    %5066 = vdwg.mxu0
    %5067 = vmatpush.bf16.msra.mxu0 %v4453
    %5068 = vmatpush.bf16.msra.mxu0 %v4449
    %5069 = vmatpush.bf16.msra.mxu0 %v4445
    %5070 = vmatpush.bf16.msra.mxu0 %v4441
    %5071 = vmatpush.bf16.msra.mxu0 %v4437
    %5072 = vmatpush.bf16.msra.mxu0 %v4433
    %5073 = vmatpush.bf16.msra.mxu0 %v4429
    %5074 = vmatpush.bf16.msra.mxu0 %v4425
    %5075 = vmatmul.bf16.gmra.mxu0 %v3257
    %v5076 = vpop.f32.mrf.mxu0
    %v5077 = vadd.f32 %v5064, %v5076
    %v5078 = vpop.f32.mrf.mxu0
    %5079 = vdwg.mxu0
    %5080 = vmatpush.bf16.msra.mxu0 %v4485
    %5081 = vmatpush.bf16.msra.mxu0 %v4481
    %5082 = vmatpush.bf16.msra.mxu0 %v4477
    %5083 = vmatpush.bf16.msra.mxu0 %v4473
    %5084 = vmatpush.bf16.msra.mxu0 %v4469
    %5085 = vmatpush.bf16.msra.mxu0 %v4465
    %5086 = vmatpush.bf16.msra.mxu0 %v4461
    %5087 = vmatpush.bf16.msra.mxu0 %v4457
    %5088 = vmatmul.bf16.gmra.mxu0 %v3258
    %v5089 = vpop.f32.mrf.mxu0
    %v5090 = vadd.f32 %v5077, %v5089
    %v5091 = vpop.f32.mrf.mxu0
    %5092 = vdwg.mxu0
    %5093 = vmatpush.bf16.msra.mxu0 %v4517
    %5094 = vmatpush.bf16.msra.mxu0 %v4513
    %5095 = vmatpush.bf16.msra.mxu0 %v4509
    %5096 = vmatpush.bf16.msra.mxu0 %v4505
    %5097 = vmatpush.bf16.msra.mxu0 %v4501
    %5098 = vmatpush.bf16.msra.mxu0 %v4497
    %5099 = vmatpush.bf16.msra.mxu0 %v4493
    %5100 = vmatpush.bf16.msra.mxu0 %v4489
    %5101 = vmatmul.bf16.gmra.mxu0 %v3259
    %v5102 = vpop.f32.mrf.mxu0
    %v5103 = vadd.f32 %v5090, %v5102
    %v5104 = vpop.f32.mrf.mxu0
    %5105 = vdwg.mxu0
    %5106 = vmatpush.bf16.msra.mxu0 %v4549
    %5107 = vmatpush.bf16.msra.mxu0 %v4545
    %5108 = vmatpush.bf16.msra.mxu0 %v4541
    %5109 = vmatpush.bf16.msra.mxu0 %v4537
    %5110 = vmatpush.bf16.msra.mxu0 %v4533
    %5111 = vmatpush.bf16.msra.mxu0 %v4529
    %5112 = vmatpush.bf16.msra.mxu0 %v4525
    %5113 = vmatpush.bf16.msra.mxu0 %v4521
    %5114 = vmatmul.bf16.gmra.mxu0 %v3260
    %v5115 = vpop.f32.mrf.mxu0
    %v5116 = vadd.f32 %v5103, %v5115
    %v5117 = vpop.f32.mrf.mxu0
    %5118 = vdwg.mxu0
    %5119 = vmatpush.bf16.msra.mxu0 %v4326
    %5120 = vmatpush.bf16.msra.mxu0 %v4322
    %5121 = vmatpush.bf16.msra.mxu0 %v4318
    %5122 = vmatpush.bf16.msra.mxu0 %v4314
    %5123 = vmatpush.bf16.msra.mxu0 %v4310
    %5124 = vmatpush.bf16.msra.mxu0 %v4306
    %5125 = vmatpush.bf16.msra.mxu0 %v4302
    %5126 = vmatpush.bf16.msra.mxu0 %v4298
    %5127 = vmatmul.bf16.gmra.mxu0 %v3253
    %v5128 = vpop.f32.mrf.mxu0
    %v5129 = vadd.f32 %v3522, %v5128
    %v5130 = vpop.f32.mrf.mxu0
    %5131 = vdwg.mxu0
    %5132 = vmatpush.bf16.msra.mxu0 %v4358
    %5133 = vmatpush.bf16.msra.mxu0 %v4354
    %5134 = vmatpush.bf16.msra.mxu0 %v4350
    %5135 = vmatpush.bf16.msra.mxu0 %v4346
    %5136 = vmatpush.bf16.msra.mxu0 %v4342
    %5137 = vmatpush.bf16.msra.mxu0 %v4338
    %5138 = vmatpush.bf16.msra.mxu0 %v4334
    %5139 = vmatpush.bf16.msra.mxu0 %v4330
    %5140 = vmatmul.bf16.gmra.mxu0 %v3254
    %v5141 = vpop.f32.mrf.mxu0
    %v5142 = vadd.f32 %v5129, %v5141
    %v5143 = vpop.f32.mrf.mxu0
    %5144 = vdwg.mxu0
    %5145 = vmatpush.bf16.msra.mxu0 %v4390
    %5146 = vmatpush.bf16.msra.mxu0 %v4386
    %5147 = vmatpush.bf16.msra.mxu0 %v4382
    %5148 = vmatpush.bf16.msra.mxu0 %v4378
    %5149 = vmatpush.bf16.msra.mxu0 %v4374
    %5150 = vmatpush.bf16.msra.mxu0 %v4370
    %5151 = vmatpush.bf16.msra.mxu0 %v4366
    %5152 = vmatpush.bf16.msra.mxu0 %v4362
    %5153 = vmatmul.bf16.gmra.mxu0 %v3255
    %v5154 = vpop.f32.mrf.mxu0
    %v5155 = vadd.f32 %v5142, %v5154
    %v5156 = vpop.f32.mrf.mxu0
    %5157 = vdwg.mxu0
    %5158 = vmatpush.bf16.msra.mxu0 %v4422
    %5159 = vmatpush.bf16.msra.mxu0 %v4418
    %5160 = vmatpush.bf16.msra.mxu0 %v4414
    %5161 = vmatpush.bf16.msra.mxu0 %v4410
    %5162 = vmatpush.bf16.msra.mxu0 %v4406
    %5163 = vmatpush.bf16.msra.mxu0 %v4402
    %5164 = vmatpush.bf16.msra.mxu0 %v4398
    %5165 = vmatpush.bf16.msra.mxu0 %v4394
    %5166 = vmatmul.bf16.gmra.mxu0 %v3256
    %v5167 = vpop.f32.mrf.mxu0
    %v5168 = vadd.f32 %v5155, %v5167
    %v5169 = vpop.f32.mrf.mxu0
    %5170 = vdwg.mxu0
    %5171 = vmatpush.bf16.msra.mxu0 %v4454
    %5172 = vmatpush.bf16.msra.mxu0 %v4450
    %5173 = vmatpush.bf16.msra.mxu0 %v4446
    %5174 = vmatpush.bf16.msra.mxu0 %v4442
    %5175 = vmatpush.bf16.msra.mxu0 %v4438
    %5176 = vmatpush.bf16.msra.mxu0 %v4434
    %5177 = vmatpush.bf16.msra.mxu0 %v4430
    %5178 = vmatpush.bf16.msra.mxu0 %v4426
    %5179 = vmatmul.bf16.gmra.mxu0 %v3257
    %v5180 = vpop.f32.mrf.mxu0
    %v5181 = vadd.f32 %v5168, %v5180
    %v5182 = vpop.f32.mrf.mxu0
    %5183 = vdwg.mxu0
    %5184 = vmatpush.bf16.msra.mxu0 %v4486
    %5185 = vmatpush.bf16.msra.mxu0 %v4482
    %5186 = vmatpush.bf16.msra.mxu0 %v4478
    %5187 = vmatpush.bf16.msra.mxu0 %v4474
    %5188 = vmatpush.bf16.msra.mxu0 %v4470
    %5189 = vmatpush.bf16.msra.mxu0 %v4466
    %5190 = vmatpush.bf16.msra.mxu0 %v4462
    %5191 = vmatpush.bf16.msra.mxu0 %v4458
    %5192 = vmatmul.bf16.gmra.mxu0 %v3258
    %v5193 = vpop.f32.mrf.mxu0
    %v5194 = vadd.f32 %v5181, %v5193
    %v5195 = vpop.f32.mrf.mxu0
    %5196 = vdwg.mxu0
    %5197 = vmatpush.bf16.msra.mxu0 %v4518
    %5198 = vmatpush.bf16.msra.mxu0 %v4514
    %5199 = vmatpush.bf16.msra.mxu0 %v4510
    %5200 = vmatpush.bf16.msra.mxu0 %v4506
    %5201 = vmatpush.bf16.msra.mxu0 %v4502
    %5202 = vmatpush.bf16.msra.mxu0 %v4498
    %5203 = vmatpush.bf16.msra.mxu0 %v4494
    %5204 = vmatpush.bf16.msra.mxu0 %v4490
    %5205 = vmatmul.bf16.gmra.mxu0 %v3259
    %v5206 = vpop.f32.mrf.mxu0
    %v5207 = vadd.f32 %v5194, %v5206
    %v5208 = vpop.f32.mrf.mxu0
    %5209 = vdwg.mxu0
    %5210 = vmatpush.bf16.msra.mxu0 %v4550
    %5211 = vmatpush.bf16.msra.mxu0 %v4546
    %5212 = vmatpush.bf16.msra.mxu0 %v4542
    %5213 = vmatpush.bf16.msra.mxu0 %v4538
    %5214 = vmatpush.bf16.msra.mxu0 %v4534
    %5215 = vmatpush.bf16.msra.mxu0 %v4530
    %5216 = vmatpush.bf16.msra.mxu0 %v4526
    %5217 = vmatpush.bf16.msra.mxu0 %v4522
    %5218 = vmatmul.bf16.gmra.mxu0 %v3260
    %v5219 = vpop.f32.mrf.mxu0
    %v5220 = vadd.f32 %v5207, %v5219
    %v5221 = vpop.f32.mrf.mxu0
    %5222 = vdwg.mxu0
    %v5223 = vmax.f32 %v4908, 0.0
    %v5224 = vmax.f32 %v5012, 0.0
    %v5225 = vmax.f32 %v5116, 0.0
    %v5226 = vmax.f32 %v5220, 0.0
    %v5227 = vpack.c.bf16 %v5223, %v5223
    %v5228 = vpack.c.bf16 %v5224, %v5224
    %v5229 = vpack.c.bf16 %v5225, %v5225
    %v5230 = vpack.c.bf16 %v5226, %v5226
    %v5231 = vld [vmem:[#allocation11] sm:$0xf]
    %v5232 = vld [vmem:[#allocation11 + $0x4] sm:$0xf]
    %v5233 = vld [vmem:[#allocation11 + $0x8] sm:$0xf]
    %v5234 = vld [vmem:[#allocation11 + $0xc] sm:$0xf]
    %v5235 = vld [vmem:[#allocation11 + $0x10] sm:$0xf]
    %v5236 = vld [vmem:[#allocation11 + $0x14] sm:$0xf]
    %v5237 = vld [vmem:[#allocation11 + $0x18] sm:$0xf]
    %v5238 = vld [vmem:[#allocation11 + $0x1c] sm:$0xf]
    %v5239 = vld [vmem:[#allocation11 + $0x20] sm:$0xf]
    %v5240 = vld [vmem:[#allocation11 + $0x24] sm:$0xf]
    %v5241 = vld [vmem:[#allocation11 + $0x28] sm:$0xf]
    %v5242 = vld [vmem:[#allocation11 + $0x2c] sm:$0xf]
    %v5243 = vld [vmem:[#allocation11 + $0x30] sm:$0xf]
    %v5244 = vld [vmem:[#allocation11 + $0x34] sm:$0xf]
    %v5245 = vld [vmem:[#allocation11 + $0x38] sm:$0xf]
    %v5246 = vld [vmem:[#allocation11 + $0x3c] sm:$0xf]
    %v5247 = vld [vmem:[#allocation11 + $0x40] sm:$0xf]
    %v5248 = vld [vmem:[#allocation11 + $0x44] sm:$0xf]
    %v5249 = vld [vmem:[#allocation11 + $0x48] sm:$0xf]
    %v5250 = vld [vmem:[#allocation11 + $0x4c] sm:$0xf]
    %v5251 = vld [vmem:[#allocation11 + $0x50] sm:$0xf]
    %v5252 = vld [vmem:[#allocation11 + $0x54] sm:$0xf]
    %v5253 = vld [vmem:[#allocation11 + $0x58] sm:$0xf]
    %v5254 = vld [vmem:[#allocation11 + $0x5c] sm:$0xf]
    %v5255 = vld [vmem:[#allocation11 + $0x60] sm:$0xf]
    %v5256 = vld [vmem:[#allocation11 + $0x64] sm:$0xf]
    %v5257 = vld [vmem:[#allocation11 + $0x68] sm:$0xf]
    %v5258 = vld [vmem:[#allocation11 + $0x6c] sm:$0xf]
    %v5259 = vld [vmem:[#allocation11 + $0x70] sm:$0xf]
    %v5260 = vld [vmem:[#allocation11 + $0x74] sm:$0xf]
    %v5261 = vld [vmem:[#allocation11 + $0x78] sm:$0xf]
    %v5262 = vld [vmem:[#allocation11 + $0x7c] sm:$0xf]
    %v5263 = vld [vmem:[#allocation11 + $0x80] sm:$0xf]
    %v5264 = vld [vmem:[#allocation11 + $0x84] sm:$0xf]
    %v5265 = vld [vmem:[#allocation11 + $0x88] sm:$0xf]
    %v5266 = vld [vmem:[#allocation11 + $0x8c] sm:$0xf]
    %v5267 = vld [vmem:[#allocation11 + $0x90] sm:$0xf]
    %v5268 = vld [vmem:[#allocation11 + $0x94] sm:$0xf]
    %v5269 = vld [vmem:[#allocation11 + $0x98] sm:$0xf]
    %v5270 = vld [vmem:[#allocation11 + $0x9c] sm:$0xf]
    %v5271 = vld [vmem:[#allocation11 + $0xa0] sm:$0xf]
    %v5272 = vld [vmem:[#allocation11 + $0xa4] sm:$0xf]
    %v5273 = vld [vmem:[#allocation11 + $0xa8] sm:$0xf]
    %v5274 = vld [vmem:[#allocation11 + $0xac] sm:$0xf]
    %v5275 = vld [vmem:[#allocation11 + $0xb0] sm:$0xf]
    %v5276 = vld [vmem:[#allocation11 + $0xb4] sm:$0xf]
    %v5277 = vld [vmem:[#allocation11 + $0xb8] sm:$0xf]
    %v5278 = vld [vmem:[#allocation11 + $0xbc] sm:$0xf]
    %v5279 = vld [vmem:[#allocation11 + $0xc0] sm:$0xf]
    %v5280 = vld [vmem:[#allocation11 + $0xc4] sm:$0xf]
    %v5281 = vld [vmem:[#allocation11 + $0xc8] sm:$0xf]
    %v5282 = vld [vmem:[#allocation11 + $0xcc] sm:$0xf]
    %v5283 = vld [vmem:[#allocation11 + $0xd0] sm:$0xf]
    %v5284 = vld [vmem:[#allocation11 + $0xd4] sm:$0xf]
    %v5285 = vld [vmem:[#allocation11 + $0xd8] sm:$0xf]
    %v5286 = vld [vmem:[#allocation11 + $0xdc] sm:$0xf]
    %v5287 = vld [vmem:[#allocation11 + $0xe0] sm:$0xf]
    %v5288 = vld [vmem:[#allocation11 + $0xe4] sm:$0xf]
    %v5289 = vld [vmem:[#allocation11 + $0xe8] sm:$0xf]
    %v5290 = vld [vmem:[#allocation11 + $0xec] sm:$0xf]
    %v5291 = vld [vmem:[#allocation11 + $0xf0] sm:$0xf]
    %v5292 = vld [vmem:[#allocation11 + $0xf4] sm:$0xf]
    %v5293 = vld [vmem:[#allocation11 + $0xf8] sm:$0xf]
    %v5294 = vld [vmem:[#allocation11 + $0xfc] sm:$0xf]
    %v5295 = vld [vmem:[#allocation13] sm:$0x1]
    %v5297 = vperm.slane %v5295, 0
    %v5363 = vunpack.c.l.b16 %v5231
    %v5364 = vunpack.c.l.b16 %v5232
    %v5365 = vunpack.c.l.b16 %v5233
    %v5366 = vunpack.c.l.b16 %v5234
    %v5367 = vunpack.c.l.b16 %v5235
    %v5368 = vunpack.c.l.b16 %v5236
    %v5369 = vunpack.c.l.b16 %v5237
    %v5370 = vunpack.c.l.b16 %v5238
    %v5371 = vunpack.c.l.b16 %v5239
    %v5372 = vunpack.c.l.b16 %v5240
    %v5373 = vunpack.c.l.b16 %v5241
    %v5374 = vunpack.c.l.b16 %v5242
    %v5375 = vunpack.c.l.b16 %v5243
    %v5376 = vunpack.c.l.b16 %v5244
    %v5377 = vunpack.c.l.b16 %v5245
    %v5378 = vunpack.c.l.b16 %v5246
    %v5379 = vunpack.c.l.b16 %v5247
    %v5380 = vunpack.c.l.b16 %v5248
    %v5381 = vunpack.c.l.b16 %v5249
    %v5382 = vunpack.c.l.b16 %v5250
    %v5383 = vunpack.c.l.b16 %v5251
    %v5384 = vunpack.c.l.b16 %v5252
    %v5385 = vunpack.c.l.b16 %v5253
    %v5386 = vunpack.c.l.b16 %v5254
    %v5387 = vunpack.c.l.b16 %v5255
    %v5388 = vunpack.c.l.b16 %v5256
    %v5389 = vunpack.c.l.b16 %v5257
    %v5390 = vunpack.c.l.b16 %v5258
    %v5391 = vunpack.c.l.b16 %v5259
    %v5392 = vunpack.c.l.b16 %v5260
    %v5393 = vunpack.c.l.b16 %v5261
    %v5394 = vunpack.c.l.b16 %v5262
    %v5395 = vunpack.c.l.b16 %v5263
    %v5396 = vunpack.c.l.b16 %v5264
    %v5397 = vunpack.c.l.b16 %v5265
    %v5398 = vunpack.c.l.b16 %v5266
    %v5399 = vunpack.c.l.b16 %v5267
    %v5400 = vunpack.c.l.b16 %v5268
    %v5401 = vunpack.c.l.b16 %v5269
    %v5402 = vunpack.c.l.b16 %v5270
    %v5403 = vunpack.c.l.b16 %v5271
    %v5404 = vunpack.c.l.b16 %v5272
    %v5405 = vunpack.c.l.b16 %v5273
    %v5406 = vunpack.c.l.b16 %v5274
    %v5407 = vunpack.c.l.b16 %v5275
    %v5408 = vunpack.c.l.b16 %v5276
    %v5409 = vunpack.c.l.b16 %v5277
    %v5410 = vunpack.c.l.b16 %v5278
    %v5411 = vunpack.c.l.b16 %v5279
    %v5412 = vunpack.c.l.b16 %v5280
    %v5413 = vunpack.c.l.b16 %v5281
    %v5414 = vunpack.c.l.b16 %v5282
    %v5415 = vunpack.c.l.b16 %v5283
    %v5416 = vunpack.c.l.b16 %v5284
    %v5417 = vunpack.c.l.b16 %v5285
    %v5418 = vunpack.c.l.b16 %v5286
    %v5419 = vunpack.c.l.b16 %v5287
    %v5420 = vunpack.c.l.b16 %v5288
    %v5421 = vunpack.c.l.b16 %v5289
    %v5422 = vunpack.c.l.b16 %v5290
    %v5423 = vunpack.c.l.b16 %v5291
    %v5424 = vunpack.c.l.b16 %v5292
    %v5425 = vunpack.c.l.b16 %v5293
    %v5426 = vunpack.c.l.b16 %v5294
    %v5427 = vpack.c.b16 %v5364, %v5363
    %v5428 = vpack.c.b16 %v5366, %v5365
    %v5429 = vpack.c.b16 %v5368, %v5367
    %v5430 = vpack.c.b16 %v5370, %v5369
    %v5431 = vpack.c.b16 %v5372, %v5371
    %v5432 = vpack.c.b16 %v5374, %v5373
    %v5433 = vpack.c.b16 %v5376, %v5375
    %v5434 = vpack.c.b16 %v5378, %v5377
    %v5435 = vpack.c.b16 %v5380, %v5379
    %v5436 = vpack.c.b16 %v5382, %v5381
    %v5437 = vpack.c.b16 %v5384, %v5383
    %v5438 = vpack.c.b16 %v5386, %v5385
    %v5439 = vpack.c.b16 %v5388, %v5387
    %v5440 = vpack.c.b16 %v5390, %v5389
    %v5441 = vpack.c.b16 %v5392, %v5391
    %v5442 = vpack.c.b16 %v5394, %v5393
    %v5443 = vpack.c.b16 %v5396, %v5395
    %v5444 = vpack.c.b16 %v5398, %v5397
    %v5445 = vpack.c.b16 %v5400, %v5399
    %v5446 = vpack.c.b16 %v5402, %v5401
    %v5447 = vpack.c.b16 %v5404, %v5403
    %v5448 = vpack.c.b16 %v5406, %v5405
    %v5449 = vpack.c.b16 %v5408, %v5407
    %v5450 = vpack.c.b16 %v5410, %v5409
    %v5451 = vpack.c.b16 %v5412, %v5411
    %v5452 = vpack.c.b16 %v5414, %v5413
    %v5453 = vpack.c.b16 %v5416, %v5415
    %v5454 = vpack.c.b16 %v5418, %v5417
    %v5455 = vpack.c.b16 %v5420, %v5419
    %v5456 = vpack.c.b16 %v5422, %v5421
    %v5457 = vpack.c.b16 %v5424, %v5423
    %v5458 = vpack.c.b16 %v5426, %v5425
    %5491 = vmatpush.bf16.msra.mxu0 %v5434
    %5492 = vmatpush.bf16.msra.mxu0 %v5433
    %5493 = vmatpush.bf16.msra.mxu0 %v5432
    %5494 = vmatpush.bf16.msra.mxu0 %v5431
    %5495 = vmatpush.bf16.msra.mxu0 %v5430
    %5496 = vmatpush.bf16.msra.mxu0 %v5429
    %5497 = vmatpush.bf16.msra.mxu0 %v5428
    %5498 = vmatpush.bf16.msra.mxu0 %v5427
    %5499 = vmatmul.bf16.gmra.mxu0 %v5227
    %v5500 = vpop.f32.mrf.mxu0
    %v5501 = vadd.f32 %v5297, %v5500
    %v5502 = vpop.f32.mrf.mxu0
    %5503 = vdwg.mxu0
    %5504 = vmatpush.bf16.msra.mxu0 %v5442
    %5505 = vmatpush.bf16.msra.mxu0 %v5441
    %5506 = vmatpush.bf16.msra.mxu0 %v5440
    %5507 = vmatpush.bf16.msra.mxu0 %v5439
    %5508 = vmatpush.bf16.msra.mxu0 %v5438
    %5509 = vmatpush.bf16.msra.mxu0 %v5437
    %5510 = vmatpush.bf16.msra.mxu0 %v5436
    %5511 = vmatpush.bf16.msra.mxu0 %v5435
    %5512 = vmatmul.bf16.gmra.mxu0 %v5228
    %v5513 = vpop.f32.mrf.mxu0
    %v5514 = vadd.f32 %v5501, %v5513
    %v5515 = vpop.f32.mrf.mxu0
    %5516 = vdwg.mxu0
    %5517 = vmatpush.bf16.msra.mxu0 %v5450
    %5518 = vmatpush.bf16.msra.mxu0 %v5449
    %5519 = vmatpush.bf16.msra.mxu0 %v5448
    %5520 = vmatpush.bf16.msra.mxu0 %v5447
    %5521 = vmatpush.bf16.msra.mxu0 %v5446
    %5522 = vmatpush.bf16.msra.mxu0 %v5445
    %5523 = vmatpush.bf16.msra.mxu0 %v5444
    %5524 = vmatpush.bf16.msra.mxu0 %v5443
    %5525 = vmatmul.bf16.gmra.mxu0 %v5229
    %v5526 = vpop.f32.mrf.mxu0
    %v5527 = vadd.f32 %v5514, %v5526
    %v5528 = vpop.f32.mrf.mxu0
    %5529 = vdwg.mxu0
    %5530 = vmatpush.bf16.msra.mxu0 %v5458
    %5531 = vmatpush.bf16.msra.mxu0 %v5457
    %5532 = vmatpush.bf16.msra.mxu0 %v5456
    %5533 = vmatpush.bf16.msra.mxu0 %v5455
    %5534 = vmatpush.bf16.msra.mxu0 %v5454
    %5535 = vmatpush.bf16.msra.mxu0 %v5453
    %5536 = vmatpush.bf16.msra.mxu0 %v5452
    %5537 = vmatpush.bf16.msra.mxu0 %v5451
    %5538 = vmatmul.bf16.gmra.mxu0 %v5230
    %v5539 = vpop.f32.mrf.mxu0
    %v5540 = vadd.f32 %v5527, %v5539
    %v5541 = vpop.f32.mrf.mxu0
    %5542 = vdwg.mxu0
    %5543 = vst [vmem:[#allocation14] sm:$0xff] %v5540
    // Predicated region
    $region58: #{tpu_custom_call.1} parent=1 // pred_check
      _
    $region59: #{tpu_custom_call.1} parent=1 // pred_check_branch
      %5545 = sbr.rel (0) target = $region61
    $region60: #{tpu_custom_call.1} parent=1 // pred_region
      %5547 = vsyncadd [#allocation4], 0
      %s5549 = sshll.u32 [#allocation14], 4
      %s5550 = int_to_ptr.vmem [resolvable:$true] %s5549
      %s5551 = sshll.u32 %s7, 4
      %s5552 = int_to_ptr.hbm [resolvable:$true] %s5551
      %5554 = dma.vmem_to_hbm [thread:$0]  %s5550, 128, %s5552, [#allocation4]
    $region61: #{tpu_custom_call.1} parent=1 // pred_fallthru
      _
    // Predicated region
    $region62: #{tpu_custom_call.1} parent=1 // pred_check
      _
    $region63: #{tpu_custom_call.1} parent=1 // pred_check_branch
      %5556 = sbr.rel (0) target = $region65
    $region64: #{tpu_custom_call.1} parent=1 // pred_region
      %5558 = dma.done [#allocation4], 128
    $region65: #{tpu_custom_call.1} parent=1 // pred_fallthru
      _
    %5559 = vsyncpa [#allocation3], 1
    %5560 = vsyncpa [#allocation6], 1
    %5561 = vsyncpa [#allocation9], 1
    %5562 = vsyncpa [#allocation12], 1
    %5563 = vsyncpa [#allocation4], 1

</llo_original>
